<compile_context>
chip_gen: v5e
topology: v5e:2x2
jax: 0.10.0
libtpu: 0.0.40
codegen_flags: <defaults>
</compile_context>

<pallas_src>
import jax
import jax.numpy as jnp
from jax import lax
from jax.experimental import pallas as pl
from jax.experimental.pallas import tpu as pltpu

K = 3      # RCAN default_conv kernel size, padding = K // 2, stride 1
PW = 128   # lane-aligned flat pad on each side of every image's pixel run


def _make_kernel(H, W, C, NSUB):
    HW = H * W
    SLOT = PW + HW + PW          # per-image slot width in the flat pad buffer
    assert PW >= W + 1           # pad strips must absorb the 3x3 H-edge reads

    def kernel(x_ref,
               w1_ref, t1_ref, w2_ref, t2_ref,
               cw1_ref, ct1_ref, cw2_ref, ct2_ref,
               o_ref, pad_ref, patch_ref, dma_sem):
        # ---- conv1 interior fill via local DMA, overlapped with setup ----
        copies = []
        for n in range(NSUB):
            cp = pltpu.make_async_copy(
                x_ref.at[n],
                pad_ref.at[:, n * SLOT + PW:n * SLOT + PW + HW],
                dma_sem.at[n])
            cp.start()
            copies.append(cp)

        # Zero the pad strips once per grid step; the interior writes never
        # touch them, so they stay zero through both convs.
        zeros_strip = jnp.zeros((C, PW), jnp.float32)
        for n in range(NSUB):
            pad_ref[:, n * SLOT:n * SLOT + PW] = zeros_strip
            pad_ref[:, n * SLOT + PW + HW:(n + 1) * SLOT] = zeros_strip

        # Hoisted width-edge masks, pre-broadcast to (C, HW), reused by both
        # convs (JAX does not CSE broadcast_in_dim, so do it exactly once).
        wpos = lax.broadcasted_iota(jnp.int32, (1, HW), 1) % W
        left_m = jnp.broadcast_to(wpos == 0, (C, HW))       # w-1 out of range
        right_m = jnp.broadcast_to(wpos == W - 1, (C, HW))  # w+1 out of range

        for cp in copies:
            cp.wait()

        def im2col():
            # 9 shifted copies of every image stacked along sublanes
            # -> patch_ref (9C, NSUB*HW); every store is lane-aligned.
            for kh in range(K):
                for kw in range(K):
                    t = kh * K + kw
                    for n in range(NSUB):
                        off = n * SLOT + PW + (kh - 1) * W + (kw - 1)
                        tap = pad_ref[:, off:off + HW]
                        if kw == 0:
                            tap = jnp.where(left_m, 0.0, tap)
                        elif kw == 2:
                            tap = jnp.where(right_m, 0.0, tap)
                        patch_ref[t * C:(t + 1) * C, n * HW:(n + 1) * HW] = tap

        def conv3x3(w_ref, t_ref, relu):
            im2col()
            # single K = 9*C MXU matmul over all NSUB images;
            # conv bias + eval-BN already folded into w / t.
            y = jnp.dot(w_ref[...], patch_ref[...],
                        preferred_element_type=jnp.float32) + t_ref[...]
            return jnp.maximum(y, 0.0) if relu else y

        # conv -> BN -> ReLU
        h1 = conv3x3(w1_ref, t1_ref, relu=True)             # (C, NSUB*HW)
        # refill the pad interiors with h1 (lane-aligned stores)
        for n in range(NSUB):
            pad_ref[:, n * SLOT + PW:n * SLOT + PW + HW] = \
                h1[:, n * HW:(n + 1) * HW]

        # conv -> BN
        h2 = conv3x3(w2_ref, t2_ref, relu=False)             # (C, NSUB*HW)
        # Spill h2 to the output ref before the CA epilogue (short live range).
        for n in range(NSUB):
            o_ref[n] = h2[:, n * HW:(n + 1) * HW].astype(o_ref.dtype)

        # CALayer: global avg-pool (MXU dot with 1/HW) -> 1x1 conv/BN/ReLU
        #          -> 1x1 conv/BN -> sigmoid, batched over NSUB images.
        pool_vec = jnp.full((HW, 1), 1.0 / HW, jnp.float32)
        pooled = jnp.concatenate(
            [jnp.dot(o_ref[n].astype(jnp.float32), pool_vec,
                     preferred_element_type=jnp.float32)
             for n in range(NSUB)], axis=1)                  # (C, NSUB)
        d = jnp.dot(cw1_ref[...], pooled, preferred_element_type=jnp.float32)
        d = jnp.maximum(d + ct1_ref[...], 0.0)               # (C//r, NSUB)
        u = jnp.dot(cw2_ref[...], d, preferred_element_type=jnp.float32)
        u = u + ct2_ref[...]                                  # (C, NSUB)
        gate = 1.0 / (1.0 + jnp.exp(-u))

        # channel attention + residual (re-read x_ref for the residual add)
        for n in range(NSUB):
            o_ref[n] = (o_ref[n].astype(jnp.float32) * gate[:, n:n + 1]
                        + x_ref[n].astype(jnp.float32)).astype(o_ref.dtype)

    return kernel


def rcab_forward(x_nchw, kp, n_per_step=None):
    """x_nchw: (N, C, H, W) float32 (PyTorch layout). kp: folded params."""
    N, C, H, W = x_nchw.shape
    HW = H * W
    Cr = kp["cw1"].shape[0]

    if n_per_step is None:
        # largest divisor of N keeping the im2col slab's lane width modest
        n_per_step = N
        while n_per_step > 1 and (N % n_per_step != 0
                                  or n_per_step * HW > 4096):
            n_per_step -= 1
    NSUB = n_per_step
    assert N % NSUB == 0

    x_flat = x_nchw.reshape(N, C, HW)                 # free reshape, lane-dense

    def fixed(shape):
        return pl.BlockSpec(shape, lambda b: (0,) * len(shape))

    grid_spec = pltpu.PrefetchScalarGridSpec(
        num_scalar_prefetch=0,
        grid=(N // NSUB,),
        in_specs=[
            pl.BlockSpec((NSUB, C, HW), lambda b: (b, 0, 0)),
            fixed((C, K * K * C)), fixed((C, 1)),
            fixed((C, K * K * C)), fixed((C, 1)),
            fixed((Cr, C)), fixed((Cr, 1)),
            fixed((C, Cr)), fixed((C, 1)),
        ],
        out_specs=pl.BlockSpec((NSUB, C, HW), lambda b: (b, 0, 0)),
        scratch_shapes=[
            pltpu.VMEM((C, NSUB * (HW + 2 * PW)), jnp.float32),  # flat-pad act
            pltpu.VMEM((K * K * C, NSUB * HW), jnp.float32),     # im2col slab
            pltpu.SemaphoreType.DMA((NSUB,)),                    # interior DMAs
        ],
    )

    out = pl.pallas_call(
        _make_kernel(H, W, C, NSUB),
        out_shape=jax.ShapeDtypeStruct((N, C, HW), x_nchw.dtype),
        grid_spec=grid_spec,
        compiler_params=pltpu.CompilerParams(
            dimension_semantics=("parallel",)),
    )(x_flat,
      kp["w1"], kp["t1"], kp["w2"], kp["t2"],
      kp["cw1"], kp["ct1"], kp["cw2"], kp["ct2"])

    return out.reshape(N, C, H, W)


# ----------------------------------------------------------------------------
# Parameters (PyTorch-equivalent layout) + folding for the kernel
# ----------------------------------------------------------------------------
def make_params(key, C, reduction):
    Cr = C // reduction
    eps = 1e-5
    it = iter(jax.random.split(key, 24))

    def bn(ch):                       # eval-mode BN, running stats folded
        gamma = 0.5 + jax.random.uniform(next(it), (ch,), jnp.float32)
        beta = 0.1 * jax.random.normal(next(it), (ch,), jnp.float32)
        mean = 0.1 * jax.random.normal(next(it), (ch,), jnp.float32)
        var = 0.5 + jax.random.uniform(next(it), (ch,), jnp.float32)
        scale = gamma / jnp.sqrt(var + eps)
        shift = beta - mean * scale
        return scale, shift

    w1 = 0.1 * jax.random.normal(next(it), (C, C, K, K), jnp.float32)   # OIHW
    b1 = 0.1 * jax.random.normal(next(it), (C,), jnp.float32)
    s1, t1 = bn(C)
    w2 = 0.1 * jax.random.normal(next(it), (C, C, K, K), jnp.float32)
    b2 = 0.1 * jax.random.normal(next(it), (C,), jnp.float32)
    s2, t2 = bn(C)
    ca_w1 = 0.1 * jax.random.normal(next(it), (Cr, C), jnp.float32)     # (out,in)
    ca_b1 = 0.1 * jax.random.normal(next(it), (Cr,), jnp.float32)
    cs1, ct1 = bn(Cr)
    ca_w2 = 0.1 * jax.random.normal(next(it), (C, Cr), jnp.float32)
    ca_b2 = 0.1 * jax.random.normal(next(it), (C,), jnp.float32)
    cs2, ct2 = bn(C)

    return dict(w1=w1, b1=b1, s1=s1, t1=t1, w2=w2, b2=b2, s2=s2, t2=t2,
                ca_w1=ca_w1, ca_b1=ca_b1, ca_s1=cs1, ca_t1=ct1,
                ca_w2=ca_w2, ca_b2=ca_b2, ca_s2=cs2, ca_t2=ct2)


def fold_params(p):
    """Fold conv bias + eval-mode BN into the weights; reshape for the kernel."""
    C = p["w1"].shape[0]

    def fold_conv(w_oihw, b, s, t):
        # (co, ci, kh, kw) -> (co, kh, kw, ci) -> (co, 9*ci), then scale by s[co]
        w = jnp.transpose(w_oihw, (0, 2, 3, 1)).reshape(C, K * K * C)
        return w * s[:, None], (b * s + t)[:, None]

    w1, t1 = fold_conv(p["w1"], p["b1"], p["s1"], p["t1"])
    w2, t2 = fold_conv(p["w2"], p["b2"], p["s2"], p["t2"])
    cw1 = p["ca_w1"] * p["ca_s1"][:, None]
    ct1 = (p["ca_b1"] * p["ca_s1"] + p["ca_t1"])[:, None]
    cw2 = p["ca_w2"] * p["ca_s2"][:, None]
    ct2 = (p["ca_b2"] * p["ca_s2"] + p["ca_t2"])[:, None]
    return dict(w1=w1, t1=t1, w2=w2, t2=t2, cw1=cw1, ct1=ct1, cw2=cw2, ct2=ct2)


# ----------------------------------------------------------------------------
# Pure-JAX reference (uses the un-folded params, NCHW like PyTorch)
# ----------------------------------------------------------------------------
def ref_forward(x, p):
    def conv_bn(inp, w, b, s, t, relu):
        y = lax.conv_general_dilated(
            inp, w, window_strides=(1, 1), padding="SAME",
            dimension_numbers=("NCHW", "OIHW", "NCHW"))
        y = y + b[None, :, None, None]
        y = y * s[None, :, None, None] + t[None, :, None, None]
        return jnp.maximum(y, 0.0) if relu else y

    h1 = conv_bn(x, p["w1"], p["b1"], p["s1"], p["t1"], True)
    h2 = conv_bn(h1, p["w2"], p["b2"], p["s2"], p["t2"], False)
    pooled = jnp.mean(h2, axis=(2, 3))                       # (N, C)
    d = pooled @ p["ca_w1"].T + p["ca_b1"]
    d = jnp.maximum(d * p["ca_s1"] + p["ca_t1"], 0.0)
    u = d @ p["ca_w2"].T + p["ca_b2"]
    u = u * p["ca_s2"] + p["ca_t2"]
    gate = jax.nn.sigmoid(u)
    return h2 * gate[:, :, None, None] + x


if __name__ == "__main__":
    key = jax.random.PRNGKey(0)
    kx, kp_key = jax.random.split(key)

    # RCAB(n_feat=32, kernel_size=3, reduction=4), batch=2, 16x16 feature maps
    N, C, H, W = 2, 32, 16, 16
    reduction = 4

    x = jax.random.normal(kx, (N, C, H, W), jnp.float32)     # PyTorch NCHW
    params = make_params(kp_key, C, reduction)
    kparams = fold_params(params)

    out = rcab_forward(x, kparams)
    out = jax.block_until_ready(out)

    ref = ref_forward(x, params)
    max_err = float(jnp.max(jnp.abs(out - ref)))
    assert jnp.allclose(out, ref, rtol=5e-4, atol=5e-4), max_err

    print("KERNEL_OK")
</pallas_src>

<mosaic_0001>
module attributes {stable_mosaic.version = 11 : i64} {
  func.func @kernel(%arg0: i32, %arg1: memref<2x32x256xf32, #tpu.memory_space<vmem>>, %arg2: memref<32x288xf32, #tpu.memory_space<vmem>>, %arg3: memref<32x1xf32, #tpu.memory_space<vmem>>, %arg4: memref<32x288xf32, #tpu.memory_space<vmem>>, %arg5: memref<32x1xf32, #tpu.memory_space<vmem>>, %arg6: memref<8x32xf32, #tpu.memory_space<vmem>>, %arg7: memref<8x1xf32, #tpu.memory_space<vmem>>, %arg8: memref<32x8xf32, #tpu.memory_space<vmem>>, %arg9: memref<32x1xf32, #tpu.memory_space<vmem>>, %arg10: memref<2x32x256xf32, #tpu.memory_space<vmem>>, %arg11: memref<32x1024xf32, #tpu.memory_space<vmem>>, %arg12: memref<288x512xf32, #tpu.memory_space<vmem>>, %arg13: memref<2x!tpu.dma_semaphore, #tpu.memory_space<semaphore_mem>>) attributes {dimension_semantics = [#tpu.dimension_semantics<parallel>], iteration_bounds = array<i64: 1>, scalar_prefetch = 0 : i64, scratch_operands = 3 : i64, tpu.core_type = #tpu.core_type<tc>, window_params = [{transform_indices = @transform_0, window_bounds = array<i64: 2, 32, 256>}, {pipeline_mode = #tpu.pipeline_mode<synchronous>, transform_indices = @transform_1, window_bounds = array<i64: 32, 288>}, {pipeline_mode = #tpu.pipeline_mode<synchronous>, transform_indices = @transform_2, window_bounds = array<i64: 32, 1>}, {pipeline_mode = #tpu.pipeline_mode<synchronous>, transform_indices = @transform_3, window_bounds = array<i64: 32, 288>}, {pipeline_mode = #tpu.pipeline_mode<synchronous>, transform_indices = @transform_4, window_bounds = array<i64: 32, 1>}, {pipeline_mode = #tpu.pipeline_mode<synchronous>, transform_indices = @transform_5, window_bounds = array<i64: 8, 32>}, {pipeline_mode = #tpu.pipeline_mode<synchronous>, transform_indices = @transform_6, window_bounds = array<i64: 8, 1>}, {pipeline_mode = #tpu.pipeline_mode<synchronous>, transform_indices = @transform_7, window_bounds = array<i64: 32, 8>}, {pipeline_mode = #tpu.pipeline_mode<synchronous>, transform_indices = @transform_8, window_bounds = array<i64: 32, 1>}, {transform_indices = @transform_9, window_bounds = array<i64: 2, 32, 256>}]} {
    %c0_i32 = arith.constant 0 : i32
    %c0_i32_0 = arith.constant 0 : i32
    %c0_i32_1 = arith.constant 0 : i32
    %c0_i32_2 = arith.constant 0 : i32
    %0 = tpu.memref_slice %arg1[%c0_i32, %c0_i32_1, %c0_i32_2] : memref<2x32x256xf32, #tpu.memory_space<vmem>> -> memref<1x32x256xf32, #tpu.memory_space<vmem>>
    %1 = tpu.memref_squeeze %0 : memref<1x32x256xf32, #tpu.memory_space<vmem>> -> memref<32x256xf32, #tpu.memory_space<vmem>>
    %c0_i32_3 = arith.constant 0 : i32
    %c128_i32 = arith.constant 128 : i32
    %2 = tpu.memref_slice %arg11[%c0_i32_3, %c128_i32] : memref<32x1024xf32, #tpu.memory_space<vmem>> -> memref<32x256xf32, #tpu.memory_space<vmem>>
    %3 = tpu.memref_slice %arg13[%c0_i32_0] : memref<2x!tpu.dma_semaphore, #tpu.memory_space<semaphore_mem>> -> memref<1x!tpu.dma_semaphore, #tpu.memory_space<semaphore_mem>>
    %4 = tpu.memref_squeeze %3 : memref<1x!tpu.dma_semaphore, #tpu.memory_space<semaphore_mem>> -> memref<!tpu.dma_semaphore, #tpu.memory_space<semaphore_mem>>
    tpu.enqueue_dma source(%1 : memref<32x256xf32, #tpu.memory_space<vmem>>) target(%2 : memref<32x256xf32, #tpu.memory_space<vmem>>) target_semaphore(%4 : memref<!tpu.dma_semaphore, #tpu.memory_space<semaphore_mem>>)
    %c1_i32 = arith.constant 1 : i32
    %c1_i32_4 = arith.constant 1 : i32
    %c0_i32_5 = arith.constant 0 : i32
    %c0_i32_6 = arith.constant 0 : i32
    %5 = tpu.memref_slice %arg1[%c1_i32, %c0_i32_5, %c0_i32_6] : memref<2x32x256xf32, #tpu.memory_space<vmem>> -> memref<1x32x256xf32, #tpu.memory_space<vmem>>
    %6 = tpu.memref_squeeze %5 : memref<1x32x256xf32, #tpu.memory_space<vmem>> -> memref<32x256xf32, #tpu.memory_space<vmem>>
    %c0_i32_7 = arith.constant 0 : i32
    %c640_i32 = arith.constant 640 : i32
    %7 = tpu.memref_slice %arg11[%c0_i32_7, %c640_i32] : memref<32x1024xf32, #tpu.memory_space<vmem>> -> memref<32x256xf32, #tpu.memory_space<vmem>>
    %8 = tpu.memref_slice %arg13[%c1_i32_4] : memref<2x!tpu.dma_semaphore, #tpu.memory_space<semaphore_mem>> -> memref<1x!tpu.dma_semaphore, #tpu.memory_space<semaphore_mem>>
    %9 = tpu.memref_squeeze %8 : memref<1x!tpu.dma_semaphore, #tpu.memory_space<semaphore_mem>> -> memref<!tpu.dma_semaphore, #tpu.memory_space<semaphore_mem>>
    tpu.enqueue_dma source(%6 : memref<32x256xf32, #tpu.memory_space<vmem>>) target(%7 : memref<32x256xf32, #tpu.memory_space<vmem>>) target_semaphore(%9 : memref<!tpu.dma_semaphore, #tpu.memory_space<semaphore_mem>>)
    %cst = arith.constant 0.000000e+00 : f32
    %10 = vector.broadcast %cst : f32 to vector<32x128xf32>
    %c0 = arith.constant 0 : index
    %c0_8 = arith.constant 0 : index
    %11 = vector.load %arg11[%c0, %c0_8] : memref<32x1024xf32, #tpu.memory_space<vmem>>, vector<32x128xf32>
    tpu.vector_store %arg11[%c0, %c0_8], %10 {strides = array<i32>} : memref<32x1024xf32, #tpu.memory_space<vmem>>, vector<32x128xf32>,
    %c0_9 = arith.constant 0 : index
    %c384 = arith.constant 384 : index
    %12 = vector.load %arg11[%c0_9, %c384] : memref<32x1024xf32, #tpu.memory_space<vmem>>, vector<32x128xf32>
    tpu.vector_store %arg11[%c0_9, %c384], %10 {strides = array<i32>} : memref<32x1024xf32, #tpu.memory_space<vmem>>, vector<32x128xf32>,
    %c0_10 = arith.constant 0 : index
    %c512 = arith.constant 512 : index
    %13 = vector.load %arg11[%c0_10, %c512] : memref<32x1024xf32, #tpu.memory_space<vmem>>, vector<32x128xf32>
    tpu.vector_store %arg11[%c0_10, %c512], %10 {strides = array<i32>} : memref<32x1024xf32, #tpu.memory_space<vmem>>, vector<32x128xf32>,
    %c0_11 = arith.constant 0 : index
    %c896 = arith.constant 896 : index
    %14 = vector.load %arg11[%c0_11, %c896] : memref<32x1024xf32, #tpu.memory_space<vmem>>, vector<32x128xf32>
    tpu.vector_store %arg11[%c0_11, %c896], %10 {strides = array<i32>} : memref<32x1024xf32, #tpu.memory_space<vmem>>, vector<32x128xf32>,
    %15 = tpu.iota {dimensions = array<i32: 1>} : vector<1x256xi32>
    %c16_i32 = arith.constant 16 : i32
    %c0_i32_12 = arith.constant 0 : i32
    %16 = arith.cmpi eq, %c16_i32, %c0_i32_12 : i32
    %c1_i32_13 = arith.constant 1 : i32
    %17 = arith.select %16, %c1_i32_13, %c16_i32 : i32
    %18 = vector.broadcast %17 : i32 to vector<1x256xi32>
    %19 = arith.remsi %15, %18 : vector<1x256xi32>
    %c0_i32_14 = arith.constant 0 : i32
    %20 = vector.broadcast %c0_i32_14 : i32 to vector<1x256xi32>
    %21 = arith.cmpi ne, %19, %20 : vector<1x256xi32>
    %c0_i32_15 = arith.constant 0 : i32
    %22 = vector.broadcast %c0_i32_15 : i32 to vector<1x256xi32>
    %23 = arith.cmpi slt, %19, %22 : vector<1x256xi32>
    %c0_i32_16 = arith.constant 0 : i32
    %24 = arith.cmpi slt, %17, %c0_i32_16 : i32
    %25 = vector.broadcast %24 : i1 to vector<1x256xi1>
    %26 = vector.broadcast %25 : vector<1x256xi1> to vector<1x256xi1>
    %27 = arith.xori %23, %26 : vector<1x256xi1>
    %28 = arith.andi %27, %21 : vector<1x256xi1>
    %29 = vector.broadcast %17 : i32 to vector<1x256xi32>
    %30 = arith.addi %19, %29 : vector<1x256xi32>
    %31 = arith.select %28, %30, %19 : vector<1x256xi1>, vector<1x256xi32>
    %c0_i32_17 = arith.constant 0 : i32
    %32 = vector.broadcast %c0_i32_17 : i32 to vector<1x256xi32>
    %33 = arith.cmpi eq, %31, %32 : vector<1x256xi32>
    %34 = vector.shape_cast %33 : vector<1x256xi1> to vector<1x256xi1>
    %35 = vector.broadcast %34 : vector<1x256xi1> to vector<32x256xi1>
    %c15_i32 = arith.constant 15 : i32
    %36 = vector.broadcast %c15_i32 : i32 to vector<1x256xi32>
    %37 = arith.cmpi eq, %31, %36 : vector<1x256xi32>
    %38 = vector.shape_cast %37 : vector<1x256xi1> to vector<1x256xi1>
    %39 = vector.broadcast %38 : vector<1x256xi1> to vector<32x256xi1>
    %c0_i32_18 = arith.constant 0 : i32
    %c0_i32_19 = arith.constant 0 : i32
    %c0_i32_20 = arith.constant 0 : i32
    %c0_i32_21 = arith.constant 0 : i32
    %40 = tpu.memref_slice %arg1[%c0_i32_18, %c0_i32_20, %c0_i32_21] : memref<2x32x256xf32, #tpu.memory_space<vmem>> -> memref<1x32x256xf32, #tpu.memory_space<vmem>>
    %41 = tpu.memref_squeeze %40 : memref<1x32x256xf32, #tpu.memory_space<vmem>> -> memref<32x256xf32, #tpu.memory_space<vmem>>
    %c0_i32_22 = arith.constant 0 : i32
    %c128_i32_23 = arith.constant 128 : i32
    %42 = tpu.memref_slice %arg11[%c0_i32_22, %c128_i32_23] : memref<32x1024xf32, #tpu.memory_space<vmem>> -> memref<32x256xf32, #tpu.memory_space<vmem>>
    %43 = tpu.memref_slice %arg13[%c0_i32_19] : memref<2x!tpu.dma_semaphore, #tpu.memory_space<semaphore_mem>> -> memref<1x!tpu.dma_semaphore, #tpu.memory_space<semaphore_mem>>
    %44 = tpu.memref_squeeze %43 : memref<1x!tpu.dma_semaphore, #tpu.memory_space<semaphore_mem>> -> memref<!tpu.dma_semaphore, #tpu.memory_space<semaphore_mem>>
    tpu.wait_dma2 semaphore(%44 : memref<!tpu.dma_semaphore, #tpu.memory_space<semaphore_mem>>) src(%41 : memref<32x256xf32, #tpu.memory_space<vmem>>) dst(%42 : memref<32x256xf32, #tpu.memory_space<vmem>>)
    %c1_i32_24 = arith.constant 1 : i32
    %c1_i32_25 = arith.constant 1 : i32
    %c0_i32_26 = arith.constant 0 : i32
    %c0_i32_27 = arith.constant 0 : i32
    %45 = tpu.memref_slice %arg1[%c1_i32_24, %c0_i32_26, %c0_i32_27] : memref<2x32x256xf32, #tpu.memory_space<vmem>> -> memref<1x32x256xf32, #tpu.memory_space<vmem>>
    %46 = tpu.memref_squeeze %45 : memref<1x32x256xf32, #tpu.memory_space<vmem>> -> memref<32x256xf32, #tpu.memory_space<vmem>>
    %c0_i32_28 = arith.constant 0 : i32
    %c640_i32_29 = arith.constant 640 : i32
    %47 = tpu.memref_slice %arg11[%c0_i32_28, %c640_i32_29] : memref<32x1024xf32, #tpu.memory_space<vmem>> -> memref<32x256xf32, #tpu.memory_space<vmem>>
    %48 = tpu.memref_slice %arg13[%c1_i32_25] : memref<2x!tpu.dma_semaphore, #tpu.memory_space<semaphore_mem>> -> memref<1x!tpu.dma_semaphore, #tpu.memory_space<semaphore_mem>>
    %49 = tpu.memref_squeeze %48 : memref<1x!tpu.dma_semaphore, #tpu.memory_space<semaphore_mem>> -> memref<!tpu.dma_semaphore, #tpu.memory_space<semaphore_mem>>
    tpu.wait_dma2 semaphore(%49 : memref<!tpu.dma_semaphore, #tpu.memory_space<semaphore_mem>>) src(%46 : memref<32x256xf32, #tpu.memory_space<vmem>>) dst(%47 : memref<32x256xf32, #tpu.memory_space<vmem>>)
    %c0_30 = arith.constant 0 : index
    %c111 = arith.constant 111 : index
    %50 = vector.load %arg11[%c0_30, %c111] : memref<32x1024xf32, #tpu.memory_space<vmem>>, vector<32x256xf32>
    %cst_31 = arith.constant 0.000000e+00 : f32
    %51 = vector.broadcast %cst_31 : f32 to vector<32x256xf32>
    %52 = arith.select %35, %51, %50 : vector<32x256xi1>, vector<32x256xf32>
    %c0_32 = arith.constant 0 : index
    %c0_33 = arith.constant 0 : index
    %53 = vector.load %arg12[%c0_32, %c0_33] : memref<288x512xf32, #tpu.memory_space<vmem>>, vector<32x256xf32>
    tpu.vector_store %arg12[%c0_32, %c0_33], %52 {strides = array<i32>} : memref<288x512xf32, #tpu.memory_space<vmem>>, vector<32x256xf32>,
    %c0_34 = arith.constant 0 : index
    %c623 = arith.constant 623 : index
    %54 = vector.load %arg11[%c0_34, %c623] : memref<32x1024xf32, #tpu.memory_space<vmem>>, vector<32x256xf32>
    %cst_35 = arith.constant 0.000000e+00 : f32
    %55 = vector.broadcast %cst_35 : f32 to vector<32x256xf32>
    %56 = arith.select %35, %55, %54 : vector<32x256xi1>, vector<32x256xf32>
    %c0_36 = arith.constant 0 : index
    %c256 = arith.constant 256 : index
    %57 = vector.load %arg12[%c0_36, %c256] : memref<288x512xf32, #tpu.memory_space<vmem>>, vector<32x256xf32>
    tpu.vector_store %arg12[%c0_36, %c256], %56 {strides = array<i32>} : memref<288x512xf32, #tpu.memory_space<vmem>>, vector<32x256xf32>,
    %c0_37 = arith.constant 0 : index
    %c112 = arith.constant 112 : index
    %58 = vector.load %arg11[%c0_37, %c112] : memref<32x1024xf32, #tpu.memory_space<vmem>>, vector<32x256xf32>
    %c32 = arith.constant 32 : index
    %c0_38 = arith.constant 0 : index
    %59 = vector.load %arg12[%c32, %c0_38] : memref<288x512xf32, #tpu.memory_space<vmem>>, vector<32x256xf32>
    tpu.vector_store %arg12[%c32, %c0_38], %58 {strides = array<i32>} : memref<288x512xf32, #tpu.memory_space<vmem>>, vector<32x256xf32>,
    %c0_39 = arith.constant 0 : index
    %c624 = arith.constant 624 : index
    %60 = vector.load %arg11[%c0_39, %c624] : memref<32x1024xf32, #tpu.memory_space<vmem>>, vector<32x256xf32>
    %c32_40 = arith.constant 32 : index
    %c256_41 = arith.constant 256 : index
    %61 = vector.load %arg12[%c32_40, %c256_41] : memref<288x512xf32, #tpu.memory_space<vmem>>, vector<32x256xf32>
    tpu.vector_store %arg12[%c32_40, %c256_41], %60 {strides = array<i32>} : memref<288x512xf32, #tpu.memory_space<vmem>>, vector<32x256xf32>,
    %c0_42 = arith.constant 0 : index
    %c113 = arith.constant 113 : index
    %62 = vector.load %arg11[%c0_42, %c113] : memref<32x1024xf32, #tpu.memory_space<vmem>>, vector<32x256xf32>
    %cst_43 = arith.constant 0.000000e+00 : f32
    %63 = vector.broadcast %cst_43 : f32 to vector<32x256xf32>
    %64 = arith.select %39, %63, %62 : vector<32x256xi1>, vector<32x256xf32>
    %c64 = arith.constant 64 : index
    %c0_44 = arith.constant 0 : index
    %65 = vector.load %arg12[%c64, %c0_44] : memref<288x512xf32, #tpu.memory_space<vmem>>, vector<32x256xf32>
    tpu.vector_store %arg12[%c64, %c0_44], %64 {strides = array<i32>} : memref<288x512xf32, #tpu.memory_space<vmem>>, vector<32x256xf32>,
    %c0_45 = arith.constant 0 : index
    %c625 = arith.constant 625 : index
    %66 = vector.load %arg11[%c0_45, %c625] : memref<32x1024xf32, #tpu.memory_space<vmem>>, vector<32x256xf32>
    %cst_46 = arith.constant 0.000000e+00 : f32
    %67 = vector.broadcast %cst_46 : f32 to vector<32x256xf32>
    %68 = arith.select %39, %67, %66 : vector<32x256xi1>, vector<32x256xf32>
    %c64_47 = arith.constant 64 : index
    %c256_48 = arith.constant 256 : index
    %69 = vector.load %arg12[%c64_47, %c256_48] : memref<288x512xf32, #tpu.memory_space<vmem>>, vector<32x256xf32>
    tpu.vector_store %arg12[%c64_47, %c256_48], %68 {strides = array<i32>} : memref<288x512xf32, #tpu.memory_space<vmem>>, vector<32x256xf32>,
    %c0_49 = arith.constant 0 : index
    %c127 = arith.constant 127 : index
    %70 = vector.load %arg11[%c0_49, %c127] : memref<32x1024xf32, #tpu.memory_space<vmem>>, vector<32x256xf32>
    %cst_50 = arith.constant 0.000000e+00 : f32
    %71 = vector.broadcast %cst_50 : f32 to vector<32x256xf32>
    %72 = arith.select %35, %71, %70 : vector<32x256xi1>, vector<32x256xf32>
    %c96 = arith.constant 96 : index
    %c0_51 = arith.constant 0 : index
    %73 = vector.load %arg12[%c96, %c0_51] : memref<288x512xf32, #tpu.memory_space<vmem>>, vector<32x256xf32>
    tpu.vector_store %arg12[%c96, %c0_51], %72 {strides = array<i32>} : memref<288x512xf32, #tpu.memory_space<vmem>>, vector<32x256xf32>,
    %c0_52 = arith.constant 0 : index
    %c639 = arith.constant 639 : index
    %74 = vector.load %arg11[%c0_52, %c639] : memref<32x1024xf32, #tpu.memory_space<vmem>>, vector<32x256xf32>
    %cst_53 = arith.constant 0.000000e+00 : f32
    %75 = vector.broadcast %cst_53 : f32 to vector<32x256xf32>
    %76 = arith.select %35, %75, %74 : vector<32x256xi1>, vector<32x256xf32>
    %c96_54 = arith.constant 96 : index
    %c256_55 = arith.constant 256 : index
    %77 = vector.load %arg12[%c96_54, %c256_55] : memref<288x512xf32, #tpu.memory_space<vmem>>, vector<32x256xf32>
    tpu.vector_store %arg12[%c96_54, %c256_55], %76 {strides = array<i32>} : memref<288x512xf32, #tpu.memory_space<vmem>>, vector<32x256xf32>,
    %c0_56 = arith.constant 0 : index
    %c128 = arith.constant 128 : index
    %78 = vector.load %arg11[%c0_56, %c128] : memref<32x1024xf32, #tpu.memory_space<vmem>>, vector<32x256xf32>
    %c128_57 = arith.constant 128 : index
    %c0_58 = arith.constant 0 : index
    %79 = vector.load %arg12[%c128_57, %c0_58] : memref<288x512xf32, #tpu.memory_space<vmem>>, vector<32x256xf32>
    tpu.vector_store %arg12[%c128_57, %c0_58], %78 {strides = array<i32>} : memref<288x512xf32, #tpu.memory_space<vmem>>, vector<32x256xf32>,
    %c0_59 = arith.constant 0 : index
    %c640 = arith.constant 640 : index
    %80 = vector.load %arg11[%c0_59, %c640] : memref<32x1024xf32, #tpu.memory_space<vmem>>, vector<32x256xf32>
    %c128_60 = arith.constant 128 : index
    %c256_61 = arith.constant 256 : index
    %81 = vector.load %arg12[%c128_60, %c256_61] : memref<288x512xf32, #tpu.memory_space<vmem>>, vector<32x256xf32>
    tpu.vector_store %arg12[%c128_60, %c256_61], %80 {strides = array<i32>} : memref<288x512xf32, #tpu.memory_space<vmem>>, vector<32x256xf32>,
    %c0_62 = arith.constant 0 : index
    %c129 = arith.constant 129 : index
    %82 = vector.load %arg11[%c0_62, %c129] : memref<32x1024xf32, #tpu.memory_space<vmem>>, vector<32x256xf32>
    %cst_63 = arith.constant 0.000000e+00 : f32
    %83 = vector.broadcast %cst_63 : f32 to vector<32x256xf32>
    %84 = arith.select %39, %83, %82 : vector<32x256xi1>, vector<32x256xf32>
    %c160 = arith.constant 160 : index
    %c0_64 = arith.constant 0 : index
    %85 = vector.load %arg12[%c160, %c0_64] : memref<288x512xf32, #tpu.memory_space<vmem>>, vector<32x256xf32>
    tpu.vector_store %arg12[%c160, %c0_64], %84 {strides = array<i32>} : memref<288x512xf32, #tpu.memory_space<vmem>>, vector<32x256xf32>,
    %c0_65 = arith.constant 0 : index
    %c641 = arith.constant 641 : index
    %86 = vector.load %arg11[%c0_65, %c641] : memref<32x1024xf32, #tpu.memory_space<vmem>>, vector<32x256xf32>
    %cst_66 = arith.constant 0.000000e+00 : f32
    %87 = vector.broadcast %cst_66 : f32 to vector<32x256xf32>
    %88 = arith.select %39, %87, %86 : vector<32x256xi1>, vector<32x256xf32>
    %c160_67 = arith.constant 160 : index
    %c256_68 = arith.constant 256 : index
    %89 = vector.load %arg12[%c160_67, %c256_68] : memref<288x512xf32, #tpu.memory_space<vmem>>, vector<32x256xf32>
    tpu.vector_store %arg12[%c160_67, %c256_68], %88 {strides = array<i32>} : memref<288x512xf32, #tpu.memory_space<vmem>>, vector<32x256xf32>,
    %c0_69 = arith.constant 0 : index
    %c143 = arith.constant 143 : index
    %90 = vector.load %arg11[%c0_69, %c143] : memref<32x1024xf32, #tpu.memory_space<vmem>>, vector<32x256xf32>
    %cst_70 = arith.constant 0.000000e+00 : f32
    %91 = vector.broadcast %cst_70 : f32 to vector<32x256xf32>
    %92 = arith.select %35, %91, %90 : vector<32x256xi1>, vector<32x256xf32>
    %c192 = arith.constant 192 : index
    %c0_71 = arith.constant 0 : index
    %93 = vector.load %arg12[%c192, %c0_71] : memref<288x512xf32, #tpu.memory_space<vmem>>, vector<32x256xf32>
    tpu.vector_store %arg12[%c192, %c0_71], %92 {strides = array<i32>} : memref<288x512xf32, #tpu.memory_space<vmem>>, vector<32x256xf32>,
    %c0_72 = arith.constant 0 : index
    %c655 = arith.constant 655 : index
    %94 = vector.load %arg11[%c0_72, %c655] : memref<32x1024xf32, #tpu.memory_space<vmem>>, vector<32x256xf32>
    %cst_73 = arith.constant 0.000000e+00 : f32
    %95 = vector.broadcast %cst_73 : f32 to vector<32x256xf32>
    %96 = arith.select %35, %95, %94 : vector<32x256xi1>, vector<32x256xf32>
    %c192_74 = arith.constant 192 : index
    %c256_75 = arith.constant 256 : index
    %97 = vector.load %arg12[%c192_74, %c256_75] : memref<288x512xf32, #tpu.memory_space<vmem>>, vector<32x256xf32>
    tpu.vector_store %arg12[%c192_74, %c256_75], %96 {strides = array<i32>} : memref<288x512xf32, #tpu.memory_space<vmem>>, vector<32x256xf32>,
    %c0_76 = arith.constant 0 : index
    %c144 = arith.constant 144 : index
    %98 = vector.load %arg11[%c0_76, %c144] : memref<32x1024xf32, #tpu.memory_space<vmem>>, vector<32x256xf32>
    %c224 = arith.constant 224 : index
    %c0_77 = arith.constant 0 : index
    %99 = vector.load %arg12[%c224, %c0_77] : memref<288x512xf32, #tpu.memory_space<vmem>>, vector<32x256xf32>
    tpu.vector_store %arg12[%c224, %c0_77], %98 {strides = array<i32>} : memref<288x512xf32, #tpu.memory_space<vmem>>, vector<32x256xf32>,
    %c0_78 = arith.constant 0 : index
    %c656 = arith.constant 656 : index
    %100 = vector.load %arg11[%c0_78, %c656] : memref<32x1024xf32, #tpu.memory_space<vmem>>, vector<32x256xf32>
    %c224_79 = arith.constant 224 : index
    %c256_80 = arith.constant 256 : index
    %101 = vector.load %arg12[%c224_79, %c256_80] : memref<288x512xf32, #tpu.memory_space<vmem>>, vector<32x256xf32>
    tpu.vector_store %arg12[%c224_79, %c256_80], %100 {strides = array<i32>} : memref<288x512xf32, #tpu.memory_space<vmem>>, vector<32x256xf32>,
    %c0_81 = arith.constant 0 : index
    %c145 = arith.constant 145 : index
    %102 = vector.load %arg11[%c0_81, %c145] : memref<32x1024xf32, #tpu.memory_space<vmem>>, vector<32x256xf32>
    %cst_82 = arith.constant 0.000000e+00 : f32
    %103 = vector.broadcast %cst_82 : f32 to vector<32x256xf32>
    %104 = arith.select %39, %103, %102 : vector<32x256xi1>, vector<32x256xf32>
    %c256_83 = arith.constant 256 : index
    %c0_84 = arith.constant 0 : index
    %105 = vector.load %arg12[%c256_83, %c0_84] : memref<288x512xf32, #tpu.memory_space<vmem>>, vector<32x256xf32>
    tpu.vector_store %arg12[%c256_83, %c0_84], %104 {strides = array<i32>} : memref<288x512xf32, #tpu.memory_space<vmem>>, vector<32x256xf32>,
    %c0_85 = arith.constant 0 : index
    %c657 = arith.constant 657 : index
    %106 = vector.load %arg11[%c0_85, %c657] : memref<32x1024xf32, #tpu.memory_space<vmem>>, vector<32x256xf32>
    %cst_86 = arith.constant 0.000000e+00 : f32
    %107 = vector.broadcast %cst_86 : f32 to vector<32x256xf32>
    %108 = arith.select %39, %107, %106 : vector<32x256xi1>, vector<32x256xf32>
    %c256_87 = arith.constant 256 : index
    %c256_88 = arith.constant 256 : index
    %109 = vector.load %arg12[%c256_87, %c256_88] : memref<288x512xf32, #tpu.memory_space<vmem>>, vector<32x256xf32>
    tpu.vector_store %arg12[%c256_87, %c256_88], %108 {strides = array<i32>} : memref<288x512xf32, #tpu.memory_space<vmem>>, vector<32x256xf32>,
    %c0_89 = arith.constant 0 : index
    %c0_90 = arith.constant 0 : index
    %110 = vector.load %arg2[%c0_89, %c0_90] : memref<32x288xf32, #tpu.memory_space<vmem>>, vector<32x288xf32>
    %c0_91 = arith.constant 0 : index
    %c0_92 = arith.constant 0 : index
    %111 = vector.load %arg12[%c0_91, %c0_92] : memref<288x512xf32, #tpu.memory_space<vmem>>, vector<288x512xf32>
    %cst_93 = arith.constant dense<0.000000e+00> : vector<32x512xf32>
    %112 = tpu.matmul %110, %111, %cst_93 {dimension_numbers = #tpu.dot_dimension_numbers<[1], [0], [0], [1], [0, 0, 1, 1], [], []>} : vector<32x288xf32>, vector<288x512xf32>, vector<32x512xf32> -> vector<32x512xf32>
    %c0_94 = arith.constant 0 : index
    %c0_95 = arith.constant 0 : index
    %113 = vector.load %arg3[%c0_94, %c0_95] : memref<32x1xf32, #tpu.memory_space<vmem>>, vector<32x1xf32>
    %114 = vector.broadcast %113 : vector<32x1xf32> to vector<32x512xf32>
    %115 = arith.addf %112, %114 : vector<32x512xf32>
    %cst_96 = arith.constant 0.000000e+00 : f32
    %116 = vector.broadcast %cst_96 : f32 to vector<32x512xf32>
    %117 = arith.maximumf %115, %116 : vector<32x512xf32>
    %118 = vector.extract_strided_slice %117 {offsets = [0, 0], sizes = [32, 256], strides = [1, 1]} : vector<32x512xf32> to vector<32x256xf32>
    %c0_97 = arith.constant 0 : index
    %c128_98 = arith.constant 128 : index
    %119 = vector.load %arg11[%c0_97, %c128_98] : memref<32x1024xf32, #tpu.memory_space<vmem>>, vector<32x256xf32>
    tpu.vector_store %arg11[%c0_97, %c128_98], %118 {strides = array<i32>} : memref<32x1024xf32, #tpu.memory_space<vmem>>, vector<32x256xf32>,
    %120 = vector.extract_strided_slice %117 {offsets = [0, 256], sizes = [32, 256], strides = [1, 1]} : vector<32x512xf32> to vector<32x256xf32>
    %c0_99 = arith.constant 0 : index
    %c640_100 = arith.constant 640 : index
    %121 = vector.load %arg11[%c0_99, %c640_100] : memref<32x1024xf32, #tpu.memory_space<vmem>>, vector<32x256xf32>
    tpu.vector_store %arg11[%c0_99, %c640_100], %120 {strides = array<i32>} : memref<32x1024xf32, #tpu.memory_space<vmem>>, vector<32x256xf32>,
    %c0_101 = arith.constant 0 : index
    %c111_102 = arith.constant 111 : index
    %122 = vector.load %arg11[%c0_101, %c111_102] : memref<32x1024xf32, #tpu.memory_space<vmem>>, vector<32x256xf32>
    %cst_103 = arith.constant 0.000000e+00 : f32
    %123 = vector.broadcast %cst_103 : f32 to vector<32x256xf32>
    %124 = arith.select %35, %123, %122 : vector<32x256xi1>, vector<32x256xf32>
    %c0_104 = arith.constant 0 : index
    %c0_105 = arith.constant 0 : index
    %125 = vector.load %arg12[%c0_104, %c0_105] : memref<288x512xf32, #tpu.memory_space<vmem>>, vector<32x256xf32>
    tpu.vector_store %arg12[%c0_104, %c0_105], %124 {strides = array<i32>} : memref<288x512xf32, #tpu.memory_space<vmem>>, vector<32x256xf32>,
    %c0_106 = arith.constant 0 : index
    %c623_107 = arith.constant 623 : index
    %126 = vector.load %arg11[%c0_106, %c623_107] : memref<32x1024xf32, #tpu.memory_space<vmem>>, vector<32x256xf32>
    %cst_108 = arith.constant 0.000000e+00 : f32
    %127 = vector.broadcast %cst_108 : f32 to vector<32x256xf32>
    %128 = arith.select %35, %127, %126 : vector<32x256xi1>, vector<32x256xf32>
    %c0_109 = arith.constant 0 : index
    %c256_110 = arith.constant 256 : index
    %129 = vector.load %arg12[%c0_109, %c256_110] : memref<288x512xf32, #tpu.memory_space<vmem>>, vector<32x256xf32>
    tpu.vector_store %arg12[%c0_109, %c256_110], %128 {strides = array<i32>} : memref<288x512xf32, #tpu.memory_space<vmem>>, vector<32x256xf32>,
    %c0_111 = arith.constant 0 : index
    %c112_112 = arith.constant 112 : index
    %130 = vector.load %arg11[%c0_111, %c112_112] : memref<32x1024xf32, #tpu.memory_space<vmem>>, vector<32x256xf32>
    %c32_113 = arith.constant 32 : index
    %c0_114 = arith.constant 0 : index
    %131 = vector.load %arg12[%c32_113, %c0_114] : memref<288x512xf32, #tpu.memory_space<vmem>>, vector<32x256xf32>
    tpu.vector_store %arg12[%c32_113, %c0_114], %130 {strides = array<i32>} : memref<288x512xf32, #tpu.memory_space<vmem>>, vector<32x256xf32>,
    %c0_115 = arith.constant 0 : index
    %c624_116 = arith.constant 624 : index
    %132 = vector.load %arg11[%c0_115, %c624_116] : memref<32x1024xf32, #tpu.memory_space<vmem>>, vector<32x256xf32>
    %c32_117 = arith.constant 32 : index
    %c256_118 = arith.constant 256 : index
    %133 = vector.load %arg12[%c32_117, %c256_118] : memref<288x512xf32, #tpu.memory_space<vmem>>, vector<32x256xf32>
    tpu.vector_store %arg12[%c32_117, %c256_118], %132 {strides = array<i32>} : memref<288x512xf32, #tpu.memory_space<vmem>>, vector<32x256xf32>,
    %c0_119 = arith.constant 0 : index
    %c113_120 = arith.constant 113 : index
    %134 = vector.load %arg11[%c0_119, %c113_120] : memref<32x1024xf32, #tpu.memory_space<vmem>>, vector<32x256xf32>
    %cst_121 = arith.constant 0.000000e+00 : f32
    %135 = vector.broadcast %cst_121 : f32 to vector<32x256xf32>
    %136 = arith.select %39, %135, %134 : vector<32x256xi1>, vector<32x256xf32>
    %c64_122 = arith.constant 64 : index
    %c0_123 = arith.constant 0 : index
    %137 = vector.load %arg12[%c64_122, %c0_123] : memref<288x512xf32, #tpu.memory_space<vmem>>, vector<32x256xf32>
    tpu.vector_store %arg12[%c64_122, %c0_123], %136 {strides = array<i32>} : memref<288x512xf32, #tpu.memory_space<vmem>>, vector<32x256xf32>,
    %c0_124 = arith.constant 0 : index
    %c625_125 = arith.constant 625 : index
    %138 = vector.load %arg11[%c0_124, %c625_125] : memref<32x1024xf32, #tpu.memory_space<vmem>>, vector<32x256xf32>
    %cst_126 = arith.constant 0.000000e+00 : f32
    %139 = vector.broadcast %cst_126 : f32 to vector<32x256xf32>
    %140 = arith.select %39, %139, %138 : vector<32x256xi1>, vector<32x256xf32>
    %c64_127 = arith.constant 64 : index
    %c256_128 = arith.constant 256 : index
    %141 = vector.load %arg12[%c64_127, %c256_128] : memref<288x512xf32, #tpu.memory_space<vmem>>, vector<32x256xf32>
    tpu.vector_store %arg12[%c64_127, %c256_128], %140 {strides = array<i32>} : memref<288x512xf32, #tpu.memory_space<vmem>>, vector<32x256xf32>,
    %c0_129 = arith.constant 0 : index
    %c127_130 = arith.constant 127 : index
    %142 = vector.load %arg11[%c0_129, %c127_130] : memref<32x1024xf32, #tpu.memory_space<vmem>>, vector<32x256xf32>
    %cst_131 = arith.constant 0.000000e+00 : f32
    %143 = vector.broadcast %cst_131 : f32 to vector<32x256xf32>
    %144 = arith.select %35, %143, %142 : vector<32x256xi1>, vector<32x256xf32>
    %c96_132 = arith.constant 96 : index
    %c0_133 = arith.constant 0 : index
    %145 = vector.load %arg12[%c96_132, %c0_133] : memref<288x512xf32, #tpu.memory_space<vmem>>, vector<32x256xf32>
    tpu.vector_store %arg12[%c96_132, %c0_133], %144 {strides = array<i32>} : memref<288x512xf32, #tpu.memory_space<vmem>>, vector<32x256xf32>,
    %c0_134 = arith.constant 0 : index
    %c639_135 = arith.constant 639 : index
    %146 = vector.load %arg11[%c0_134, %c639_135] : memref<32x1024xf32, #tpu.memory_space<vmem>>, vector<32x256xf32>
    %cst_136 = arith.constant 0.000000e+00 : f32
    %147 = vector.broadcast %cst_136 : f32 to vector<32x256xf32>
    %148 = arith.select %35, %147, %146 : vector<32x256xi1>, vector<32x256xf32>
    %c96_137 = arith.constant 96 : index
    %c256_138 = arith.constant 256 : index
    %149 = vector.load %arg12[%c96_137, %c256_138] : memref<288x512xf32, #tpu.memory_space<vmem>>, vector<32x256xf32>
    tpu.vector_store %arg12[%c96_137, %c256_138], %148 {strides = array<i32>} : memref<288x512xf32, #tpu.memory_space<vmem>>, vector<32x256xf32>,
    %c0_139 = arith.constant 0 : index
    %c128_140 = arith.constant 128 : index
    %150 = vector.load %arg11[%c0_139, %c128_140] : memref<32x1024xf32, #tpu.memory_space<vmem>>, vector<32x256xf32>
    %c128_141 = arith.constant 128 : index
    %c0_142 = arith.constant 0 : index
    %151 = vector.load %arg12[%c128_141, %c0_142] : memref<288x512xf32, #tpu.memory_space<vmem>>, vector<32x256xf32>
    tpu.vector_store %arg12[%c128_141, %c0_142], %150 {strides = array<i32>} : memref<288x512xf32, #tpu.memory_space<vmem>>, vector<32x256xf32>,
    %c0_143 = arith.constant 0 : index
    %c640_144 = arith.constant 640 : index
    %152 = vector.load %arg11[%c0_143, %c640_144] : memref<32x1024xf32, #tpu.memory_space<vmem>>, vector<32x256xf32>
    %c128_145 = arith.constant 128 : index
    %c256_146 = arith.constant 256 : index
    %153 = vector.load %arg12[%c128_145, %c256_146] : memref<288x512xf32, #tpu.memory_space<vmem>>, vector<32x256xf32>
    tpu.vector_store %arg12[%c128_145, %c256_146], %152 {strides = array<i32>} : memref<288x512xf32, #tpu.memory_space<vmem>>, vector<32x256xf32>,
    %c0_147 = arith.constant 0 : index
    %c129_148 = arith.constant 129 : index
    %154 = vector.load %arg11[%c0_147, %c129_148] : memref<32x1024xf32, #tpu.memory_space<vmem>>, vector<32x256xf32>
    %cst_149 = arith.constant 0.000000e+00 : f32
    %155 = vector.broadcast %cst_149 : f32 to vector<32x256xf32>
    %156 = arith.select %39, %155, %154 : vector<32x256xi1>, vector<32x256xf32>
    %c160_150 = arith.constant 160 : index
    %c0_151 = arith.constant 0 : index
    %157 = vector.load %arg12[%c160_150, %c0_151] : memref<288x512xf32, #tpu.memory_space<vmem>>, vector<32x256xf32>
    tpu.vector_store %arg12[%c160_150, %c0_151], %156 {strides = array<i32>} : memref<288x512xf32, #tpu.memory_space<vmem>>, vector<32x256xf32>,
    %c0_152 = arith.constant 0 : index
    %c641_153 = arith.constant 641 : index
    %158 = vector.load %arg11[%c0_152, %c641_153] : memref<32x1024xf32, #tpu.memory_space<vmem>>, vector<32x256xf32>
    %cst_154 = arith.constant 0.000000e+00 : f32
    %159 = vector.broadcast %cst_154 : f32 to vector<32x256xf32>
    %160 = arith.select %39, %159, %158 : vector<32x256xi1>, vector<32x256xf32>
    %c160_155 = arith.constant 160 : index
    %c256_156 = arith.constant 256 : index
    %161 = vector.load %arg12[%c160_155, %c256_156] : memref<288x512xf32, #tpu.memory_space<vmem>>, vector<32x256xf32>
    tpu.vector_store %arg12[%c160_155, %c256_156], %160 {strides = array<i32>} : memref<288x512xf32, #tpu.memory_space<vmem>>, vector<32x256xf32>,
    %c0_157 = arith.constant 0 : index
    %c143_158 = arith.constant 143 : index
    %162 = vector.load %arg11[%c0_157, %c143_158] : memref<32x1024xf32, #tpu.memory_space<vmem>>, vector<32x256xf32>
    %cst_159 = arith.constant 0.000000e+00 : f32
    %163 = vector.broadcast %cst_159 : f32 to vector<32x256xf32>
    %164 = arith.select %35, %163, %162 : vector<32x256xi1>, vector<32x256xf32>
    %c192_160 = arith.constant 192 : index
    %c0_161 = arith.constant 0 : index
    %165 = vector.load %arg12[%c192_160, %c0_161] : memref<288x512xf32, #tpu.memory_space<vmem>>, vector<32x256xf32>
    tpu.vector_store %arg12[%c192_160, %c0_161], %164 {strides = array<i32>} : memref<288x512xf32, #tpu.memory_space<vmem>>, vector<32x256xf32>,
    %c0_162 = arith.constant 0 : index
    %c655_163 = arith.constant 655 : index
    %166 = vector.load %arg11[%c0_162, %c655_163] : memref<32x1024xf32, #tpu.memory_space<vmem>>, vector<32x256xf32>
    %cst_164 = arith.constant 0.000000e+00 : f32
    %167 = vector.broadcast %cst_164 : f32 to vector<32x256xf32>
    %168 = arith.select %35, %167, %166 : vector<32x256xi1>, vector<32x256xf32>
    %c192_165 = arith.constant 192 : index
    %c256_166 = arith.constant 256 : index
    %169 = vector.load %arg12[%c192_165, %c256_166] : memref<288x512xf32, #tpu.memory_space<vmem>>, vector<32x256xf32>
    tpu.vector_store %arg12[%c192_165, %c256_166], %168 {strides = array<i32>} : memref<288x512xf32, #tpu.memory_space<vmem>>, vector<32x256xf32>,
    %c0_167 = arith.constant 0 : index
    %c144_168 = arith.constant 144 : index
    %170 = vector.load %arg11[%c0_167, %c144_168] : memref<32x1024xf32, #tpu.memory_space<vmem>>, vector<32x256xf32>
    %c224_169 = arith.constant 224 : index
    %c0_170 = arith.constant 0 : index
    %171 = vector.load %arg12[%c224_169, %c0_170] : memref<288x512xf32, #tpu.memory_space<vmem>>, vector<32x256xf32>
    tpu.vector_store %arg12[%c224_169, %c0_170], %170 {strides = array<i32>} : memref<288x512xf32, #tpu.memory_space<vmem>>, vector<32x256xf32>,
    %c0_171 = arith.constant 0 : index
    %c656_172 = arith.constant 656 : index
    %172 = vector.load %arg11[%c0_171, %c656_172] : memref<32x1024xf32, #tpu.memory_space<vmem>>, vector<32x256xf32>
    %c224_173 = arith.constant 224 : index
    %c256_174 = arith.constant 256 : index
    %173 = vector.load %arg12[%c224_173, %c256_174] : memref<288x512xf32, #tpu.memory_space<vmem>>, vector<32x256xf32>
    tpu.vector_store %arg12[%c224_173, %c256_174], %172 {strides = array<i32>} : memref<288x512xf32, #tpu.memory_space<vmem>>, vector<32x256xf32>,
    %c0_175 = arith.constant 0 : index
    %c145_176 = arith.constant 145 : index
    %174 = vector.load %arg11[%c0_175, %c145_176] : memref<32x1024xf32, #tpu.memory_space<vmem>>, vector<32x256xf32>
    %cst_177 = arith.constant 0.000000e+00 : f32
    %175 = vector.broadcast %cst_177 : f32 to vector<32x256xf32>
    %176 = arith.select %39, %175, %174 : vector<32x256xi1>, vector<32x256xf32>
    %c256_178 = arith.constant 256 : index
    %c0_179 = arith.constant 0 : index
    %177 = vector.load %arg12[%c256_178, %c0_179] : memref<288x512xf32, #tpu.memory_space<vmem>>, vector<32x256xf32>
    tpu.vector_store %arg12[%c256_178, %c0_179], %176 {strides = array<i32>} : memref<288x512xf32, #tpu.memory_space<vmem>>, vector<32x256xf32>,
    %c0_180 = arith.constant 0 : index
    %c657_181 = arith.constant 657 : index
    %178 = vector.load %arg11[%c0_180, %c657_181] : memref<32x1024xf32, #tpu.memory_space<vmem>>, vector<32x256xf32>
    %cst_182 = arith.constant 0.000000e+00 : f32
    %179 = vector.broadcast %cst_182 : f32 to vector<32x256xf32>
    %180 = arith.select %39, %179, %178 : vector<32x256xi1>, vector<32x256xf32>
    %c256_183 = arith.constant 256 : index
    %c256_184 = arith.constant 256 : index
    %181 = vector.load %arg12[%c256_183, %c256_184] : memref<288x512xf32, #tpu.memory_space<vmem>>, vector<32x256xf32>
    tpu.vector_store %arg12[%c256_183, %c256_184], %180 {strides = array<i32>} : memref<288x512xf32, #tpu.memory_space<vmem>>, vector<32x256xf32>,
    %c0_185 = arith.constant 0 : index
    %c0_186 = arith.constant 0 : index
    %182 = vector.load %arg4[%c0_185, %c0_186] : memref<32x288xf32, #tpu.memory_space<vmem>>, vector<32x288xf32>
    %c0_187 = arith.constant 0 : index
    %c0_188 = arith.constant 0 : index
    %183 = vector.load %arg12[%c0_187, %c0_188] : memref<288x512xf32, #tpu.memory_space<vmem>>, vector<288x512xf32>
    %cst_189 = arith.constant dense<0.000000e+00> : vector<32x512xf32>
    %184 = tpu.matmul %182, %183, %cst_189 {dimension_numbers = #tpu.dot_dimension_numbers<[1], [0], [0], [1], [0, 0, 1, 1], [], []>} : vector<32x288xf32>, vector<288x512xf32>, vector<32x512xf32> -> vector<32x512xf32>
    %c0_190 = arith.constant 0 : index
    %c0_191 = arith.constant 0 : index
    %185 = vector.load %arg5[%c0_190, %c0_191] : memref<32x1xf32, #tpu.memory_space<vmem>>, vector<32x1xf32>
    %186 = vector.broadcast %185 : vector<32x1xf32> to vector<32x512xf32>
    %187 = arith.addf %184, %186 : vector<32x512xf32>
    %188 = vector.extract_strided_slice %187 {offsets = [0, 0], sizes = [32, 256], strides = [1, 1]} : vector<32x512xf32> to vector<32x256xf32>
    %c0_192 = arith.constant 0 : index
    %c0_193 = arith.constant 0 : index
    %c0_194 = arith.constant 0 : index
    %189 = vector.load %arg10[%c0_192, %c0_193, %c0_194] : memref<2x32x256xf32, #tpu.memory_space<vmem>>, vector<1x32x256xf32>
    %190 = vector.shape_cast %189 : vector<1x32x256xf32> to vector<32x256xf32>
    %191 = vector.shape_cast %188 : vector<32x256xf32> to vector<1x32x256xf32>
    tpu.vector_store %arg10[%c0_192, %c0_193, %c0_194], %191 {strides = array<i32>} : memref<2x32x256xf32, #tpu.memory_space<vmem>>, vector<1x32x256xf32>,
    %192 = vector.extract_strided_slice %187 {offsets = [0, 256], sizes = [32, 256], strides = [1, 1]} : vector<32x512xf32> to vector<32x256xf32>
    %c1 = arith.constant 1 : index
    %c0_195 = arith.constant 0 : index
    %c0_196 = arith.constant 0 : index
    %193 = vector.load %arg10[%c1, %c0_195, %c0_196] : memref<2x32x256xf32, #tpu.memory_space<vmem>>, vector<1x32x256xf32>
    %194 = vector.shape_cast %193 : vector<1x32x256xf32> to vector<32x256xf32>
    %195 = vector.shape_cast %192 : vector<32x256xf32> to vector<1x32x256xf32>
    tpu.vector_store %arg10[%c1, %c0_195, %c0_196], %195 {strides = array<i32>} : memref<2x32x256xf32, #tpu.memory_space<vmem>>, vector<1x32x256xf32>,
    %cst_197 = arith.constant 3.906250e-03 : f32
    %196 = vector.broadcast %cst_197 : f32 to vector<256x1xf32>
    %c0_198 = arith.constant 0 : index
    %c0_199 = arith.constant 0 : index
    %c0_200 = arith.constant 0 : index
    %197 = vector.load %arg10[%c0_198, %c0_199, %c0_200] : memref<2x32x256xf32, #tpu.memory_space<vmem>>, vector<1x32x256xf32>
    %198 = vector.shape_cast %197 : vector<1x32x256xf32> to vector<32x256xf32>
    %cst_201 = arith.constant dense<0.000000e+00> : vector<32x1xf32>
    %199 = tpu.matmul %198, %196, %cst_201 {dimension_numbers = #tpu.dot_dimension_numbers<[1], [0], [0], [1], [0, 0, 1, 1], [], []>} : vector<32x256xf32>, vector<256x1xf32>, vector<32x1xf32> -> vector<32x1xf32>
    %c1_202 = arith.constant 1 : index
    %c0_203 = arith.constant 0 : index
    %c0_204 = arith.constant 0 : index
    %200 = vector.load %arg10[%c1_202, %c0_203, %c0_204] : memref<2x32x256xf32, #tpu.memory_space<vmem>>, vector<1x32x256xf32>
    %201 = vector.shape_cast %200 : vector<1x32x256xf32> to vector<32x256xf32>
    %cst_205 = arith.constant dense<0.000000e+00> : vector<32x1xf32>
    %202 = tpu.matmul %201, %196, %cst_205 {dimension_numbers = #tpu.dot_dimension_numbers<[1], [0], [0], [1], [0, 0, 1, 1], [], []>} : vector<32x256xf32>, vector<256x1xf32>, vector<32x1xf32> -> vector<32x1xf32>
    %203 = tpu.concatenate %199, %202 in 1 : vector<32x1xf32>, vector<32x1xf32> -> vector<32x2xf32>
    %c0_206 = arith.constant 0 : index
    %c0_207 = arith.constant 0 : index
    %204 = vector.load %arg6[%c0_206, %c0_207] : memref<8x32xf32, #tpu.memory_space<vmem>>, vector<8x32xf32>
    %cst_208 = arith.constant dense<0.000000e+00> : vector<8x2xf32>
    %205 = tpu.matmul %204, %203, %cst_208 {dimension_numbers = #tpu.dot_dimension_numbers<[1], [0], [0], [1], [0, 0, 1, 1], [], []>} : vector<8x32xf32>, vector<32x2xf32>, vector<8x2xf32> -> vector<8x2xf32>
    %c0_209 = arith.constant 0 : index
    %c0_210 = arith.constant 0 : index
    %206 = vector.load %arg7[%c0_209, %c0_210] : memref<8x1xf32, #tpu.memory_space<vmem>>, vector<8x1xf32>
    %207 = vector.broadcast %206 : vector<8x1xf32> to vector<8x2xf32>
    %208 = arith.addf %205, %207 : vector<8x2xf32>
    %cst_211 = arith.constant 0.000000e+00 : f32
    %209 = vector.broadcast %cst_211 : f32 to vector<8x2xf32>
    %210 = arith.maximumf %208, %209 : vector<8x2xf32>
    %c0_212 = arith.constant 0 : index
    %c0_213 = arith.constant 0 : index
    %211 = vector.load %arg8[%c0_212, %c0_213] : memref<32x8xf32, #tpu.memory_space<vmem>>, vector<32x8xf32>
    %cst_214 = arith.constant dense<0.000000e+00> : vector<32x2xf32>
    %212 = tpu.matmul %211, %210, %cst_214 {dimension_numbers = #tpu.dot_dimension_numbers<[1], [0], [0], [1], [0, 0, 1, 1], [], []>} : vector<32x8xf32>, vector<8x2xf32>, vector<32x2xf32> -> vector<32x2xf32>
    %c0_215 = arith.constant 0 : index
    %c0_216 = arith.constant 0 : index
    %213 = vector.load %arg9[%c0_215, %c0_216] : memref<32x1xf32, #tpu.memory_space<vmem>>, vector<32x1xf32>
    %214 = vector.broadcast %213 : vector<32x1xf32> to vector<32x2xf32>
    %215 = arith.addf %212, %214 : vector<32x2xf32>
    %cst_217 = arith.constant 0.000000e+00 : f32
    %216 = vector.broadcast %cst_217 : f32 to vector<32x2xf32>
    %217 = arith.subf %216, %215 : vector<32x2xf32>
    %218 = math.exp %217 : vector<32x2xf32>
    %cst_218 = arith.constant 1.000000e+00 : f32
    %219 = vector.broadcast %cst_218 : f32 to vector<32x2xf32>
    %220 = arith.addf %219, %218 : vector<32x2xf32>
    %cst_219 = arith.constant 1.000000e+00 : f32
    %221 = vector.broadcast %cst_219 : f32 to vector<32x2xf32>
    %222 = arith.divf %221, %220 : vector<32x2xf32>
    %c0_220 = arith.constant 0 : index
    %c0_221 = arith.constant 0 : index
    %c0_222 = arith.constant 0 : index
    %223 = vector.load %arg10[%c0_220, %c0_221, %c0_222] : memref<2x32x256xf32, #tpu.memory_space<vmem>>, vector<1x32x256xf32>
    %224 = vector.shape_cast %223 : vector<1x32x256xf32> to vector<32x256xf32>
    %225 = vector.extract_strided_slice %222 {offsets = [0, 0], sizes = [32, 1], strides = [1, 1]} : vector<32x2xf32> to vector<32x1xf32>
    %226 = vector.broadcast %225 : vector<32x1xf32> to vector<32x256xf32>
    %227 = arith.mulf %224, %226 : vector<32x256xf32>
    %c0_223 = arith.constant 0 : index
    %c0_224 = arith.constant 0 : index
    %c0_225 = arith.constant 0 : index
    %228 = vector.load %arg1[%c0_223, %c0_224, %c0_225] : memref<2x32x256xf32, #tpu.memory_space<vmem>>, vector<1x32x256xf32>
    %229 = vector.shape_cast %228 : vector<1x32x256xf32> to vector<32x256xf32>
    %230 = arith.addf %227, %229 : vector<32x256xf32>
    %c0_226 = arith.constant 0 : index
    %c0_227 = arith.constant 0 : index
    %c0_228 = arith.constant 0 : index
    %231 = vector.load %arg10[%c0_226, %c0_227, %c0_228] : memref<2x32x256xf32, #tpu.memory_space<vmem>>, vector<1x32x256xf32>
    %232 = vector.shape_cast %231 : vector<1x32x256xf32> to vector<32x256xf32>
    %233 = vector.shape_cast %230 : vector<32x256xf32> to vector<1x32x256xf32>
    tpu.vector_store %arg10[%c0_226, %c0_227, %c0_228], %233 {strides = array<i32>} : memref<2x32x256xf32, #tpu.memory_space<vmem>>, vector<1x32x256xf32>,
    %c1_229 = arith.constant 1 : index
    %c0_230 = arith.constant 0 : index
    %c0_231 = arith.constant 0 : index
    %234 = vector.load %arg10[%c1_229, %c0_230, %c0_231] : memref<2x32x256xf32, #tpu.memory_space<vmem>>, vector<1x32x256xf32>
    %235 = vector.shape_cast %234 : vector<1x32x256xf32> to vector<32x256xf32>
    %236 = vector.extract_strided_slice %222 {offsets = [0, 1], sizes = [32, 1], strides = [1, 1]} : vector<32x2xf32> to vector<32x1xf32>
    %237 = vector.broadcast %236 : vector<32x1xf32> to vector<32x256xf32>
    %238 = arith.mulf %235, %237 : vector<32x256xf32>
    %c1_232 = arith.constant 1 : index
    %c0_233 = arith.constant 0 : index
    %c0_234 = arith.constant 0 : index
    %239 = vector.load %arg1[%c1_232, %c0_233, %c0_234] : memref<2x32x256xf32, #tpu.memory_space<vmem>>, vector<1x32x256xf32>
    %240 = vector.shape_cast %239 : vector<1x32x256xf32> to vector<32x256xf32>
    %241 = arith.addf %238, %240 : vector<32x256xf32>
    %c1_235 = arith.constant 1 : index
    %c0_236 = arith.constant 0 : index
    %c0_237 = arith.constant 0 : index
    %242 = vector.load %arg10[%c1_235, %c0_236, %c0_237] : memref<2x32x256xf32, #tpu.memory_space<vmem>>, vector<1x32x256xf32>
    %243 = vector.shape_cast %242 : vector<1x32x256xf32> to vector<32x256xf32>
    %244 = vector.shape_cast %241 : vector<32x256xf32> to vector<1x32x256xf32>
    tpu.vector_store %arg10[%c1_235, %c0_236, %c0_237], %244 {strides = array<i32>} : memref<2x32x256xf32, #tpu.memory_space<vmem>>, vector<1x32x256xf32>,
    return
  }
  func.func @transform_0(%arg0: i32) -> (i32, i32, i32) {
    %c0_i32 = arith.constant 0 : i32
    %c0_i32_0 = arith.constant 0 : i32
    %c0_i32_1 = arith.constant 0 : i32
    return %arg0, %c0_i32, %c0_i32_0 : i32, i32, i32
  }
  func.func @transform_1(%arg0: i32) -> (i32, i32) {
    %c0_i32 = arith.constant 0 : i32
    %c0_i32_0 = arith.constant 0 : i32
    %c0_i32_1 = arith.constant 0 : i32
    return %c0_i32, %c0_i32_0 : i32, i32
  }
  func.func @transform_2(%arg0: i32) -> (i32, i32) {
    %c0_i32 = arith.constant 0 : i32
    %c0_i32_0 = arith.constant 0 : i32
    %c0_i32_1 = arith.constant 0 : i32
    return %c0_i32, %c0_i32_0 : i32, i32
  }
  func.func @transform_3(%arg0: i32) -> (i32, i32) {
    %c0_i32 = arith.constant 0 : i32
    %c0_i32_0 = arith.constant 0 : i32
    %c0_i32_1 = arith.constant 0 : i32
    return %c0_i32, %c0_i32_0 : i32, i32
  }
  func.func @transform_4(%arg0: i32) -> (i32, i32) {
    %c0_i32 = arith.constant 0 : i32
    %c0_i32_0 = arith.constant 0 : i32
    %c0_i32_1 = arith.constant 0 : i32
    return %c0_i32, %c0_i32_0 : i32, i32
  }
  func.func @transform_5(%arg0: i32) -> (i32, i32) {
    %c0_i32 = arith.constant 0 : i32
    %c0_i32_0 = arith.constant 0 : i32
    %c0_i32_1 = arith.constant 0 : i32
    return %c0_i32, %c0_i32_0 : i32, i32
  }
  func.func @transform_6(%arg0: i32) -> (i32, i32) {
    %c0_i32 = arith.constant 0 : i32
    %c0_i32_0 = arith.constant 0 : i32
    %c0_i32_1 = arith.constant 0 : i32
    return %c0_i32, %c0_i32_0 : i32, i32
  }
  func.func @transform_7(%arg0: i32) -> (i32, i32) {
    %c0_i32 = arith.constant 0 : i32
    %c0_i32_0 = arith.constant 0 : i32
    %c0_i32_1 = arith.constant 0 : i32
    return %c0_i32, %c0_i32_0 : i32, i32
  }
  func.func @transform_8(%arg0: i32) -> (i32, i32) {
    %c0_i32 = arith.constant 0 : i32
    %c0_i32_0 = arith.constant 0 : i32
    %c0_i32_1 = arith.constant 0 : i32
    return %c0_i32, %c0_i32_0 : i32, i32
  }
  func.func @transform_9(%arg0: i32) -> (i32, i32, i32) {
    %c0_i32 = arith.constant 0 : i32
    %c0_i32_0 = arith.constant 0 : i32
    %c0_i32_1 = arith.constant 0 : i32
    return %arg0, %c0_i32, %c0_i32_0 : i32, i32, i32
  }
}

</mosaic_0001>

<llo_original>
// kernel: tpu_custom_call.1
$region0: #{tpu_custom_call.1}
  #allocation0 [shape = 'u32[]', space=smem, size = 0x4, offset = 0x4, fixed_abs, tag = 'smem constant byte address 0x4 - core index']
  #allocation1 [shape = 'u32[72,128]{1,0:T(1,128)}', space=vmem, size = 0x9000, scoped, tag = 'internal scratch']
  #allocation2 [shape = 'f32[32,1024]{1,0:T(8,128)}', space=vmem, size = 0x20000, scoped, tag = 'scratch operand']
  #allocation3 [shape = 'f32[288,512]{1,0:T(8,128)}', space=vmem, size = 0x90000, scoped, tag = 'scratch operand']
  #allocation4 [shape = 's32[2]{0}', space=sflag, size = 0x8, scoped, tag = 'scratch operand']
  #allocation12 [shape = 's32[]', space=sflag, size = 0x4, offset = 0, fixed_abs, tag = 'sflag constant byte address 0x0 - dummy sync flag']
  #allocation13 [shape = 's32[]', space=sflag, size = 0x4, offset = 0, fixed_abs, tag = 'sflag constant byte address 0x0 - dummy sync flag']
  %s0 = inlined_call_operand.hbm [shape: f32[2,32,256], index: 0, kind: input, shape index: {}]
  %s1 = inlined_call_operand.hbm [shape: f32[32,288], index: 1, kind: input, shape index: {}]
  %s2 = inlined_call_operand.vmem [shape: f32[32,1], index: 2, kind: input, shape index: {}]
  %s3 = inlined_call_operand.hbm [shape: f32[32,288], index: 3, kind: input, shape index: {}]
  %s4 = inlined_call_operand.vmem [shape: f32[32,1], index: 4, kind: input, shape index: {}]
  %s5 = inlined_call_operand.vmem [shape: f32[8,32], index: 5, kind: input, shape index: {}]
  %s6 = inlined_call_operand.vmem [shape: f32[8,1], index: 6, kind: input, shape index: {}]
  %s7 = inlined_call_operand.vmem [shape: f32[32,8], index: 7, kind: input, shape index: {}]
  %s8 = inlined_call_operand.vmem [shape: f32[32,1], index: 8, kind: input, shape index: {}]
  %s9 = inlined_call_operand.hbm [shape: f32[2,32,256], index: 9, kind: output, shape index: {}]
  %s10 = sld [smem:[#allocation0]]
  $region96: #{tpu_custom_call.1} parent=0
    _
  %s12 = ssub.s32 1, %s10
  %s13 = scalar_select 0, %s12, %s10
  $region1: #{tpu_custom_call.1} parent=0
    #allocation5 [shape = 'u8[65536]{0}', space=vmem, size = 0x10000, scoped, tag = 'input window, operand 0, single buffered']
    #allocation6 [shape = 's32[1]{0}', space=sflag, size = 0x4, scoped, tag = 'scoped memory for tpu_custom_call.1']
    #allocation7 [shape = 's32[1]{0}', space=sflag, size = 0x4, scoped, tag = 'scoped memory for tpu_custom_call.1']
    #allocation8 [shape = 'u8[49152]{0}', space=vmem, size = 0xc000, scoped, tag = 'input window, operand 1, single buffered']
    #allocation9 [shape = 's32[1]{0}', space=sflag, size = 0x4, scoped, tag = 'scoped memory for tpu_custom_call.1']
    #allocation10 [shape = 'u8[49152]{0}', space=vmem, size = 0xc000, scoped, tag = 'input window, operand 3, single buffered']
    #allocation11 [shape = 'u8[65536]{0}', space=vmem, size = 0x10000, scoped, tag = 'output window, operand 0, single buffered']
    %14 = vsyncpa [#allocation6], 0
    %15 = vsyncpa [#allocation9], 0
    %16 = vsyncpa [#allocation7], 0
    // Predicated region
    $region2: #{tpu_custom_call.1} parent=1 // pred_check
      _
    $region3: #{tpu_custom_call.1} parent=1 // pred_check_branch
      %18 = sbr.rel (0) target = $region5
    $region4: #{tpu_custom_call.1} parent=1 // pred_region
      %20 = vsyncadd [#allocation6], 0
      %s21 = sshll.u32 %s0, 4
      %s22 = int_to_ptr.hbm [resolvable:$true] %s21
      %s23 = sshll.u32 [#allocation5], 4
      %s24 = int_to_ptr.vmem [resolvable:$true] %s23
      %29 = dma.hbm_to_vmem [thread:$0]  %s22, 2048, %s24, [#allocation6], 256, 256, 16
    $region5: #{tpu_custom_call.1} parent=1 // pred_fallthru
      _
    // Predicated region
    $region6: #{tpu_custom_call.1} parent=1 // pred_check
      _
    $region7: #{tpu_custom_call.1} parent=1 // pred_check_branch
      %31 = sbr.rel (0) target = $region9
    $region8: #{tpu_custom_call.1} parent=1 // pred_region
      %33 = vsyncadd [#allocation9], 0
      %s34 = sshll.u32 %s1, 4
      %s35 = int_to_ptr.hbm [resolvable:$true] %s34
      %s36 = sshll.u32 [#allocation8], 4
      %s37 = int_to_ptr.vmem [resolvable:$true] %s36
      %42 = dma.hbm_to_vmem [thread:$0]  %s35, 1536, %s37, [#allocation9], 384, 384, 24
    $region9: #{tpu_custom_call.1} parent=1 // pred_fallthru
      _
    // Predicated region
    $region10: #{tpu_custom_call.1} parent=1 // pred_check
      _
    $region11: #{tpu_custom_call.1} parent=1 // pred_check_branch
      %44 = sbr.rel (0) target = $region13
    $region12: #{tpu_custom_call.1} parent=1 // pred_region
      _
    $region13: #{tpu_custom_call.1} parent=1 // pred_fallthru
      _
    // Predicated region
    $region14: #{tpu_custom_call.1} parent=1 // pred_check
      _
    $region15: #{tpu_custom_call.1} parent=1 // pred_check_branch
      %46 = sbr.rel (0) target = $region17
    $region16: #{tpu_custom_call.1} parent=1 // pred_region
      %48 = vsyncadd [#allocation9], 0
      %s49 = sshll.u32 %s3, 4
      %s50 = int_to_ptr.hbm [resolvable:$true] %s49
      %s51 = sshll.u32 [#allocation10], 4
      %s52 = int_to_ptr.vmem [resolvable:$true] %s51
      %57 = dma.hbm_to_vmem [thread:$0]  %s50, 1536, %s52, [#allocation9], 384, 384, 24
    $region17: #{tpu_custom_call.1} parent=1 // pred_fallthru
      _
    // Predicated region
    $region18: #{tpu_custom_call.1} parent=1 // pred_check
      _
    $region19: #{tpu_custom_call.1} parent=1 // pred_check_branch
      %59 = sbr.rel (0) target = $region21
    $region20: #{tpu_custom_call.1} parent=1 // pred_region
      _
    $region21: #{tpu_custom_call.1} parent=1 // pred_fallthru
      _
    // Predicated region
    $region22: #{tpu_custom_call.1} parent=1 // pred_check
      _
    $region23: #{tpu_custom_call.1} parent=1 // pred_check_branch
      %61 = sbr.rel (0) target = $region25
    $region24: #{tpu_custom_call.1} parent=1 // pred_region
      _
    $region25: #{tpu_custom_call.1} parent=1 // pred_fallthru
      _
    // Predicated region
    $region26: #{tpu_custom_call.1} parent=1 // pred_check
      _
    $region27: #{tpu_custom_call.1} parent=1 // pred_check_branch
      %63 = sbr.rel (0) target = $region29
    $region28: #{tpu_custom_call.1} parent=1 // pred_region
      _
    $region29: #{tpu_custom_call.1} parent=1 // pred_fallthru
      _
    // Predicated region
    $region30: #{tpu_custom_call.1} parent=1 // pred_check
      _
    $region31: #{tpu_custom_call.1} parent=1 // pred_check_branch
      %65 = sbr.rel (0) target = $region33
    $region32: #{tpu_custom_call.1} parent=1 // pred_region
      _
    $region33: #{tpu_custom_call.1} parent=1 // pred_fallthru
      _
    // Predicated region
    $region34: #{tpu_custom_call.1} parent=1 // pred_check
      _
    $region35: #{tpu_custom_call.1} parent=1 // pred_check_branch
      %67 = sbr.rel (0) target = $region37
    $region36: #{tpu_custom_call.1} parent=1 // pred_region
      _
    $region37: #{tpu_custom_call.1} parent=1 // pred_fallthru
      _
    // Predicated region
    $region38: #{tpu_custom_call.1} parent=1 // pred_check
      _
    $region39: #{tpu_custom_call.1} parent=1 // pred_check_branch
      %69 = sbr.rel (0) target = $region41
    $region40: #{tpu_custom_call.1} parent=1 // pred_region
      %71 = dma.done [#allocation6], 2048
    $region41: #{tpu_custom_call.1} parent=1 // pred_fallthru
      _
    // Predicated region
    $region42: #{tpu_custom_call.1} parent=1 // pred_check
      _
    $region43: #{tpu_custom_call.1} parent=1 // pred_check_branch
      %73 = sbr.rel (0) target = $region45
    $region44: #{tpu_custom_call.1} parent=1 // pred_region
      %75 = dma.done [#allocation9], 1536
    $region45: #{tpu_custom_call.1} parent=1 // pred_fallthru
      _
    // Predicated region
    $region46: #{tpu_custom_call.1} parent=1 // pred_check
      _
    $region47: #{tpu_custom_call.1} parent=1 // pred_check_branch
      %77 = sbr.rel (0) target = $region49
    $region48: #{tpu_custom_call.1} parent=1 // pred_region
      %79 = dma.done [#allocation9], 1536
    $region49: #{tpu_custom_call.1} parent=1 // pred_fallthru
      _
    %s80 = scalar_lea.vmem [#allocation2], 8
    // Predicated region
    $region50: #{tpu_custom_call.1} parent=1 // pred_check
      _
    $region51: #{tpu_custom_call.1} parent=1 // pred_check_branch
      %82 = sbr.rel (0) target = $region53
    $region52: #{tpu_custom_call.1} parent=1 // pred_region
      loop: start=0, step=1, limit=1
      $region54: #{tpu_custom_call.1} parent=52 // loop_pre_header
        _
      $region55: #{tpu_custom_call.1} parent=52 // loop_header
        %s84 = sphi 0, %s88
        %p85 = scmp.ge.s32.totalorder %s84, 1
        %s89 = sphi [#allocation5], [#allocation5]
        %s90 = sphi %s80, %s80
      $region56: #{tpu_custom_call.1} parent=52 // loop_header_branch
        %87 = sbr.rel (%p85) target = $region60
      $region57: #{tpu_custom_call.1} parent=52 // loop_body
        %v91 = vld [vmem:[%s89] sm:$0xff]
        %92 = vst [vmem:[%s90] sm:$0xff] %v91
        %v93 = vld [vmem:[%s89 + $0x8] sm:$0xff]
        %94 = vst [vmem:[%s90 + $0x8] sm:$0xff] %v93
        %v95 = vld [vmem:[%s89 + $0x10] sm:$0xff]
        %96 = vst [vmem:[%s90 + $0x40] sm:$0xff] %v95
        %v97 = vld [vmem:[%s89 + $0x18] sm:$0xff]
        %98 = vst [vmem:[%s90 + $0x48] sm:$0xff] %v97
        %v99 = vld [vmem:[%s89 + $0x20] sm:$0xff]
        %100 = vst [vmem:[%s90 + $0x80] sm:$0xff] %v99
        %v101 = vld [vmem:[%s89 + $0x28] sm:$0xff]
        %102 = vst [vmem:[%s90 + $0x88] sm:$0xff] %v101
        %v103 = vld [vmem:[%s89 + $0x30] sm:$0xff]
        %104 = vst [vmem:[%s90 + $0xc0] sm:$0xff] %v103
        %v105 = vld [vmem:[%s89 + $0x38] sm:$0xff]
        %106 = vst [vmem:[%s90 + $0xc8] sm:$0xff] %v105
      $region58: #{tpu_custom_call.1} parent=52 // loop_footer
        %s88 = sadd.s32 1, %s84
      $region59: #{tpu_custom_call.1} parent=52 // loop_footer_branch
        %83 = sbr.rel target = $region55
      $region60: #{tpu_custom_call.1} parent=52 // loop_exit
        _
    $region53: #{tpu_custom_call.1} parent=1 // pred_fallthru
      _
    // Predicated region
    $region61: #{tpu_custom_call.1} parent=1 // pred_check
      _
    $region62: #{tpu_custom_call.1} parent=1 // pred_check_branch
      %108 = sbr.rel target = $region64
    $region63: #{tpu_custom_call.1} parent=1 // pred_region
      _
    $region64: #{tpu_custom_call.1} parent=1 // pred_fallthru
      _
    // Predicated region
    $region65: #{tpu_custom_call.1} parent=1 // pred_check
      _
    $region66: #{tpu_custom_call.1} parent=1 // pred_check_branch
      %111 = sbr.rel (0) target = $region68
    $region67: #{tpu_custom_call.1} parent=1 // pred_region
      %112 = vsyncadd [#allocation4], 1024
    $region68: #{tpu_custom_call.1} parent=1 // pred_fallthru
      _
    %s113 = scalar_lea.vmem [#allocation5], 64
    %s114 = scalar_lea.vmem [#allocation2], 40
    %s115 = scalar_lea.sflag [#allocation4], 1
    // Predicated region
    $region69: #{tpu_custom_call.1} parent=1 // pred_check
      _
    $region70: #{tpu_custom_call.1} parent=1 // pred_check_branch
      %117 = sbr.rel (0) target = $region72
    $region71: #{tpu_custom_call.1} parent=1 // pred_region
      loop: start=0, step=1, limit=1
      $region73: #{tpu_custom_call.1} parent=71 // loop_pre_header
        _
      $region74: #{tpu_custom_call.1} parent=71 // loop_header
        %s119 = sphi 0, %s123
        %p120 = scmp.ge.s32.totalorder %s119, 1
        %s124 = sphi %s113, %s113
        %s125 = sphi %s114, %s114
      $region75: #{tpu_custom_call.1} parent=71 // loop_header_branch
        %122 = sbr.rel (%p120) target = $region79
      $region76: #{tpu_custom_call.1} parent=71 // loop_body
        %v126 = vld [vmem:[%s124] sm:$0xff]
        %127 = vst [vmem:[%s125] sm:$0xff] %v126
        %v128 = vld [vmem:[%s124 + $0x8] sm:$0xff]
        %129 = vst [vmem:[%s125 + $0x8] sm:$0xff] %v128
        %v130 = vld [vmem:[%s124 + $0x10] sm:$0xff]
        %131 = vst [vmem:[%s125 + $0x40] sm:$0xff] %v130
        %v132 = vld [vmem:[%s124 + $0x18] sm:$0xff]
        %133 = vst [vmem:[%s125 + $0x48] sm:$0xff] %v132
        %v134 = vld [vmem:[%s124 + $0x20] sm:$0xff]
        %135 = vst [vmem:[%s125 + $0x80] sm:$0xff] %v134
        %v136 = vld [vmem:[%s124 + $0x28] sm:$0xff]
        %137 = vst [vmem:[%s125 + $0x88] sm:$0xff] %v136
        %v138 = vld [vmem:[%s124 + $0x30] sm:$0xff]
        %139 = vst [vmem:[%s125 + $0xc0] sm:$0xff] %v138
        %v140 = vld [vmem:[%s124 + $0x38] sm:$0xff]
        %141 = vst [vmem:[%s125 + $0xc8] sm:$0xff] %v140
      $region77: #{tpu_custom_call.1} parent=71 // loop_footer
        %s123 = sadd.s32 1, %s119
      $region78: #{tpu_custom_call.1} parent=71 // loop_footer_branch
        %118 = sbr.rel target = $region74
      $region79: #{tpu_custom_call.1} parent=71 // loop_exit
        _
    $region72: #{tpu_custom_call.1} parent=1 // pred_fallthru
      _
    // Predicated region
    $region80: #{tpu_custom_call.1} parent=1 // pred_check
      _
    $region81: #{tpu_custom_call.1} parent=1 // pred_check_branch
      %143 = sbr.rel target = $region83
    $region82: #{tpu_custom_call.1} parent=1 // pred_region
      _
    $region83: #{tpu_custom_call.1} parent=1 // pred_fallthru
      _
    // Predicated region
    $region84: #{tpu_custom_call.1} parent=1 // pred_check
      _
    $region85: #{tpu_custom_call.1} parent=1 // pred_check_branch
      %146 = sbr.rel (0) target = $region87
    $region86: #{tpu_custom_call.1} parent=1 // pred_region
      %147 = vsyncadd %s115, 1024
    $region87: #{tpu_custom_call.1} parent=1 // pred_fallthru
      _
    %148 = vst [vmem:[#allocation2] sm:$0xff] 0.0
    %149 = vst [vmem:[#allocation2 + $0x40] sm:$0xff] 0.0
    %150 = vst [vmem:[#allocation2 + $0x80] sm:$0xff] 0.0
    %151 = vst [vmem:[#allocation2 + $0xc0] sm:$0xff] 0.0
    %152 = vst [vmem:[#allocation2 + $0x18] sm:$0xff] 0.0
    %153 = vst [vmem:[#allocation2 + $0x58] sm:$0xff] 0.0
    %154 = vst [vmem:[#allocation2 + $0x98] sm:$0xff] 0.0
    %155 = vst [vmem:[#allocation2 + $0xd8] sm:$0xff] 0.0
    %156 = vst [vmem:[#allocation2 + $0x20] sm:$0xff] 0.0
    %157 = vst [vmem:[#allocation2 + $0x60] sm:$0xff] 0.0
    %158 = vst [vmem:[#allocation2 + $0xa0] sm:$0xff] 0.0
    %159 = vst [vmem:[#allocation2 + $0xe0] sm:$0xff] 0.0
    %160 = vst [vmem:[#allocation2 + $0x38] sm:$0xff] 0.0
    %161 = vst [vmem:[#allocation2 + $0x78] sm:$0xff] 0.0
    %162 = vst [vmem:[#allocation2 + $0xb8] sm:$0xff] 0.0
    %163 = vst [vmem:[#allocation2 + $0xf8] sm:$0xff] 0.0
    %v164 = vlaneseq
    %v165 = vand.u32 %v164, 127
    %v166 = vadd.s32 %v165, 128
    %vm167 = vcmp.lt.s32.totalorder %v165, 0
    %v168 = vsub.s32 0, %v165
    %v169 = vsel %vm167, %v168, %v165
    %v170 = vshrl.u32 %v169, 4
    %v171 = vand.u32 %v169, 15
    %v172 = vsub.s32 0, %v171
    %v173 = vsel %vm167, %v172, %v171
    %vm174 = vcmp.lt.s32.totalorder %v166, 0
    %v175 = vsub.s32 0, %v166
    %v176 = vsel %vm174, %v175, %v166
    %v177 = vshrl.u32 %v176, 4
    %v178 = vand.u32 %v176, 15
    %v179 = vsub.s32 0, %v178
    %v180 = vsel %vm174, %v179, %v178
    %vm181 = vcmp.ne.s32.totalorder %v173, 0
    %vm182 = vcmp.ne.s32.totalorder %v180, 0
    %vm183 = vcmp.lt.s32.totalorder %v173, 0
    %vm184 = vcmp.lt.s32.totalorder %v180, 0
    %vm185 = vmand %vm183, %vm181
    %vm186 = vmand %vm184, %vm182
    %v187 = vadd.s32 %v173, 16
    %v188 = vadd.s32 %v180, 16
    %v189 = vsel %vm185, %v187, %v173
    %v190 = vsel %vm186, %v188, %v180
    %vm191 = vcmp.eq.s32.totalorder %v189, 0
    %vm192 = vcmp.eq.s32.totalorder %v190, 0
    %v193 = vsel %vm191, 1, 0
    %v194 = vsel %vm192, 1, 0
    %vm195 = vcmp.eq.s32.totalorder %v193, 1
    %vm196 = vcmp.eq.s32.totalorder %v194, 1
    %vm197 = vcmp.eq.s32.totalorder %v189, 15
    %vm198 = vcmp.eq.s32.totalorder %v190, 15
    %v199 = vsel %vm197, 1, 0
    %v200 = vsel %vm198, 1, 0
    %vm201 = vcmp.eq.s32.totalorder %v199, 1
    %vm202 = vcmp.eq.s32.totalorder %v200, 1
    %s203 = smul.u32 8, 4
    %s204 = smul.u32 %s203, 2
    %s205 = sshll.u32 %s204, 4
    %206 = dma.done [#allocation4], %s205
    %s207 = sshll.u32 %s204, 4
    %208 = dma.done %s115, %s207
    %v209 = vld [vmem:[#allocation2] sm:$0xff]
    %v210 = vld [vmem:[#allocation2 + $0x8] sm:$0xff]
    %v211 = vld [vmem:[#allocation2 + $0x10] sm:$0xff]
    %v212 = vld [vmem:[#allocation2 + $0x40] sm:$0xff]
    %v213 = vld [vmem:[#allocation2 + $0x48] sm:$0xff]
    %v214 = vld [vmem:[#allocation2 + $0x50] sm:$0xff]
    %v215 = vld [vmem:[#allocation2 + $0x80] sm:$0xff]
    %v216 = vld [vmem:[#allocation2 + $0x88] sm:$0xff]
    %v217 = vld [vmem:[#allocation2 + $0x90] sm:$0xff]
    %v218 = vld [vmem:[#allocation2 + $0xc0] sm:$0xff]
    %v219 = vld [vmem:[#allocation2 + $0xc8] sm:$0xff]
    %v220 = vld [vmem:[#allocation2 + $0xd0] sm:$0xff]
    %233 = vrot.lane.b32.xlu0 %v209, 17
    %v234 = vpop.permute.xlu0 %233
    %235 = vrot.lane.b32.xlu0 %v210, 17
    %v236 = vpop.permute.xlu0 %235
    %237 = vrot.lane.b32.xlu0 %v211, 17
    %v238 = vpop.permute.xlu0 %237
    %239 = vrot.lane.b32.xlu0 %v212, 17
    %v240 = vpop.permute.xlu0 %239
    %241 = vrot.lane.b32.xlu0 %v213, 17
    %v242 = vpop.permute.xlu0 %241
    %243 = vrot.lane.b32.xlu0 %v214, 17
    %v244 = vpop.permute.xlu0 %243
    %245 = vrot.lane.b32.xlu0 %v215, 17
    %v246 = vpop.permute.xlu0 %245
    %247 = vrot.lane.b32.xlu0 %v216, 17
    %v248 = vpop.permute.xlu0 %247
    %249 = vrot.lane.b32.xlu0 %v217, 17
    %v250 = vpop.permute.xlu0 %249
    %251 = vrot.lane.b32.xlu0 %v218, 17
    %v252 = vpop.permute.xlu0 %251
    %253 = vrot.lane.b32.xlu0 %v219, 17
    %v254 = vpop.permute.xlu0 %253
    %255 = vrot.lane.b32.xlu0 %v220, 17
    %v256 = vpop.permute.xlu0 %255
    %vm257 = vcmask 138240
    %v258 = vsel %vm257, %v234, %v236
    %v259 = vsel %vm257, %v236, %v238
    %v260 = vsel %vm257, %v240, %v242
    %v261 = vsel %vm257, %v242, %v244
    %v262 = vsel %vm257, %v246, %v248
    %v263 = vsel %vm257, %v248, %v250
    %v264 = vsel %vm257, %v252, %v254
    %v265 = vsel %vm257, %v254, %v256
    %v274 = vsel %vm195, 0.0, %v258
    %v275 = vsel %vm196, 0.0, %v259
    %v276 = vsel %vm195, 0.0, %v260
    %v277 = vsel %vm196, 0.0, %v261
    %v278 = vsel %vm195, 0.0, %v262
    %v279 = vsel %vm196, 0.0, %v263
    %v280 = vsel %vm195, 0.0, %v264
    %v281 = vsel %vm196, 0.0, %v265
    %282 = vst [vmem:[#allocation3] sm:$0xff] %v274
    %283 = vst [vmem:[#allocation3 + $0x8] sm:$0xff] %v275
    %284 = vst [vmem:[#allocation3 + $0x20] sm:$0xff] %v276
    %285 = vst [vmem:[#allocation3 + $0x28] sm:$0xff] %v277
    %286 = vst [vmem:[#allocation3 + $0x40] sm:$0xff] %v278
    %287 = vst [vmem:[#allocation3 + $0x48] sm:$0xff] %v279
    %288 = vst [vmem:[#allocation3 + $0x60] sm:$0xff] %v280
    %289 = vst [vmem:[#allocation3 + $0x68] sm:$0xff] %v281
    %v290 = vld [vmem:[#allocation2 + $0x20] sm:$0xff]
    %v291 = vld [vmem:[#allocation2 + $0x28] sm:$0xff]
    %v292 = vld [vmem:[#allocation2 + $0x30] sm:$0xff]
    %v293 = vld [vmem:[#allocation2 + $0x60] sm:$0xff]
    %v294 = vld [vmem:[#allocation2 + $0x68] sm:$0xff]
    %v295 = vld [vmem:[#allocation2 + $0x70] sm:$0xff]
    %v296 = vld [vmem:[#allocation2 + $0xa0] sm:$0xff]
    %v297 = vld [vmem:[#allocation2 + $0xa8] sm:$0xff]
    %v298 = vld [vmem:[#allocation2 + $0xb0] sm:$0xff]
    %v299 = vld [vmem:[#allocation2 + $0xe0] sm:$0xff]
    %v300 = vld [vmem:[#allocation2 + $0xe8] sm:$0xff]
    %v301 = vld [vmem:[#allocation2 + $0xf0] sm:$0xff]
    %314 = vrot.lane.b32.xlu0 %v290, 17
    %v315 = vpop.permute.xlu0 %314
    %316 = vrot.lane.b32.xlu0 %v291, 17
    %v317 = vpop.permute.xlu0 %316
    %318 = vrot.lane.b32.xlu0 %v292, 17
    %v319 = vpop.permute.xlu0 %318
    %320 = vrot.lane.b32.xlu0 %v293, 17
    %v321 = vpop.permute.xlu0 %320
    %322 = vrot.lane.b32.xlu0 %v294, 17
    %v323 = vpop.permute.xlu0 %322
    %324 = vrot.lane.b32.xlu0 %v295, 17
    %v325 = vpop.permute.xlu0 %324
    %326 = vrot.lane.b32.xlu0 %v296, 17
    %v327 = vpop.permute.xlu0 %326
    %328 = vrot.lane.b32.xlu0 %v297, 17
    %v329 = vpop.permute.xlu0 %328
    %330 = vrot.lane.b32.xlu0 %v298, 17
    %v331 = vpop.permute.xlu0 %330
    %332 = vrot.lane.b32.xlu0 %v299, 17
    %v333 = vpop.permute.xlu0 %332
    %334 = vrot.lane.b32.xlu0 %v300, 17
    %v335 = vpop.permute.xlu0 %334
    %336 = vrot.lane.b32.xlu0 %v301, 17
    %v337 = vpop.permute.xlu0 %336
    %v338 = vsel %vm257, %v315, %v317
    %v339 = vsel %vm257, %v317, %v319
    %v340 = vsel %vm257, %v321, %v323
    %v341 = vsel %vm257, %v323, %v325
    %v342 = vsel %vm257, %v327, %v329
    %v343 = vsel %vm257, %v329, %v331
    %v344 = vsel %vm257, %v333, %v335
    %v345 = vsel %vm257, %v335, %v337
    %v354 = vsel %vm195, 0.0, %v338
    %v355 = vsel %vm196, 0.0, %v339
    %v356 = vsel %vm195, 0.0, %v340
    %v357 = vsel %vm196, 0.0, %v341
    %v358 = vsel %vm195, 0.0, %v342
    %v359 = vsel %vm196, 0.0, %v343
    %v360 = vsel %vm195, 0.0, %v344
    %v361 = vsel %vm196, 0.0, %v345
    %362 = vst [vmem:[#allocation3 + $0x10] sm:$0xff] %v354
    %363 = vst [vmem:[#allocation3 + $0x18] sm:$0xff] %v355
    %364 = vst [vmem:[#allocation3 + $0x30] sm:$0xff] %v356
    %365 = vst [vmem:[#allocation3 + $0x38] sm:$0xff] %v357
    %366 = vst [vmem:[#allocation3 + $0x50] sm:$0xff] %v358
    %367 = vst [vmem:[#allocation3 + $0x58] sm:$0xff] %v359
    %368 = vst [vmem:[#allocation3 + $0x70] sm:$0xff] %v360
    %369 = vst [vmem:[#allocation3 + $0x78] sm:$0xff] %v361
    %v370 = vld [vmem:[#allocation2] sm:$0xff]
    %v371 = vld [vmem:[#allocation2 + $0x8] sm:$0xff]
    %v372 = vld [vmem:[#allocation2 + $0x10] sm:$0xff]
    %v373 = vld [vmem:[#allocation2 + $0x40] sm:$0xff]
    %v374 = vld [vmem:[#allocation2 + $0x48] sm:$0xff]
    %v375 = vld [vmem:[#allocation2 + $0x50] sm:$0xff]
    %v376 = vld [vmem:[#allocation2 + $0x80] sm:$0xff]
    %v377 = vld [vmem:[#allocation2 + $0x88] sm:$0xff]
    %v378 = vld [vmem:[#allocation2 + $0x90] sm:$0xff]
    %v379 = vld [vmem:[#allocation2 + $0xc0] sm:$0xff]
    %v380 = vld [vmem:[#allocation2 + $0xc8] sm:$0xff]
    %v381 = vld [vmem:[#allocation2 + $0xd0] sm:$0xff]
    %394 = vrot.lane.b32.xlu0 %v370, 16
    %v395 = vpop.permute.xlu0 %394
    %396 = vrot.lane.b32.xlu0 %v371, 16
    %v397 = vpop.permute.xlu0 %396
    %398 = vrot.lane.b32.xlu0 %v372, 16
    %v399 = vpop.permute.xlu0 %398
    %400 = vrot.lane.b32.xlu0 %v373, 16
    %v401 = vpop.permute.xlu0 %400
    %402 = vrot.lane.b32.xlu0 %v374, 16
    %v403 = vpop.permute.xlu0 %402
    %404 = vrot.lane.b32.xlu0 %v375, 16
    %v405 = vpop.permute.xlu0 %404
    %406 = vrot.lane.b32.xlu0 %v376, 16
    %v407 = vpop.permute.xlu0 %406
    %408 = vrot.lane.b32.xlu0 %v377, 16
    %v409 = vpop.permute.xlu0 %408
    %410 = vrot.lane.b32.xlu0 %v378, 16
    %v411 = vpop.permute.xlu0 %410
    %412 = vrot.lane.b32.xlu0 %v379, 16
    %v413 = vpop.permute.xlu0 %412
    %414 = vrot.lane.b32.xlu0 %v380, 16
    %v415 = vpop.permute.xlu0 %414
    %416 = vrot.lane.b32.xlu0 %v381, 16
    %v417 = vpop.permute.xlu0 %416
    %vm418 = vcmask 130048
    %v419 = vsel %vm418, %v395, %v397
    %v420 = vsel %vm418, %v397, %v399
    %v421 = vsel %vm418, %v401, %v403
    %v422 = vsel %vm418, %v403, %v405
    %v423 = vsel %vm418, %v407, %v409
    %v424 = vsel %vm418, %v409, %v411
    %v425 = vsel %vm418, %v413, %v415
    %v426 = vsel %vm418, %v415, %v417
    %435 = vst [vmem:[#allocation3 + $0x80] sm:$0xff] %v419
    %436 = vst [vmem:[#allocation3 + $0x88] sm:$0xff] %v420
    %437 = vst [vmem:[#allocation3 + $0xa0] sm:$0xff] %v421
    %438 = vst [vmem:[#allocation3 + $0xa8] sm:$0xff] %v422
    %439 = vst [vmem:[#allocation3 + $0xc0] sm:$0xff] %v423
    %440 = vst [vmem:[#allocation3 + $0xc8] sm:$0xff] %v424
    %441 = vst [vmem:[#allocation3 + $0xe0] sm:$0xff] %v425
    %442 = vst [vmem:[#allocation3 + $0xe8] sm:$0xff] %v426
    %v443 = vld [vmem:[#allocation2 + $0x20] sm:$0xff]
    %v444 = vld [vmem:[#allocation2 + $0x28] sm:$0xff]
    %v445 = vld [vmem:[#allocation2 + $0x30] sm:$0xff]
    %v446 = vld [vmem:[#allocation2 + $0x60] sm:$0xff]
    %v447 = vld [vmem:[#allocation2 + $0x68] sm:$0xff]
    %v448 = vld [vmem:[#allocation2 + $0x70] sm:$0xff]
    %v449 = vld [vmem:[#allocation2 + $0xa0] sm:$0xff]
    %v450 = vld [vmem:[#allocation2 + $0xa8] sm:$0xff]
    %v451 = vld [vmem:[#allocation2 + $0xb0] sm:$0xff]
    %v452 = vld [vmem:[#allocation2 + $0xe0] sm:$0xff]
    %v453 = vld [vmem:[#allocation2 + $0xe8] sm:$0xff]
    %v454 = vld [vmem:[#allocation2 + $0xf0] sm:$0xff]
    %467 = vrot.lane.b32.xlu0 %v443, 16
    %v468 = vpop.permute.xlu0 %467
    %469 = vrot.lane.b32.xlu0 %v444, 16
    %v470 = vpop.permute.xlu0 %469
    %471 = vrot.lane.b32.xlu0 %v445, 16
    %v472 = vpop.permute.xlu0 %471
    %473 = vrot.lane.b32.xlu0 %v446, 16
    %v474 = vpop.permute.xlu0 %473
    %475 = vrot.lane.b32.xlu0 %v447, 16
    %v476 = vpop.permute.xlu0 %475
    %477 = vrot.lane.b32.xlu0 %v448, 16
    %v478 = vpop.permute.xlu0 %477
    %479 = vrot.lane.b32.xlu0 %v449, 16
    %v480 = vpop.permute.xlu0 %479
    %481 = vrot.lane.b32.xlu0 %v450, 16
    %v482 = vpop.permute.xlu0 %481
    %483 = vrot.lane.b32.xlu0 %v451, 16
    %v484 = vpop.permute.xlu0 %483
    %485 = vrot.lane.b32.xlu0 %v452, 16
    %v486 = vpop.permute.xlu0 %485
    %487 = vrot.lane.b32.xlu0 %v453, 16
    %v488 = vpop.permute.xlu0 %487
    %489 = vrot.lane.b32.xlu0 %v454, 16
    %v490 = vpop.permute.xlu0 %489
    %v491 = vsel %vm418, %v468, %v470
    %v492 = vsel %vm418, %v470, %v472
    %v493 = vsel %vm418, %v474, %v476
    %v494 = vsel %vm418, %v476, %v478
    %v495 = vsel %vm418, %v480, %v482
    %v496 = vsel %vm418, %v482, %v484
    %v497 = vsel %vm418, %v486, %v488
    %v498 = vsel %vm418, %v488, %v490
    %507 = vst [vmem:[#allocation3 + $0x90] sm:$0xff] %v491
    %508 = vst [vmem:[#allocation3 + $0x98] sm:$0xff] %v492
    %509 = vst [vmem:[#allocation3 + $0xb0] sm:$0xff] %v493
    %510 = vst [vmem:[#allocation3 + $0xb8] sm:$0xff] %v494
    %511 = vst [vmem:[#allocation3 + $0xd0] sm:$0xff] %v495
    %512 = vst [vmem:[#allocation3 + $0xd8] sm:$0xff] %v496
    %513 = vst [vmem:[#allocation3 + $0xf0] sm:$0xff] %v497
    %514 = vst [vmem:[#allocation3 + $0xf8] sm:$0xff] %v498
    %v515 = vld [vmem:[#allocation2] sm:$0xff]
    %v516 = vld [vmem:[#allocation2 + $0x8] sm:$0xff]
    %v517 = vld [vmem:[#allocation2 + $0x10] sm:$0xff]
    %v518 = vld [vmem:[#allocation2 + $0x40] sm:$0xff]
    %v519 = vld [vmem:[#allocation2 + $0x48] sm:$0xff]
    %v520 = vld [vmem:[#allocation2 + $0x50] sm:$0xff]
    %v521 = vld [vmem:[#allocation2 + $0x80] sm:$0xff]
    %v522 = vld [vmem:[#allocation2 + $0x88] sm:$0xff]
    %v523 = vld [vmem:[#allocation2 + $0x90] sm:$0xff]
    %v524 = vld [vmem:[#allocation2 + $0xc0] sm:$0xff]
    %v525 = vld [vmem:[#allocation2 + $0xc8] sm:$0xff]
    %v526 = vld [vmem:[#allocation2 + $0xd0] sm:$0xff]
    %539 = vrot.lane.b32.xlu0 %v515, 15
    %v540 = vpop.permute.xlu0 %539
    %541 = vrot.lane.b32.xlu0 %v516, 15
    %v542 = vpop.permute.xlu0 %541
    %543 = vrot.lane.b32.xlu0 %v517, 15
    %v544 = vpop.permute.xlu0 %543
    %545 = vrot.lane.b32.xlu0 %v518, 15
    %v546 = vpop.permute.xlu0 %545
    %547 = vrot.lane.b32.xlu0 %v519, 15
    %v548 = vpop.permute.xlu0 %547
    %549 = vrot.lane.b32.xlu0 %v520, 15
    %v550 = vpop.permute.xlu0 %549
    %551 = vrot.lane.b32.xlu0 %v521, 15
    %v552 = vpop.permute.xlu0 %551
    %553 = vrot.lane.b32.xlu0 %v522, 15
    %v554 = vpop.permute.xlu0 %553
    %555 = vrot.lane.b32.xlu0 %v523, 15
    %v556 = vpop.permute.xlu0 %555
    %557 = vrot.lane.b32.xlu0 %v524, 15
    %v558 = vpop.permute.xlu0 %557
    %559 = vrot.lane.b32.xlu0 %v525, 15
    %v560 = vpop.permute.xlu0 %559
    %561 = vrot.lane.b32.xlu0 %v526, 15
    %v562 = vpop.permute.xlu0 %561
    %vm563 = vcmask 121856
    %v564 = vsel %vm563, %v540, %v542
    %v565 = vsel %vm563, %v542, %v544
    %v566 = vsel %vm563, %v546, %v548
    %v567 = vsel %vm563, %v548, %v550
    %v568 = vsel %vm563, %v552, %v554
    %v569 = vsel %vm563, %v554, %v556
    %v570 = vsel %vm563, %v558, %v560
    %v571 = vsel %vm563, %v560, %v562
    %v580 = vsel %vm201, 0.0, %v564
    %v581 = vsel %vm202, 0.0, %v565
    %v582 = vsel %vm201, 0.0, %v566
    %v583 = vsel %vm202, 0.0, %v567
    %v584 = vsel %vm201, 0.0, %v568
    %v585 = vsel %vm202, 0.0, %v569
    %v586 = vsel %vm201, 0.0, %v570
    %v587 = vsel %vm202, 0.0, %v571
    %588 = vst [vmem:[#allocation3 + $0x100] sm:$0xff] %v580
    %589 = vst [vmem:[#allocation3 + $0x108] sm:$0xff] %v581
    %590 = vst [vmem:[#allocation3 + $0x120] sm:$0xff] %v582
    %591 = vst [vmem:[#allocation3 + $0x128] sm:$0xff] %v583
    %592 = vst [vmem:[#allocation3 + $0x140] sm:$0xff] %v584
    %593 = vst [vmem:[#allocation3 + $0x148] sm:$0xff] %v585
    %594 = vst [vmem:[#allocation3 + $0x160] sm:$0xff] %v586
    %595 = vst [vmem:[#allocation3 + $0x168] sm:$0xff] %v587
    %v596 = vld [vmem:[#allocation2 + $0x20] sm:$0xff]
    %v597 = vld [vmem:[#allocation2 + $0x28] sm:$0xff]
    %v598 = vld [vmem:[#allocation2 + $0x30] sm:$0xff]
    %v599 = vld [vmem:[#allocation2 + $0x60] sm:$0xff]
    %v600 = vld [vmem:[#allocation2 + $0x68] sm:$0xff]
    %v601 = vld [vmem:[#allocation2 + $0x70] sm:$0xff]
    %v602 = vld [vmem:[#allocation2 + $0xa0] sm:$0xff]
    %v603 = vld [vmem:[#allocation2 + $0xa8] sm:$0xff]
    %v604 = vld [vmem:[#allocation2 + $0xb0] sm:$0xff]
    %v605 = vld [vmem:[#allocation2 + $0xe0] sm:$0xff]
    %v606 = vld [vmem:[#allocation2 + $0xe8] sm:$0xff]
    %v607 = vld [vmem:[#allocation2 + $0xf0] sm:$0xff]
    %620 = vrot.lane.b32.xlu0 %v596, 15
    %v621 = vpop.permute.xlu0 %620
    %622 = vrot.lane.b32.xlu0 %v597, 15
    %v623 = vpop.permute.xlu0 %622
    %624 = vrot.lane.b32.xlu0 %v598, 15
    %v625 = vpop.permute.xlu0 %624
    %626 = vrot.lane.b32.xlu0 %v599, 15
    %v627 = vpop.permute.xlu0 %626
    %628 = vrot.lane.b32.xlu0 %v600, 15
    %v629 = vpop.permute.xlu0 %628
    %630 = vrot.lane.b32.xlu0 %v601, 15
    %v631 = vpop.permute.xlu0 %630
    %632 = vrot.lane.b32.xlu0 %v602, 15
    %v633 = vpop.permute.xlu0 %632
    %634 = vrot.lane.b32.xlu0 %v603, 15
    %v635 = vpop.permute.xlu0 %634
    %636 = vrot.lane.b32.xlu0 %v604, 15
    %v637 = vpop.permute.xlu0 %636
    %638 = vrot.lane.b32.xlu0 %v605, 15
    %v639 = vpop.permute.xlu0 %638
    %640 = vrot.lane.b32.xlu0 %v606, 15
    %v641 = vpop.permute.xlu0 %640
    %642 = vrot.lane.b32.xlu0 %v607, 15
    %v643 = vpop.permute.xlu0 %642
    %v644 = vsel %vm563, %v621, %v623
    %v645 = vsel %vm563, %v623, %v625
    %v646 = vsel %vm563, %v627, %v629
    %v647 = vsel %vm563, %v629, %v631
    %v648 = vsel %vm563, %v633, %v635
    %v649 = vsel %vm563, %v635, %v637
    %v650 = vsel %vm563, %v639, %v641
    %v651 = vsel %vm563, %v641, %v643
    %v660 = vsel %vm201, 0.0, %v644
    %v661 = vsel %vm202, 0.0, %v645
    %v662 = vsel %vm201, 0.0, %v646
    %v663 = vsel %vm202, 0.0, %v647
    %v664 = vsel %vm201, 0.0, %v648
    %v665 = vsel %vm202, 0.0, %v649
    %v666 = vsel %vm201, 0.0, %v650
    %v667 = vsel %vm202, 0.0, %v651
    %668 = vst [vmem:[#allocation3 + $0x110] sm:$0xff] %v660
    %669 = vst [vmem:[#allocation3 + $0x118] sm:$0xff] %v661
    %670 = vst [vmem:[#allocation3 + $0x130] sm:$0xff] %v662
    %671 = vst [vmem:[#allocation3 + $0x138] sm:$0xff] %v663
    %672 = vst [vmem:[#allocation3 + $0x150] sm:$0xff] %v664
    %673 = vst [vmem:[#allocation3 + $0x158] sm:$0xff] %v665
    %674 = vst [vmem:[#allocation3 + $0x170] sm:$0xff] %v666
    %675 = vst [vmem:[#allocation3 + $0x178] sm:$0xff] %v667
    %v676 = vld [vmem:[#allocation2] sm:$0xff]
    %v677 = vld [vmem:[#allocation2 + $0x8] sm:$0xff]
    %v678 = vld [vmem:[#allocation2 + $0x10] sm:$0xff]
    %v679 = vld [vmem:[#allocation2 + $0x40] sm:$0xff]
    %v680 = vld [vmem:[#allocation2 + $0x48] sm:$0xff]
    %v681 = vld [vmem:[#allocation2 + $0x50] sm:$0xff]
    %v682 = vld [vmem:[#allocation2 + $0x80] sm:$0xff]
    %v683 = vld [vmem:[#allocation2 + $0x88] sm:$0xff]
    %v684 = vld [vmem:[#allocation2 + $0x90] sm:$0xff]
    %v685 = vld [vmem:[#allocation2 + $0xc0] sm:$0xff]
    %v686 = vld [vmem:[#allocation2 + $0xc8] sm:$0xff]
    %v687 = vld [vmem:[#allocation2 + $0xd0] sm:$0xff]
    %700 = vrot.lane.b32.xlu0 %v676, 1
    %v701 = vpop.permute.xlu0 %700
    %702 = vrot.lane.b32.xlu0 %v677, 1
    %v703 = vpop.permute.xlu0 %702
    %704 = vrot.lane.b32.xlu0 %v678, 1
    %v705 = vpop.permute.xlu0 %704
    %706 = vrot.lane.b32.xlu0 %v679, 1
    %v707 = vpop.permute.xlu0 %706
    %708 = vrot.lane.b32.xlu0 %v680, 1
    %v709 = vpop.permute.xlu0 %708
    %710 = vrot.lane.b32.xlu0 %v681, 1
    %v711 = vpop.permute.xlu0 %710
    %712 = vrot.lane.b32.xlu0 %v682, 1
    %v713 = vpop.permute.xlu0 %712
    %714 = vrot.lane.b32.xlu0 %v683, 1
    %v715 = vpop.permute.xlu0 %714
    %716 = vrot.lane.b32.xlu0 %v684, 1
    %v717 = vpop.permute.xlu0 %716
    %718 = vrot.lane.b32.xlu0 %v685, 1
    %v719 = vpop.permute.xlu0 %718
    %720 = vrot.lane.b32.xlu0 %v686, 1
    %v721 = vpop.permute.xlu0 %720
    %722 = vrot.lane.b32.xlu0 %v687, 1
    %v723 = vpop.permute.xlu0 %722
    %vm724 = vcmask 7168
    %v725 = vsel %vm724, %v701, %v703
    %v726 = vsel %vm724, %v703, %v705
    %v727 = vsel %vm724, %v707, %v709
    %v728 = vsel %vm724, %v709, %v711
    %v729 = vsel %vm724, %v713, %v715
    %v730 = vsel %vm724, %v715, %v717
    %v731 = vsel %vm724, %v719, %v721
    %v732 = vsel %vm724, %v721, %v723
    %v741 = vsel %vm195, 0.0, %v725
    %v742 = vsel %vm196, 0.0, %v726
    %v743 = vsel %vm195, 0.0, %v727
    %v744 = vsel %vm196, 0.0, %v728
    %v745 = vsel %vm195, 0.0, %v729
    %v746 = vsel %vm196, 0.0, %v730
    %v747 = vsel %vm195, 0.0, %v731
    %v748 = vsel %vm196, 0.0, %v732
    %749 = vst [vmem:[#allocation3 + $0x180] sm:$0xff] %v741
    %750 = vst [vmem:[#allocation3 + $0x188] sm:$0xff] %v742
    %751 = vst [vmem:[#allocation3 + $0x1a0] sm:$0xff] %v743
    %752 = vst [vmem:[#allocation3 + $0x1a8] sm:$0xff] %v744
    %753 = vst [vmem:[#allocation3 + $0x1c0] sm:$0xff] %v745
    %754 = vst [vmem:[#allocation3 + $0x1c8] sm:$0xff] %v746
    %755 = vst [vmem:[#allocation3 + $0x1e0] sm:$0xff] %v747
    %756 = vst [vmem:[#allocation3 + $0x1e8] sm:$0xff] %v748
    %v757 = vld [vmem:[#allocation2 + $0x20] sm:$0xff]
    %v758 = vld [vmem:[#allocation2 + $0x28] sm:$0xff]
    %v759 = vld [vmem:[#allocation2 + $0x30] sm:$0xff]
    %v760 = vld [vmem:[#allocation2 + $0x60] sm:$0xff]
    %v761 = vld [vmem:[#allocation2 + $0x68] sm:$0xff]
    %v762 = vld [vmem:[#allocation2 + $0x70] sm:$0xff]
    %v763 = vld [vmem:[#allocation2 + $0xa0] sm:$0xff]
    %v764 = vld [vmem:[#allocation2 + $0xa8] sm:$0xff]
    %v765 = vld [vmem:[#allocation2 + $0xb0] sm:$0xff]
    %v766 = vld [vmem:[#allocation2 + $0xe0] sm:$0xff]
    %v767 = vld [vmem:[#allocation2 + $0xe8] sm:$0xff]
    %v768 = vld [vmem:[#allocation2 + $0xf0] sm:$0xff]
    %781 = vrot.lane.b32.xlu0 %v757, 1
    %v782 = vpop.permute.xlu0 %781
    %783 = vrot.lane.b32.xlu0 %v758, 1
    %v784 = vpop.permute.xlu0 %783
    %785 = vrot.lane.b32.xlu0 %v759, 1
    %v786 = vpop.permute.xlu0 %785
    %787 = vrot.lane.b32.xlu0 %v760, 1
    %v788 = vpop.permute.xlu0 %787
    %789 = vrot.lane.b32.xlu0 %v761, 1
    %v790 = vpop.permute.xlu0 %789
    %791 = vrot.lane.b32.xlu0 %v762, 1
    %v792 = vpop.permute.xlu0 %791
    %793 = vrot.lane.b32.xlu0 %v763, 1
    %v794 = vpop.permute.xlu0 %793
    %795 = vrot.lane.b32.xlu0 %v764, 1
    %v796 = vpop.permute.xlu0 %795
    %797 = vrot.lane.b32.xlu0 %v765, 1
    %v798 = vpop.permute.xlu0 %797
    %799 = vrot.lane.b32.xlu0 %v766, 1
    %v800 = vpop.permute.xlu0 %799
    %801 = vrot.lane.b32.xlu0 %v767, 1
    %v802 = vpop.permute.xlu0 %801
    %803 = vrot.lane.b32.xlu0 %v768, 1
    %v804 = vpop.permute.xlu0 %803
    %v805 = vsel %vm724, %v782, %v784
    %v806 = vsel %vm724, %v784, %v786
    %v807 = vsel %vm724, %v788, %v790
    %v808 = vsel %vm724, %v790, %v792
    %v809 = vsel %vm724, %v794, %v796
    %v810 = vsel %vm724, %v796, %v798
    %v811 = vsel %vm724, %v800, %v802
    %v812 = vsel %vm724, %v802, %v804
    %v821 = vsel %vm195, 0.0, %v805
    %v822 = vsel %vm196, 0.0, %v806
    %v823 = vsel %vm195, 0.0, %v807
    %v824 = vsel %vm196, 0.0, %v808
    %v825 = vsel %vm195, 0.0, %v809
    %v826 = vsel %vm196, 0.0, %v810
    %v827 = vsel %vm195, 0.0, %v811
    %v828 = vsel %vm196, 0.0, %v812
    %829 = vst [vmem:[#allocation3 + $0x190] sm:$0xff] %v821
    %830 = vst [vmem:[#allocation3 + $0x198] sm:$0xff] %v822
    %831 = vst [vmem:[#allocation3 + $0x1b0] sm:$0xff] %v823
    %832 = vst [vmem:[#allocation3 + $0x1b8] sm:$0xff] %v824
    %833 = vst [vmem:[#allocation3 + $0x1d0] sm:$0xff] %v825
    %834 = vst [vmem:[#allocation3 + $0x1d8] sm:$0xff] %v826
    %835 = vst [vmem:[#allocation3 + $0x1f0] sm:$0xff] %v827
    %836 = vst [vmem:[#allocation3 + $0x1f8] sm:$0xff] %v828
    %v837 = vld [vmem:[#allocation2 + $0x8] sm:$0xff]
    %v838 = vld [vmem:[#allocation2 + $0x10] sm:$0xff]
    %v839 = vld [vmem:[#allocation2 + $0x48] sm:$0xff]
    %v840 = vld [vmem:[#allocation2 + $0x50] sm:$0xff]
    %v841 = vld [vmem:[#allocation2 + $0x88] sm:$0xff]
    %v842 = vld [vmem:[#allocation2 + $0x90] sm:$0xff]
    %v843 = vld [vmem:[#allocation2 + $0xc8] sm:$0xff]
    %v844 = vld [vmem:[#allocation2 + $0xd0] sm:$0xff]
    %845 = vst [vmem:[#allocation3 + $0x200] sm:$0xff] %v837
    %846 = vst [vmem:[#allocation3 + $0x208] sm:$0xff] %v838
    %847 = vst [vmem:[#allocation3 + $0x220] sm:$0xff] %v839
    %848 = vst [vmem:[#allocation3 + $0x228] sm:$0xff] %v840
    %849 = vst [vmem:[#allocation3 + $0x240] sm:$0xff] %v841
    %850 = vst [vmem:[#allocation3 + $0x248] sm:$0xff] %v842
    %851 = vst [vmem:[#allocation3 + $0x260] sm:$0xff] %v843
    %852 = vst [vmem:[#allocation3 + $0x268] sm:$0xff] %v844
    %v853 = vld [vmem:[#allocation2 + $0x28] sm:$0xff]
    %v854 = vld [vmem:[#allocation2 + $0x30] sm:$0xff]
    %v855 = vld [vmem:[#allocation2 + $0x68] sm:$0xff]
    %v856 = vld [vmem:[#allocation2 + $0x70] sm:$0xff]
    %v857 = vld [vmem:[#allocation2 + $0xa8] sm:$0xff]
    %v858 = vld [vmem:[#allocation2 + $0xb0] sm:$0xff]
    %v859 = vld [vmem:[#allocation2 + $0xe8] sm:$0xff]
    %v860 = vld [vmem:[#allocation2 + $0xf0] sm:$0xff]
    %861 = vst [vmem:[#allocation3 + $0x210] sm:$0xff] %v853
    %862 = vst [vmem:[#allocation3 + $0x218] sm:$0xff] %v854
    %863 = vst [vmem:[#allocation3 + $0x230] sm:$0xff] %v855
    %864 = vst [vmem:[#allocation3 + $0x238] sm:$0xff] %v856
    %865 = vst [vmem:[#allocation3 + $0x250] sm:$0xff] %v857
    %866 = vst [vmem:[#allocation3 + $0x258] sm:$0xff] %v858
    %867 = vst [vmem:[#allocation3 + $0x270] sm:$0xff] %v859
    %868 = vst [vmem:[#allocation3 + $0x278] sm:$0xff] %v860
    %v869 = vld [vmem:[#allocation2 + $0x8] sm:$0xff]
    %v870 = vld [vmem:[#allocation2 + $0x10] sm:$0xff]
    %v871 = vld [vmem:[#allocation2 + $0x18] sm:$0xff]
    %v872 = vld [vmem:[#allocation2 + $0x48] sm:$0xff]
    %v873 = vld [vmem:[#allocation2 + $0x50] sm:$0xff]
    %v874 = vld [vmem:[#allocation2 + $0x58] sm:$0xff]
    %v875 = vld [vmem:[#allocation2 + $0x88] sm:$0xff]
    %v876 = vld [vmem:[#allocation2 + $0x90] sm:$0xff]
    %v877 = vld [vmem:[#allocation2 + $0x98] sm:$0xff]
    %v878 = vld [vmem:[#allocation2 + $0xc8] sm:$0xff]
    %v879 = vld [vmem:[#allocation2 + $0xd0] sm:$0xff]
    %v880 = vld [vmem:[#allocation2 + $0xd8] sm:$0xff]
    %893 = vrot.lane.b32.xlu0 %v869, 127
    %v894 = vpop.permute.xlu0 %893
    %895 = vrot.lane.b32.xlu0 %v870, 127
    %v896 = vpop.permute.xlu0 %895
    %897 = vrot.lane.b32.xlu0 %v871, 127
    %v898 = vpop.permute.xlu0 %897
    %899 = vrot.lane.b32.xlu0 %v872, 127
    %v900 = vpop.permute.xlu0 %899
    %901 = vrot.lane.b32.xlu0 %v873, 127
    %v902 = vpop.permute.xlu0 %901
    %903 = vrot.lane.b32.xlu0 %v874, 127
    %v904 = vpop.permute.xlu0 %903
    %905 = vrot.lane.b32.xlu0 %v875, 127
    %v906 = vpop.permute.xlu0 %905
    %907 = vrot.lane.b32.xlu0 %v876, 127
    %v908 = vpop.permute.xlu0 %907
    %909 = vrot.lane.b32.xlu0 %v877, 127
    %v910 = vpop.permute.xlu0 %909
    %911 = vrot.lane.b32.xlu0 %v878, 127
    %v912 = vpop.permute.xlu0 %911
    %913 = vrot.lane.b32.xlu0 %v879, 127
    %v914 = vpop.permute.xlu0 %913
    %915 = vrot.lane.b32.xlu0 %v880, 127
    %v916 = vpop.permute.xlu0 %915
    %vm917 = vcmask 1039360
    %v918 = vsel %vm917, %v894, %v896
    %v919 = vsel %vm917, %v896, %v898
    %v920 = vsel %vm917, %v900, %v902
    %v921 = vsel %vm917, %v902, %v904
    %v922 = vsel %vm917, %v906, %v908
    %v923 = vsel %vm917, %v908, %v910
    %v924 = vsel %vm917, %v912, %v914
    %v925 = vsel %vm917, %v914, %v916
    %v934 = vsel %vm201, 0.0, %v918
    %v935 = vsel %vm202, 0.0, %v919
    %v936 = vsel %vm201, 0.0, %v920
    %v937 = vsel %vm202, 0.0, %v921
    %v938 = vsel %vm201, 0.0, %v922
    %v939 = vsel %vm202, 0.0, %v923
    %v940 = vsel %vm201, 0.0, %v924
    %v941 = vsel %vm202, 0.0, %v925
    %942 = vst [vmem:[#allocation3 + $0x280] sm:$0xff] %v934
    %943 = vst [vmem:[#allocation3 + $0x288] sm:$0xff] %v935
    %944 = vst [vmem:[#allocation3 + $0x2a0] sm:$0xff] %v936
    %945 = vst [vmem:[#allocation3 + $0x2a8] sm:$0xff] %v937
    %946 = vst [vmem:[#allocation3 + $0x2c0] sm:$0xff] %v938
    %947 = vst [vmem:[#allocation3 + $0x2c8] sm:$0xff] %v939
    %948 = vst [vmem:[#allocation3 + $0x2e0] sm:$0xff] %v940
    %949 = vst [vmem:[#allocation3 + $0x2e8] sm:$0xff] %v941
    %v950 = vld [vmem:[#allocation2 + $0x28] sm:$0xff]
    %v951 = vld [vmem:[#allocation2 + $0x30] sm:$0xff]
    %v952 = vld [vmem:[#allocation2 + $0x38] sm:$0xff]
    %v953 = vld [vmem:[#allocation2 + $0x68] sm:$0xff]
    %v954 = vld [vmem:[#allocation2 + $0x70] sm:$0xff]
    %v955 = vld [vmem:[#allocation2 + $0x78] sm:$0xff]
    %v956 = vld [vmem:[#allocation2 + $0xa8] sm:$0xff]
    %v957 = vld [vmem:[#allocation2 + $0xb0] sm:$0xff]
    %v958 = vld [vmem:[#allocation2 + $0xb8] sm:$0xff]
    %v959 = vld [vmem:[#allocation2 + $0xe8] sm:$0xff]
    %v960 = vld [vmem:[#allocation2 + $0xf0] sm:$0xff]
    %v961 = vld [vmem:[#allocation2 + $0xf8] sm:$0xff]
    %974 = vrot.lane.b32.xlu0 %v950, 127
    %v975 = vpop.permute.xlu0 %974
    %976 = vrot.lane.b32.xlu0 %v951, 127
    %v977 = vpop.permute.xlu0 %976
    %978 = vrot.lane.b32.xlu0 %v952, 127
    %v979 = vpop.permute.xlu0 %978
    %980 = vrot.lane.b32.xlu0 %v953, 127
    %v981 = vpop.permute.xlu0 %980
    %982 = vrot.lane.b32.xlu0 %v954, 127
    %v983 = vpop.permute.xlu0 %982
    %984 = vrot.lane.b32.xlu0 %v955, 127
    %v985 = vpop.permute.xlu0 %984
    %986 = vrot.lane.b32.xlu0 %v956, 127
    %v987 = vpop.permute.xlu0 %986
    %988 = vrot.lane.b32.xlu0 %v957, 127
    %v989 = vpop.permute.xlu0 %988
    %990 = vrot.lane.b32.xlu0 %v958, 127
    %v991 = vpop.permute.xlu0 %990
    %992 = vrot.lane.b32.xlu0 %v959, 127
    %v993 = vpop.permute.xlu0 %992
    %994 = vrot.lane.b32.xlu0 %v960, 127
    %v995 = vpop.permute.xlu0 %994
    %996 = vrot.lane.b32.xlu0 %v961, 127
    %v997 = vpop.permute.xlu0 %996
    %v998 = vsel %vm917, %v975, %v977
    %v999 = vsel %vm917, %v977, %v979
    %v1000 = vsel %vm917, %v981, %v983
    %v1001 = vsel %vm917, %v983, %v985
    %v1002 = vsel %vm917, %v987, %v989
    %v1003 = vsel %vm917, %v989, %v991
    %v1004 = vsel %vm917, %v993, %v995
    %v1005 = vsel %vm917, %v995, %v997
    %v1014 = vsel %vm201, 0.0, %v998
    %v1015 = vsel %vm202, 0.0, %v999
    %v1016 = vsel %vm201, 0.0, %v1000
    %v1017 = vsel %vm202, 0.0, %v1001
    %v1018 = vsel %vm201, 0.0, %v1002
    %v1019 = vsel %vm202, 0.0, %v1003
    %v1020 = vsel %vm201, 0.0, %v1004
    %v1021 = vsel %vm202, 0.0, %v1005
    %1022 = vst [vmem:[#allocation3 + $0x290] sm:$0xff] %v1014
    %1023 = vst [vmem:[#allocation3 + $0x298] sm:$0xff] %v1015
    %1024 = vst [vmem:[#allocation3 + $0x2b0] sm:$0xff] %v1016
    %1025 = vst [vmem:[#allocation3 + $0x2b8] sm:$0xff] %v1017
    %1026 = vst [vmem:[#allocation3 + $0x2d0] sm:$0xff] %v1018
    %1027 = vst [vmem:[#allocation3 + $0x2d8] sm:$0xff] %v1019
    %1028 = vst [vmem:[#allocation3 + $0x2f0] sm:$0xff] %v1020
    %1029 = vst [vmem:[#allocation3 + $0x2f8] sm:$0xff] %v1021
    %v1030 = vld [vmem:[#allocation2 + $0x8] sm:$0xff]
    %v1031 = vld [vmem:[#allocation2 + $0x10] sm:$0xff]
    %v1032 = vld [vmem:[#allocation2 + $0x18] sm:$0xff]
    %v1033 = vld [vmem:[#allocation2 + $0x48] sm:$0xff]
    %v1034 = vld [vmem:[#allocation2 + $0x50] sm:$0xff]
    %v1035 = vld [vmem:[#allocation2 + $0x58] sm:$0xff]
    %v1036 = vld [vmem:[#allocation2 + $0x88] sm:$0xff]
    %v1037 = vld [vmem:[#allocation2 + $0x90] sm:$0xff]
    %v1038 = vld [vmem:[#allocation2 + $0x98] sm:$0xff]
    %v1039 = vld [vmem:[#allocation2 + $0xc8] sm:$0xff]
    %v1040 = vld [vmem:[#allocation2 + $0xd0] sm:$0xff]
    %v1041 = vld [vmem:[#allocation2 + $0xd8] sm:$0xff]
    %1054 = vrot.lane.b32.xlu0 %v1030, 113
    %v1055 = vpop.permute.xlu0 %1054
    %1056 = vrot.lane.b32.xlu0 %v1031, 113
    %v1057 = vpop.permute.xlu0 %1056
    %1058 = vrot.lane.b32.xlu0 %v1032, 113
    %v1059 = vpop.permute.xlu0 %1058
    %1060 = vrot.lane.b32.xlu0 %v1033, 113
    %v1061 = vpop.permute.xlu0 %1060
    %1062 = vrot.lane.b32.xlu0 %v1034, 113
    %v1063 = vpop.permute.xlu0 %1062
    %1064 = vrot.lane.b32.xlu0 %v1035, 113
    %v1065 = vpop.permute.xlu0 %1064
    %1066 = vrot.lane.b32.xlu0 %v1036, 113
    %v1067 = vpop.permute.xlu0 %1066
    %1068 = vrot.lane.b32.xlu0 %v1037, 113
    %v1069 = vpop.permute.xlu0 %1068
    %1070 = vrot.lane.b32.xlu0 %v1038, 113
    %v1071 = vpop.permute.xlu0 %1070
    %1072 = vrot.lane.b32.xlu0 %v1039, 113
    %v1073 = vpop.permute.xlu0 %1072
    %1074 = vrot.lane.b32.xlu0 %v1040, 113
    %v1075 = vpop.permute.xlu0 %1074
    %1076 = vrot.lane.b32.xlu0 %v1041, 113
    %v1077 = vpop.permute.xlu0 %1076
    %vm1078 = vcmask 924672
    %v1079 = vsel %vm1078, %v1055, %v1057
    %v1080 = vsel %vm1078, %v1057, %v1059
    %v1081 = vsel %vm1078, %v1061, %v1063
    %v1082 = vsel %vm1078, %v1063, %v1065
    %v1083 = vsel %vm1078, %v1067, %v1069
    %v1084 = vsel %vm1078, %v1069, %v1071
    %v1085 = vsel %vm1078, %v1073, %v1075
    %v1086 = vsel %vm1078, %v1075, %v1077
    %v1095 = vsel %vm195, 0.0, %v1079
    %v1096 = vsel %vm196, 0.0, %v1080
    %v1097 = vsel %vm195, 0.0, %v1081
    %v1098 = vsel %vm196, 0.0, %v1082
    %v1099 = vsel %vm195, 0.0, %v1083
    %v1100 = vsel %vm196, 0.0, %v1084
    %v1101 = vsel %vm195, 0.0, %v1085
    %v1102 = vsel %vm196, 0.0, %v1086
    %1103 = vst [vmem:[#allocation3 + $0x300] sm:$0xff] %v1095
    %1104 = vst [vmem:[#allocation3 + $0x308] sm:$0xff] %v1096
    %1105 = vst [vmem:[#allocation3 + $0x320] sm:$0xff] %v1097
    %1106 = vst [vmem:[#allocation3 + $0x328] sm:$0xff] %v1098
    %1107 = vst [vmem:[#allocation3 + $0x340] sm:$0xff] %v1099
    %1108 = vst [vmem:[#allocation3 + $0x348] sm:$0xff] %v1100
    %1109 = vst [vmem:[#allocation3 + $0x360] sm:$0xff] %v1101
    %1110 = vst [vmem:[#allocation3 + $0x368] sm:$0xff] %v1102
    %v1111 = vld [vmem:[#allocation2 + $0x28] sm:$0xff]
    %v1112 = vld [vmem:[#allocation2 + $0x30] sm:$0xff]
    %v1113 = vld [vmem:[#allocation2 + $0x38] sm:$0xff]
    %v1114 = vld [vmem:[#allocation2 + $0x68] sm:$0xff]
    %v1115 = vld [vmem:[#allocation2 + $0x70] sm:$0xff]
    %v1116 = vld [vmem:[#allocation2 + $0x78] sm:$0xff]
    %v1117 = vld [vmem:[#allocation2 + $0xa8] sm:$0xff]
    %v1118 = vld [vmem:[#allocation2 + $0xb0] sm:$0xff]
    %v1119 = vld [vmem:[#allocation2 + $0xb8] sm:$0xff]
    %v1120 = vld [vmem:[#allocation2 + $0xe8] sm:$0xff]
    %v1121 = vld [vmem:[#allocation2 + $0xf0] sm:$0xff]
    %v1122 = vld [vmem:[#allocation2 + $0xf8] sm:$0xff]
    %1135 = vrot.lane.b32.xlu0 %v1111, 113
    %v1136 = vpop.permute.xlu0 %1135
    %1137 = vrot.lane.b32.xlu0 %v1112, 113
    %v1138 = vpop.permute.xlu0 %1137
    %1139 = vrot.lane.b32.xlu0 %v1113, 113
    %v1140 = vpop.permute.xlu0 %1139
    %1141 = vrot.lane.b32.xlu0 %v1114, 113
    %v1142 = vpop.permute.xlu0 %1141
    %1143 = vrot.lane.b32.xlu0 %v1115, 113
    %v1144 = vpop.permute.xlu0 %1143
    %1145 = vrot.lane.b32.xlu0 %v1116, 113
    %v1146 = vpop.permute.xlu0 %1145
    %1147 = vrot.lane.b32.xlu0 %v1117, 113
    %v1148 = vpop.permute.xlu0 %1147
    %1149 = vrot.lane.b32.xlu0 %v1118, 113
    %v1150 = vpop.permute.xlu0 %1149
    %1151 = vrot.lane.b32.xlu0 %v1119, 113
    %v1152 = vpop.permute.xlu0 %1151
    %1153 = vrot.lane.b32.xlu0 %v1120, 113
    %v1154 = vpop.permute.xlu0 %1153
    %1155 = vrot.lane.b32.xlu0 %v1121, 113
    %v1156 = vpop.permute.xlu0 %1155
    %1157 = vrot.lane.b32.xlu0 %v1122, 113
    %v1158 = vpop.permute.xlu0 %1157
    %v1159 = vsel %vm1078, %v1136, %v1138
    %v1160 = vsel %vm1078, %v1138, %v1140
    %v1161 = vsel %vm1078, %v1142, %v1144
    %v1162 = vsel %vm1078, %v1144, %v1146
    %v1163 = vsel %vm1078, %v1148, %v1150
    %v1164 = vsel %vm1078, %v1150, %v1152
    %v1165 = vsel %vm1078, %v1154, %v1156
    %v1166 = vsel %vm1078, %v1156, %v1158
    %v1175 = vsel %vm195, 0.0, %v1159
    %v1176 = vsel %vm196, 0.0, %v1160
    %v1177 = vsel %vm195, 0.0, %v1161
    %v1178 = vsel %vm196, 0.0, %v1162
    %v1179 = vsel %vm195, 0.0, %v1163
    %v1180 = vsel %vm196, 0.0, %v1164
    %v1181 = vsel %vm195, 0.0, %v1165
    %v1182 = vsel %vm196, 0.0, %v1166
    %1183 = vst [vmem:[#allocation3 + $0x310] sm:$0xff] %v1175
    %1184 = vst [vmem:[#allocation3 + $0x318] sm:$0xff] %v1176
    %1185 = vst [vmem:[#allocation3 + $0x330] sm:$0xff] %v1177
    %1186 = vst [vmem:[#allocation3 + $0x338] sm:$0xff] %v1178
    %1187 = vst [vmem:[#allocation3 + $0x350] sm:$0xff] %v1179
    %1188 = vst [vmem:[#allocation3 + $0x358] sm:$0xff] %v1180
    %1189 = vst [vmem:[#allocation3 + $0x370] sm:$0xff] %v1181
    %1190 = vst [vmem:[#allocation3 + $0x378] sm:$0xff] %v1182
    %v1191 = vld [vmem:[#allocation2 + $0x8] sm:$0xff]
    %v1192 = vld [vmem:[#allocation2 + $0x10] sm:$0xff]
    %v1193 = vld [vmem:[#allocation2 + $0x18] sm:$0xff]
    %v1194 = vld [vmem:[#allocation2 + $0x48] sm:$0xff]
    %v1195 = vld [vmem:[#allocation2 + $0x50] sm:$0xff]
    %v1196 = vld [vmem:[#allocation2 + $0x58] sm:$0xff]
    %v1197 = vld [vmem:[#allocation2 + $0x88] sm:$0xff]
    %v1198 = vld [vmem:[#allocation2 + $0x90] sm:$0xff]
    %v1199 = vld [vmem:[#allocation2 + $0x98] sm:$0xff]
    %v1200 = vld [vmem:[#allocation2 + $0xc8] sm:$0xff]
    %v1201 = vld [vmem:[#allocation2 + $0xd0] sm:$0xff]
    %v1202 = vld [vmem:[#allocation2 + $0xd8] sm:$0xff]
    %1215 = vrot.lane.b32.xlu0 %v1191, 112
    %v1216 = vpop.permute.xlu0 %1215
    %1217 = vrot.lane.b32.xlu0 %v1192, 112
    %v1218 = vpop.permute.xlu0 %1217
    %1219 = vrot.lane.b32.xlu0 %v1193, 112
    %v1220 = vpop.permute.xlu0 %1219
    %1221 = vrot.lane.b32.xlu0 %v1194, 112
    %v1222 = vpop.permute.xlu0 %1221
    %1223 = vrot.lane.b32.xlu0 %v1195, 112
    %v1224 = vpop.permute.xlu0 %1223
    %1225 = vrot.lane.b32.xlu0 %v1196, 112
    %v1226 = vpop.permute.xlu0 %1225
    %1227 = vrot.lane.b32.xlu0 %v1197, 112
    %v1228 = vpop.permute.xlu0 %1227
    %1229 = vrot.lane.b32.xlu0 %v1198, 112
    %v1230 = vpop.permute.xlu0 %1229
    %1231 = vrot.lane.b32.xlu0 %v1199, 112
    %v1232 = vpop.permute.xlu0 %1231
    %1233 = vrot.lane.b32.xlu0 %v1200, 112
    %v1234 = vpop.permute.xlu0 %1233
    %1235 = vrot.lane.b32.xlu0 %v1201, 112
    %v1236 = vpop.permute.xlu0 %1235
    %1237 = vrot.lane.b32.xlu0 %v1202, 112
    %v1238 = vpop.permute.xlu0 %1237
    %vm1239 = vcmask 916480
    %v1240 = vsel %vm1239, %v1216, %v1218
    %v1241 = vsel %vm1239, %v1218, %v1220
    %v1242 = vsel %vm1239, %v1222, %v1224
    %v1243 = vsel %vm1239, %v1224, %v1226
    %v1244 = vsel %vm1239, %v1228, %v1230
    %v1245 = vsel %vm1239, %v1230, %v1232
    %v1246 = vsel %vm1239, %v1234, %v1236
    %v1247 = vsel %vm1239, %v1236, %v1238
    %1256 = vst [vmem:[#allocation3 + $0x380] sm:$0xff] %v1240
    %1257 = vst [vmem:[#allocation3 + $0x388] sm:$0xff] %v1241
    %1258 = vst [vmem:[#allocation3 + $0x3a0] sm:$0xff] %v1242
    %1259 = vst [vmem:[#allocation3 + $0x3a8] sm:$0xff] %v1243
    %1260 = vst [vmem:[#allocation3 + $0x3c0] sm:$0xff] %v1244
    %1261 = vst [vmem:[#allocation3 + $0x3c8] sm:$0xff] %v1245
    %1262 = vst [vmem:[#allocation3 + $0x3e0] sm:$0xff] %v1246
    %1263 = vst [vmem:[#allocation3 + $0x3e8] sm:$0xff] %v1247
    %v1264 = vld [vmem:[#allocation2 + $0x28] sm:$0xff]
    %v1265 = vld [vmem:[#allocation2 + $0x30] sm:$0xff]
    %v1266 = vld [vmem:[#allocation2 + $0x38] sm:$0xff]
    %v1267 = vld [vmem:[#allocation2 + $0x68] sm:$0xff]
    %v1268 = vld [vmem:[#allocation2 + $0x70] sm:$0xff]
    %v1269 = vld [vmem:[#allocation2 + $0x78] sm:$0xff]
    %v1270 = vld [vmem:[#allocation2 + $0xa8] sm:$0xff]
    %v1271 = vld [vmem:[#allocation2 + $0xb0] sm:$0xff]
    %v1272 = vld [vmem:[#allocation2 + $0xb8] sm:$0xff]
    %v1273 = vld [vmem:[#allocation2 + $0xe8] sm:$0xff]
    %v1274 = vld [vmem:[#allocation2 + $0xf0] sm:$0xff]
    %v1275 = vld [vmem:[#allocation2 + $0xf8] sm:$0xff]
    %1288 = vrot.lane.b32.xlu0 %v1264, 112
    %v1289 = vpop.permute.xlu0 %1288
    %1290 = vrot.lane.b32.xlu0 %v1265, 112
    %v1291 = vpop.permute.xlu0 %1290
    %1292 = vrot.lane.b32.xlu0 %v1266, 112
    %v1293 = vpop.permute.xlu0 %1292
    %1294 = vrot.lane.b32.xlu0 %v1267, 112
    %v1295 = vpop.permute.xlu0 %1294
    %1296 = vrot.lane.b32.xlu0 %v1268, 112
    %v1297 = vpop.permute.xlu0 %1296
    %1298 = vrot.lane.b32.xlu0 %v1269, 112
    %v1299 = vpop.permute.xlu0 %1298
    %1300 = vrot.lane.b32.xlu0 %v1270, 112
    %v1301 = vpop.permute.xlu0 %1300
    %1302 = vrot.lane.b32.xlu0 %v1271, 112
    %v1303 = vpop.permute.xlu0 %1302
    %1304 = vrot.lane.b32.xlu0 %v1272, 112
    %v1305 = vpop.permute.xlu0 %1304
    %1306 = vrot.lane.b32.xlu0 %v1273, 112
    %v1307 = vpop.permute.xlu0 %1306
    %1308 = vrot.lane.b32.xlu0 %v1274, 112
    %v1309 = vpop.permute.xlu0 %1308
    %1310 = vrot.lane.b32.xlu0 %v1275, 112
    %v1311 = vpop.permute.xlu0 %1310
    %v1312 = vsel %vm1239, %v1289, %v1291
    %v1313 = vsel %vm1239, %v1291, %v1293
    %v1314 = vsel %vm1239, %v1295, %v1297
    %v1315 = vsel %vm1239, %v1297, %v1299
    %v1316 = vsel %vm1239, %v1301, %v1303
    %v1317 = vsel %vm1239, %v1303, %v1305
    %v1318 = vsel %vm1239, %v1307, %v1309
    %v1319 = vsel %vm1239, %v1309, %v1311
    %1328 = vst [vmem:[#allocation3 + $0x390] sm:$0xff] %v1312
    %1329 = vst [vmem:[#allocation3 + $0x398] sm:$0xff] %v1313
    %1330 = vst [vmem:[#allocation3 + $0x3b0] sm:$0xff] %v1314
    %1331 = vst [vmem:[#allocation3 + $0x3b8] sm:$0xff] %v1315
    %1332 = vst [vmem:[#allocation3 + $0x3d0] sm:$0xff] %v1316
    %1333 = vst [vmem:[#allocation3 + $0x3d8] sm:$0xff] %v1317
    %1334 = vst [vmem:[#allocation3 + $0x3f0] sm:$0xff] %v1318
    %1335 = vst [vmem:[#allocation3 + $0x3f8] sm:$0xff] %v1319
    %v1336 = vld [vmem:[#allocation2 + $0x8] sm:$0xff]
    %v1337 = vld [vmem:[#allocation2 + $0x10] sm:$0xff]
    %v1338 = vld [vmem:[#allocation2 + $0x18] sm:$0xff]
    %v1339 = vld [vmem:[#allocation2 + $0x48] sm:$0xff]
    %v1340 = vld [vmem:[#allocation2 + $0x50] sm:$0xff]
    %v1341 = vld [vmem:[#allocation2 + $0x58] sm:$0xff]
    %v1342 = vld [vmem:[#allocation2 + $0x88] sm:$0xff]
    %v1343 = vld [vmem:[#allocation2 + $0x90] sm:$0xff]
    %v1344 = vld [vmem:[#allocation2 + $0x98] sm:$0xff]
    %v1345 = vld [vmem:[#allocation2 + $0xc8] sm:$0xff]
    %v1346 = vld [vmem:[#allocation2 + $0xd0] sm:$0xff]
    %v1347 = vld [vmem:[#allocation2 + $0xd8] sm:$0xff]
    %1360 = vrot.lane.b32.xlu0 %v1336, 111
    %v1361 = vpop.permute.xlu0 %1360
    %1362 = vrot.lane.b32.xlu0 %v1337, 111
    %v1363 = vpop.permute.xlu0 %1362
    %1364 = vrot.lane.b32.xlu0 %v1338, 111
    %v1365 = vpop.permute.xlu0 %1364
    %1366 = vrot.lane.b32.xlu0 %v1339, 111
    %v1367 = vpop.permute.xlu0 %1366
    %1368 = vrot.lane.b32.xlu0 %v1340, 111
    %v1369 = vpop.permute.xlu0 %1368
    %1370 = vrot.lane.b32.xlu0 %v1341, 111
    %v1371 = vpop.permute.xlu0 %1370
    %1372 = vrot.lane.b32.xlu0 %v1342, 111
    %v1373 = vpop.permute.xlu0 %1372
    %1374 = vrot.lane.b32.xlu0 %v1343, 111
    %v1375 = vpop.permute.xlu0 %1374
    %1376 = vrot.lane.b32.xlu0 %v1344, 111
    %v1377 = vpop.permute.xlu0 %1376
    %1378 = vrot.lane.b32.xlu0 %v1345, 111
    %v1379 = vpop.permute.xlu0 %1378
    %1380 = vrot.lane.b32.xlu0 %v1346, 111
    %v1381 = vpop.permute.xlu0 %1380
    %1382 = vrot.lane.b32.xlu0 %v1347, 111
    %v1383 = vpop.permute.xlu0 %1382
    %vm1384 = vcmask 908288
    %v1385 = vsel %vm1384, %v1361, %v1363
    %v1386 = vsel %vm1384, %v1363, %v1365
    %v1387 = vsel %vm1384, %v1367, %v1369
    %v1388 = vsel %vm1384, %v1369, %v1371
    %v1389 = vsel %vm1384, %v1373, %v1375
    %v1390 = vsel %vm1384, %v1375, %v1377
    %v1391 = vsel %vm1384, %v1379, %v1381
    %v1392 = vsel %vm1384, %v1381, %v1383
    %v1401 = vsel %vm201, 0.0, %v1385
    %v1402 = vsel %vm202, 0.0, %v1386
    %v1403 = vsel %vm201, 0.0, %v1387
    %v1404 = vsel %vm202, 0.0, %v1388
    %v1405 = vsel %vm201, 0.0, %v1389
    %v1406 = vsel %vm202, 0.0, %v1390
    %v1407 = vsel %vm201, 0.0, %v1391
    %v1408 = vsel %vm202, 0.0, %v1392
    %1409 = vst [vmem:[#allocation3 + $0x400] sm:$0xff] %v1401
    %1410 = vst [vmem:[#allocation3 + $0x408] sm:$0xff] %v1402
    %1411 = vst [vmem:[#allocation3 + $0x420] sm:$0xff] %v1403
    %1412 = vst [vmem:[#allocation3 + $0x428] sm:$0xff] %v1404
    %1413 = vst [vmem:[#allocation3 + $0x440] sm:$0xff] %v1405
    %1414 = vst [vmem:[#allocation3 + $0x448] sm:$0xff] %v1406
    %1415 = vst [vmem:[#allocation3 + $0x460] sm:$0xff] %v1407
    %1416 = vst [vmem:[#allocation3 + $0x468] sm:$0xff] %v1408
    %v1417 = vld [vmem:[#allocation2 + $0x28] sm:$0xff]
    %v1418 = vld [vmem:[#allocation2 + $0x30] sm:$0xff]
    %v1419 = vld [vmem:[#allocation2 + $0x38] sm:$0xff]
    %v1420 = vld [vmem:[#allocation2 + $0x68] sm:$0xff]
    %v1421 = vld [vmem:[#allocation2 + $0x70] sm:$0xff]
    %v1422 = vld [vmem:[#allocation2 + $0x78] sm:$0xff]
    %v1423 = vld [vmem:[#allocation2 + $0xa8] sm:$0xff]
    %v1424 = vld [vmem:[#allocation2 + $0xb0] sm:$0xff]
    %v1425 = vld [vmem:[#allocation2 + $0xb8] sm:$0xff]
    %v1426 = vld [vmem:[#allocation2 + $0xe8] sm:$0xff]
    %v1427 = vld [vmem:[#allocation2 + $0xf0] sm:$0xff]
    %v1428 = vld [vmem:[#allocation2 + $0xf8] sm:$0xff]
    %1441 = vrot.lane.b32.xlu0 %v1417, 111
    %v1442 = vpop.permute.xlu0 %1441
    %1443 = vrot.lane.b32.xlu0 %v1418, 111
    %v1444 = vpop.permute.xlu0 %1443
    %1445 = vrot.lane.b32.xlu0 %v1419, 111
    %v1446 = vpop.permute.xlu0 %1445
    %1447 = vrot.lane.b32.xlu0 %v1420, 111
    %v1448 = vpop.permute.xlu0 %1447
    %1449 = vrot.lane.b32.xlu0 %v1421, 111
    %v1450 = vpop.permute.xlu0 %1449
    %1451 = vrot.lane.b32.xlu0 %v1422, 111
    %v1452 = vpop.permute.xlu0 %1451
    %1453 = vrot.lane.b32.xlu0 %v1423, 111
    %v1454 = vpop.permute.xlu0 %1453
    %1455 = vrot.lane.b32.xlu0 %v1424, 111
    %v1456 = vpop.permute.xlu0 %1455
    %1457 = vrot.lane.b32.xlu0 %v1425, 111
    %v1458 = vpop.permute.xlu0 %1457
    %1459 = vrot.lane.b32.xlu0 %v1426, 111
    %v1460 = vpop.permute.xlu0 %1459
    %1461 = vrot.lane.b32.xlu0 %v1427, 111
    %v1462 = vpop.permute.xlu0 %1461
    %1463 = vrot.lane.b32.xlu0 %v1428, 111
    %v1464 = vpop.permute.xlu0 %1463
    %v1465 = vsel %vm1384, %v1442, %v1444
    %v1466 = vsel %vm1384, %v1444, %v1446
    %v1467 = vsel %vm1384, %v1448, %v1450
    %v1468 = vsel %vm1384, %v1450, %v1452
    %v1469 = vsel %vm1384, %v1454, %v1456
    %v1470 = vsel %vm1384, %v1456, %v1458
    %v1471 = vsel %vm1384, %v1460, %v1462
    %v1472 = vsel %vm1384, %v1462, %v1464
    %v1481 = vsel %vm201, 0.0, %v1465
    %v1482 = vsel %vm202, 0.0, %v1466
    %v1483 = vsel %vm201, 0.0, %v1467
    %v1484 = vsel %vm202, 0.0, %v1468
    %v1485 = vsel %vm201, 0.0, %v1469
    %v1486 = vsel %vm202, 0.0, %v1470
    %v1487 = vsel %vm201, 0.0, %v1471
    %v1488 = vsel %vm202, 0.0, %v1472
    %1489 = vst [vmem:[#allocation3 + $0x410] sm:$0xff] %v1481
    %1490 = vst [vmem:[#allocation3 + $0x418] sm:$0xff] %v1482
    %1491 = vst [vmem:[#allocation3 + $0x430] sm:$0xff] %v1483
    %1492 = vst [vmem:[#allocation3 + $0x438] sm:$0xff] %v1484
    %1493 = vst [vmem:[#allocation3 + $0x450] sm:$0xff] %v1485
    %1494 = vst [vmem:[#allocation3 + $0x458] sm:$0xff] %v1486
    %1495 = vst [vmem:[#allocation3 + $0x470] sm:$0xff] %v1487
    %1496 = vst [vmem:[#allocation3 + $0x478] sm:$0xff] %v1488
    %v1497 = vld [vmem:[#allocation8] sm:$0xff]
    %v1498 = vld [vmem:[#allocation8 + $0x8] sm:$0xff]
    %v1499 = vld [vmem:[#allocation8 + $0x10] sm:$0xff]
    %v1500 = vld [vmem:[#allocation8 + $0x18] sm:$0xff]
    %v1501 = vld [vmem:[#allocation8 + $0x20] sm:$0xff]
    %v1502 = vld [vmem:[#allocation8 + $0x28] sm:$0xff]
    %v1503 = vld [vmem:[#allocation8 + $0x30] sm:$0xff]
    %v1504 = vld [vmem:[#allocation8 + $0x38] sm:$0xff]
    %v1505 = vld [vmem:[#allocation8 + $0x40] sm:$0xff]
    %v1506 = vld [vmem:[#allocation8 + $0x48] sm:$0xff]
    %v1507 = vld [vmem:[#allocation8 + $0x50] sm:$0xff]
    %v1508 = vld [vmem:[#allocation8 + $0x58] sm:$0xff]
    %v1509 = vld [vmem:[#allocation3] sm:$0xff]
    %v1510 = vld [vmem:[#allocation3 + $0x8] sm:$0xff]
    %v1511 = vld [vmem:[#allocation3 + $0x10] sm:$0xff]
    %v1512 = vld [vmem:[#allocation3 + $0x18] sm:$0xff]
    %v1513 = vld [vmem:[#allocation3 + $0x20] sm:$0xff]
    %v1514 = vld [vmem:[#allocation3 + $0x28] sm:$0xff]
    %v1515 = vld [vmem:[#allocation3 + $0x30] sm:$0xff]
    %v1516 = vld [vmem:[#allocation3 + $0x38] sm:$0xff]
    %v1517 = vld [vmem:[#allocation3 + $0x40] sm:$0xff]
    %v1518 = vld [vmem:[#allocation3 + $0x48] sm:$0xff]
    %v1519 = vld [vmem:[#allocation3 + $0x50] sm:$0xff]
    %v1520 = vld [vmem:[#allocation3 + $0x58] sm:$0xff]
    %v1521 = vld [vmem:[#allocation3 + $0x60] sm:$0xff]
    %v1522 = vld [vmem:[#allocation3 + $0x68] sm:$0xff]
    %v1523 = vld [vmem:[#allocation3 + $0x70] sm:$0xff]
    %v1524 = vld [vmem:[#allocation3 + $0x78] sm:$0xff]
    %v1525 = vld [vmem:[#allocation3 + $0x80] sm:$0xff]
    %v1526 = vld [vmem:[#allocation3 + $0x88] sm:$0xff]
    %v1527 = vld [vmem:[#allocation3 + $0x90] sm:$0xff]
    %v1528 = vld [vmem:[#allocation3 + $0x98] sm:$0xff]
    %v1529 = vld [vmem:[#allocation3 + $0xa0] sm:$0xff]
    %v1530 = vld [vmem:[#allocation3 + $0xa8] sm:$0xff]
    %v1531 = vld [vmem:[#allocation3 + $0xb0] sm:$0xff]
    %v1532 = vld [vmem:[#allocation3 + $0xb8] sm:$0xff]
    %v1533 = vld [vmem:[#allocation3 + $0xc0] sm:$0xff]
    %v1534 = vld [vmem:[#allocation3 + $0xc8] sm:$0xff]
    %v1535 = vld [vmem:[#allocation3 + $0xd0] sm:$0xff]
    %v1536 = vld [vmem:[#allocation3 + $0xd8] sm:$0xff]
    %v1537 = vld [vmem:[#allocation3 + $0xe0] sm:$0xff]
    %v1538 = vld [vmem:[#allocation3 + $0xe8] sm:$0xff]
    %v1539 = vld [vmem:[#allocation3 + $0xf0] sm:$0xff]
    %v1540 = vld [vmem:[#allocation3 + $0xf8] sm:$0xff]
    %v1541 = vld [vmem:[#allocation3 + $0x100] sm:$0xff]
    %v1542 = vld [vmem:[#allocation3 + $0x108] sm:$0xff]
    %v1543 = vld [vmem:[#allocation3 + $0x110] sm:$0xff]
    %v1544 = vld [vmem:[#allocation3 + $0x118] sm:$0xff]
    %v1545 = vld [vmem:[#allocation3 + $0x120] sm:$0xff]
    %v1546 = vld [vmem:[#allocation3 + $0x128] sm:$0xff]
    %v1547 = vld [vmem:[#allocation3 + $0x130] sm:$0xff]
    %v1548 = vld [vmem:[#allocation3 + $0x138] sm:$0xff]
    %v1549 = vld [vmem:[#allocation3 + $0x140] sm:$0xff]
    %v1550 = vld [vmem:[#allocation3 + $0x148] sm:$0xff]
    %v1551 = vld [vmem:[#allocation3 + $0x150] sm:$0xff]
    %v1552 = vld [vmem:[#allocation3 + $0x158] sm:$0xff]
    %v1553 = vld [vmem:[#allocation3 + $0x160] sm:$0xff]
    %v1554 = vld [vmem:[#allocation3 + $0x168] sm:$0xff]
    %v1555 = vld [vmem:[#allocation3 + $0x170] sm:$0xff]
    %v1556 = vld [vmem:[#allocation3 + $0x178] sm:$0xff]
    %v1557 = vld [vmem:[#allocation3 + $0x180] sm:$0xff]
    %v1558 = vld [vmem:[#allocation3 + $0x188] sm:$0xff]
    %v1559 = vld [vmem:[#allocation3 + $0x190] sm:$0xff]
    %v1560 = vld [vmem:[#allocation3 + $0x198] sm:$0xff]
    %v1561 = vld [vmem:[#allocation3 + $0x1a0] sm:$0xff]
    %v1562 = vld [vmem:[#allocation3 + $0x1a8] sm:$0xff]
    %v1563 = vld [vmem:[#allocation3 + $0x1b0] sm:$0xff]
    %v1564 = vld [vmem:[#allocation3 + $0x1b8] sm:$0xff]
    %v1565 = vld [vmem:[#allocation3 + $0x1c0] sm:$0xff]
    %v1566 = vld [vmem:[#allocation3 + $0x1c8] sm:$0xff]
    %v1567 = vld [vmem:[#allocation3 + $0x1d0] sm:$0xff]
    %v1568 = vld [vmem:[#allocation3 + $0x1d8] sm:$0xff]
    %v1569 = vld [vmem:[#allocation3 + $0x1e0] sm:$0xff]
    %v1570 = vld [vmem:[#allocation3 + $0x1e8] sm:$0xff]
    %v1571 = vld [vmem:[#allocation3 + $0x1f0] sm:$0xff]
    %v1572 = vld [vmem:[#allocation3 + $0x1f8] sm:$0xff]
    %v1573 = vld [vmem:[#allocation3 + $0x200] sm:$0xff]
    %v1574 = vld [vmem:[#allocation3 + $0x208] sm:$0xff]
    %v1575 = vld [vmem:[#allocation3 + $0x210] sm:$0xff]
    %v1576 = vld [vmem:[#allocation3 + $0x218] sm:$0xff]
    %v1577 = vld [vmem:[#allocation3 + $0x220] sm:$0xff]
    %v1578 = vld [vmem:[#allocation3 + $0x228] sm:$0xff]
    %v1579 = vld [vmem:[#allocation3 + $0x230] sm:$0xff]
    %v1580 = vld [vmem:[#allocation3 + $0x238] sm:$0xff]
    %v1581 = vld [vmem:[#allocation3 + $0x240] sm:$0xff]
    %v1582 = vld [vmem:[#allocation3 + $0x248] sm:$0xff]
    %v1583 = vld [vmem:[#allocation3 + $0x250] sm:$0xff]
    %v1584 = vld [vmem:[#allocation3 + $0x258] sm:$0xff]
    %v1585 = vld [vmem:[#allocation3 + $0x260] sm:$0xff]
    %v1586 = vld [vmem:[#allocation3 + $0x268] sm:$0xff]
    %v1587 = vld [vmem:[#allocation3 + $0x270] sm:$0xff]
    %v1588 = vld [vmem:[#allocation3 + $0x278] sm:$0xff]
    %v1589 = vld [vmem:[#allocation3 + $0x280] sm:$0xff]
    %v1590 = vld [vmem:[#allocation3 + $0x288] sm:$0xff]
    %v1591 = vld [vmem:[#allocation3 + $0x290] sm:$0xff]
    %v1592 = vld [vmem:[#allocation3 + $0x298] sm:$0xff]
    %v1593 = vld [vmem:[#allocation3 + $0x2a0] sm:$0xff]
    %v1594 = vld [vmem:[#allocation3 + $0x2a8] sm:$0xff]
    %v1595 = vld [vmem:[#allocation3 + $0x2b0] sm:$0xff]
    %v1596 = vld [vmem:[#allocation3 + $0x2b8] sm:$0xff]
    %v1597 = vld [vmem:[#allocation3 + $0x2c0] sm:$0xff]
    %v1598 = vld [vmem:[#allocation3 + $0x2c8] sm:$0xff]
    %v1599 = vld [vmem:[#allocation3 + $0x2d0] sm:$0xff]
    %v1600 = vld [vmem:[#allocation3 + $0x2d8] sm:$0xff]
    %v1601 = vld [vmem:[#allocation3 + $0x2e0] sm:$0xff]
    %v1602 = vld [vmem:[#allocation3 + $0x2e8] sm:$0xff]
    %v1603 = vld [vmem:[#allocation3 + $0x2f0] sm:$0xff]
    %v1604 = vld [vmem:[#allocation3 + $0x2f8] sm:$0xff]
    %v1605 = vld [vmem:[#allocation3 + $0x300] sm:$0xff]
    %v1606 = vld [vmem:[#allocation3 + $0x308] sm:$0xff]
    %v1607 = vld [vmem:[#allocation3 + $0x310] sm:$0xff]
    %v1608 = vld [vmem:[#allocation3 + $0x318] sm:$0xff]
    %v1609 = vld [vmem:[#allocation3 + $0x320] sm:$0xff]
    %v1610 = vld [vmem:[#allocation3 + $0x328] sm:$0xff]
    %v1611 = vld [vmem:[#allocation3 + $0x330] sm:$0xff]
    %v1612 = vld [vmem:[#allocation3 + $0x338] sm:$0xff]
    %v1613 = vld [vmem:[#allocation3 + $0x340] sm:$0xff]
    %v1614 = vld [vmem:[#allocation3 + $0x348] sm:$0xff]
    %v1615 = vld [vmem:[#allocation3 + $0x350] sm:$0xff]
    %v1616 = vld [vmem:[#allocation3 + $0x358] sm:$0xff]
    %v1617 = vld [vmem:[#allocation3 + $0x360] sm:$0xff]
    %v1618 = vld [vmem:[#allocation3 + $0x368] sm:$0xff]
    %v1619 = vld [vmem:[#allocation3 + $0x370] sm:$0xff]
    %v1620 = vld [vmem:[#allocation3 + $0x378] sm:$0xff]
    %v1621 = vld [vmem:[#allocation3 + $0x380] sm:$0xff]
    %v1622 = vld [vmem:[#allocation3 + $0x388] sm:$0xff]
    %v1623 = vld [vmem:[#allocation3 + $0x390] sm:$0xff]
    %v1624 = vld [vmem:[#allocation3 + $0x398] sm:$0xff]
    %v1625 = vld [vmem:[#allocation3 + $0x3a0] sm:$0xff]
    %v1626 = vld [vmem:[#allocation3 + $0x3a8] sm:$0xff]
    %v1627 = vld [vmem:[#allocation3 + $0x3b0] sm:$0xff]
    %v1628 = vld [vmem:[#allocation3 + $0x3b8] sm:$0xff]
    %v1629 = vld [vmem:[#allocation3 + $0x3c0] sm:$0xff]
    %v1630 = vld [vmem:[#allocation3 + $0x3c8] sm:$0xff]
    %v1631 = vld [vmem:[#allocation3 + $0x3d0] sm:$0xff]
    %v1632 = vld [vmem:[#allocation3 + $0x3d8] sm:$0xff]
    %v1633 = vld [vmem:[#allocation3 + $0x3e0] sm:$0xff]
    %v1634 = vld [vmem:[#allocation3 + $0x3e8] sm:$0xff]
    %v1635 = vld [vmem:[#allocation3 + $0x3f0] sm:$0xff]
    %v1636 = vld [vmem:[#allocation3 + $0x3f8] sm:$0xff]
    %v1637 = vld [vmem:[#allocation3 + $0x400] sm:$0xff]
    %v1638 = vld [vmem:[#allocation3 + $0x408] sm:$0xff]
    %v1639 = vld [vmem:[#allocation3 + $0x410] sm:$0xff]
    %v1640 = vld [vmem:[#allocation3 + $0x418] sm:$0xff]
    %v1641 = vld [vmem:[#allocation3 + $0x420] sm:$0xff]
    %v1642 = vld [vmem:[#allocation3 + $0x428] sm:$0xff]
    %v1643 = vld [vmem:[#allocation3 + $0x430] sm:$0xff]
    %v1644 = vld [vmem:[#allocation3 + $0x438] sm:$0xff]
    %v1645 = vld [vmem:[#allocation3 + $0x440] sm:$0xff]
    %v1646 = vld [vmem:[#allocation3 + $0x448] sm:$0xff]
    %v1647 = vld [vmem:[#allocation3 + $0x450] sm:$0xff]
    %v1648 = vld [vmem:[#allocation3 + $0x458] sm:$0xff]
    %v1649 = vld [vmem:[#allocation3 + $0x460] sm:$0xff]
    %v1650 = vld [vmem:[#allocation3 + $0x468] sm:$0xff]
    %v1651 = vld [vmem:[#allocation3 + $0x470] sm:$0xff]
    %v1652 = vld [vmem:[#allocation3 + $0x478] sm:$0xff]
    %v1653 = vld [vmem:[%s2] sm:$0xff]
    %v1654 = vld [vmem:[%s2 + $0x8] sm:$0xff]
    %v1655 = vld [vmem:[%s2 + $0x10] sm:$0xff]
    %v1656 = vld [vmem:[%s2 + $0x18] sm:$0xff]
    %1658 = vset.pattern.permute.xlu0 0
    %1659 = vperm.xlu0 %1658, %v1653
    %v1660 = vpop.permute.xlu0 %1659
    %1663 = vset.pattern.permute.xlu0 0
    %1664 = vperm.xlu0 %1663, %v1654
    %v1665 = vpop.permute.xlu0 %1664
    %1668 = vset.pattern.permute.xlu0 0
    %1669 = vperm.xlu0 %1668, %v1655
    %v1670 = vpop.permute.xlu0 %1669
    %1673 = vset.pattern.permute.xlu0 0
    %1674 = vperm.xlu0 %1673, %v1656
    %v1675 = vpop.permute.xlu0 %1674
    %vm1677 = vcmask 261120
    %v1679 = vsel %vm1677, %v1499, 0
    %v1682 = vsel %vm1677, %v1502, 0
    %v1685 = vsel %vm1677, %v1505, 0
    %v1688 = vsel %vm1677, %v1508, 0
    %1690 = vmatpush.msra.mxu0 %v1569
    %1691 = vmatpush.msra.mxu0 %v1565
    %1692 = vmatpush.msra.mxu0 %v1561
    %1693 = vmatpush.msra.mxu0 %v1557
    %1694 = vmatpush.msra.mxu0 %v1553
    %1695 = vmatpush.msra.mxu0 %v1549
    %1696 = vmatpush.msra.mxu0 %v1545
    %1697 = vmatpush.msra.mxu0 %v1541
    %1698 = vmatpush.msra.mxu0 %v1537
    %1699 = vmatpush.msra.mxu0 %v1533
    %1700 = vmatpush.msra.mxu0 %v1529
    %1701 = vmatpush.msra.mxu0 %v1525
    %1702 = vmatpush.msra.mxu0 %v1521
    %1703 = vmatpush.msra.mxu0 %v1517
    %1704 = vmatpush.msra.mxu0 %v1513
    %1705 = vmatpush.msra.mxu0 %v1509
    %1706 = vmatmul.f32.gmra.mxu0 %v1497
    %v1707 = vpop.f32.mrf.mxu0
    %v1708 = vadd.f32 %v1660, %v1707
    %1709 = vmatmul.f32.gmra.mxu0 %v1500
    %v1710 = vpop.f32.mrf.mxu0
    %v1711 = vadd.f32 %v1665, %v1710
    %1712 = vmatmul.f32.gmra.mxu0 %v1503
    %v1713 = vpop.f32.mrf.mxu0
    %v1714 = vadd.f32 %v1670, %v1713
    %1715 = vmatmul.f32.gmra.mxu0 %v1506
    %v1716 = vpop.f32.mrf.mxu0
    %v1717 = vadd.f32 %v1675, %v1716
    %1718 = vdwg.mxu0
    %1719 = vmatpush.msra.mxu0 %v1633
    %1720 = vmatpush.msra.mxu0 %v1629
    %1721 = vmatpush.msra.mxu0 %v1625
    %1722 = vmatpush.msra.mxu0 %v1621
    %1723 = vmatpush.msra.mxu0 %v1617
    %1724 = vmatpush.msra.mxu0 %v1613
    %1725 = vmatpush.msra.mxu0 %v1609
    %1726 = vmatpush.msra.mxu0 %v1605
    %1727 = vmatpush.msra.mxu0 %v1601
    %1728 = vmatpush.msra.mxu0 %v1597
    %1729 = vmatpush.msra.mxu0 %v1593
    %1730 = vmatpush.msra.mxu0 %v1589
    %1731 = vmatpush.msra.mxu0 %v1585
    %1732 = vmatpush.msra.mxu0 %v1581
    %1733 = vmatpush.msra.mxu0 %v1577
    %1734 = vmatpush.msra.mxu0 %v1573
    %1735 = vmatmul.f32.gmra.mxu0 %v1498
    %v1736 = vpop.f32.mrf.mxu0
    %v1737 = vadd.f32 %v1708, %v1736
    %1738 = vmatmul.f32.gmra.mxu0 %v1501
    %v1739 = vpop.f32.mrf.mxu0
    %v1740 = vadd.f32 %v1711, %v1739
    %1741 = vmatmul.f32.gmra.mxu0 %v1504
    %v1742 = vpop.f32.mrf.mxu0
    %v1743 = vadd.f32 %v1714, %v1742
    %1744 = vmatmul.f32.gmra.mxu0 %v1507
    %v1745 = vpop.f32.mrf.mxu0
    %v1746 = vadd.f32 %v1717, %v1745
    %1747 = vdwg.mxu0
    %1748 = vmatpush.msra.mxu0 0.0
    %1749 = vmatpush.msra.mxu0 0.0
    %1750 = vmatpush.msra.mxu0 0.0
    %1751 = vmatpush.msra.mxu0 0.0
    %1752 = vmatpush.msra.mxu0 0.0
    %1753 = vmatpush.msra.mxu0 0.0
    %1754 = vmatpush.msra.mxu0 0.0
    %1755 = vmatpush.msra.mxu0 0.0
    %1756 = vmatpush.msra.mxu0 0.0
    %1757 = vmatpush.msra.mxu0 0.0
    %1758 = vmatpush.msra.mxu0 0.0
    %1759 = vmatpush.msra.mxu0 0.0
    %1760 = vmatpush.msra.mxu0 %v1649
    %1761 = vmatpush.msra.mxu0 %v1645
    %1762 = vmatpush.msra.mxu0 %v1641
    %1763 = vmatpush.msra.mxu0 %v1637
    %1764 = vmatmul.f32.gmra.mxu0 %v1679
    %v1765 = vpop.f32.mrf.mxu0
    %v1766 = vadd.f32 %v1737, %v1765
    %1767 = vmatmul.f32.gmra.mxu0 %v1682
    %v1768 = vpop.f32.mrf.mxu0
    %v1769 = vadd.f32 %v1740, %v1768
    %1770 = vmatmul.f32.gmra.mxu0 %v1685
    %v1771 = vpop.f32.mrf.mxu0
    %v1772 = vadd.f32 %v1743, %v1771
    %1773 = vmatmul.f32.gmra.mxu0 %v1688
    %v1774 = vpop.f32.mrf.mxu0
    %v1775 = vadd.f32 %v1746, %v1774
    %1776 = vdwg.mxu0
    %1777 = vmatpush.msra.mxu0 %v1570
    %1778 = vmatpush.msra.mxu0 %v1566
    %1779 = vmatpush.msra.mxu0 %v1562
    %1780 = vmatpush.msra.mxu0 %v1558
    %1781 = vmatpush.msra.mxu0 %v1554
    %1782 = vmatpush.msra.mxu0 %v1550
    %1783 = vmatpush.msra.mxu0 %v1546
    %1784 = vmatpush.msra.mxu0 %v1542
    %1785 = vmatpush.msra.mxu0 %v1538
    %1786 = vmatpush.msra.mxu0 %v1534
    %1787 = vmatpush.msra.mxu0 %v1530
    %1788 = vmatpush.msra.mxu0 %v1526
    %1789 = vmatpush.msra.mxu0 %v1522
    %1790 = vmatpush.msra.mxu0 %v1518
    %1791 = vmatpush.msra.mxu0 %v1514
    %1792 = vmatpush.msra.mxu0 %v1510
    %1793 = vmatmul.f32.gmra.mxu0 %v1497
    %v1794 = vpop.f32.mrf.mxu0
    %v1795 = vadd.f32 %v1660, %v1794
    %1796 = vmatmul.f32.gmra.mxu0 %v1500
    %v1797 = vpop.f32.mrf.mxu0
    %v1798 = vadd.f32 %v1665, %v1797
    %1799 = vmatmul.f32.gmra.mxu0 %v1503
    %v1800 = vpop.f32.mrf.mxu0
    %v1801 = vadd.f32 %v1670, %v1800
    %1802 = vmatmul.f32.gmra.mxu0 %v1506
    %v1803 = vpop.f32.mrf.mxu0
    %v1804 = vadd.f32 %v1675, %v1803
    %1805 = vdwg.mxu0
    %1806 = vmatpush.msra.mxu0 %v1634
    %1807 = vmatpush.msra.mxu0 %v1630
    %1808 = vmatpush.msra.mxu0 %v1626
    %1809 = vmatpush.msra.mxu0 %v1622
    %1810 = vmatpush.msra.mxu0 %v1618
    %1811 = vmatpush.msra.mxu0 %v1614
    %1812 = vmatpush.msra.mxu0 %v1610
    %1813 = vmatpush.msra.mxu0 %v1606
    %1814 = vmatpush.msra.mxu0 %v1602
    %1815 = vmatpush.msra.mxu0 %v1598
    %1816 = vmatpush.msra.mxu0 %v1594
    %1817 = vmatpush.msra.mxu0 %v1590
    %1818 = vmatpush.msra.mxu0 %v1586
    %1819 = vmatpush.msra.mxu0 %v1582
    %1820 = vmatpush.msra.mxu0 %v1578
    %1821 = vmatpush.msra.mxu0 %v1574
    %1822 = vmatmul.f32.gmra.mxu0 %v1498
    %v1823 = vpop.f32.mrf.mxu0
    %v1824 = vadd.f32 %v1795, %v1823
    %1825 = vmatmul.f32.gmra.mxu0 %v1501
    %v1826 = vpop.f32.mrf.mxu0
    %v1827 = vadd.f32 %v1798, %v1826
    %1828 = vmatmul.f32.gmra.mxu0 %v1504
    %v1829 = vpop.f32.mrf.mxu0
    %v1830 = vadd.f32 %v1801, %v1829
    %1831 = vmatmul.f32.gmra.mxu0 %v1507
    %v1832 = vpop.f32.mrf.mxu0
    %v1833 = vadd.f32 %v1804, %v1832
    %1834 = vdwg.mxu0
    %1835 = vmatpush.msra.mxu0 0.0
    %1836 = vmatpush.msra.mxu0 0.0
    %1837 = vmatpush.msra.mxu0 0.0
    %1838 = vmatpush.msra.mxu0 0.0
    %1839 = vmatpush.msra.mxu0 0.0
    %1840 = vmatpush.msra.mxu0 0.0
    %1841 = vmatpush.msra.mxu0 0.0
    %1842 = vmatpush.msra.mxu0 0.0
    %1843 = vmatpush.msra.mxu0 0.0
    %1844 = vmatpush.msra.mxu0 0.0
    %1845 = vmatpush.msra.mxu0 0.0
    %1846 = vmatpush.msra.mxu0 0.0
    %1847 = vmatpush.msra.mxu0 %v1650
    %1848 = vmatpush.msra.mxu0 %v1646
    %1849 = vmatpush.msra.mxu0 %v1642
    %1850 = vmatpush.msra.mxu0 %v1638
    %1851 = vmatmul.f32.gmra.mxu0 %v1679
    %v1852 = vpop.f32.mrf.mxu0
    %v1853 = vadd.f32 %v1824, %v1852
    %1854 = vmatmul.f32.gmra.mxu0 %v1682
    %v1855 = vpop.f32.mrf.mxu0
    %v1856 = vadd.f32 %v1827, %v1855
    %1857 = vmatmul.f32.gmra.mxu0 %v1685
    %v1858 = vpop.f32.mrf.mxu0
    %v1859 = vadd.f32 %v1830, %v1858
    %1860 = vmatmul.f32.gmra.mxu0 %v1688
    %v1861 = vpop.f32.mrf.mxu0
    %v1862 = vadd.f32 %v1833, %v1861
    %1863 = vdwg.mxu0
    %1864 = vmatpush.msra.mxu0 %v1571
    %1865 = vmatpush.msra.mxu0 %v1567
    %1866 = vmatpush.msra.mxu0 %v1563
    %1867 = vmatpush.msra.mxu0 %v1559
    %1868 = vmatpush.msra.mxu0 %v1555
    %1869 = vmatpush.msra.mxu0 %v1551
    %1870 = vmatpush.msra.mxu0 %v1547
    %1871 = vmatpush.msra.mxu0 %v1543
    %1872 = vmatpush.msra.mxu0 %v1539
    %1873 = vmatpush.msra.mxu0 %v1535
    %1874 = vmatpush.msra.mxu0 %v1531
    %1875 = vmatpush.msra.mxu0 %v1527
    %1876 = vmatpush.msra.mxu0 %v1523
    %1877 = vmatpush.msra.mxu0 %v1519
    %1878 = vmatpush.msra.mxu0 %v1515
    %1879 = vmatpush.msra.mxu0 %v1511
    %1880 = vmatmul.f32.gmra.mxu0 %v1497
    %v1881 = vpop.f32.mrf.mxu0
    %v1882 = vadd.f32 %v1660, %v1881
    %1883 = vmatmul.f32.gmra.mxu0 %v1500
    %v1884 = vpop.f32.mrf.mxu0
    %v1885 = vadd.f32 %v1665, %v1884
    %1886 = vmatmul.f32.gmra.mxu0 %v1503
    %v1887 = vpop.f32.mrf.mxu0
    %v1888 = vadd.f32 %v1670, %v1887
    %1889 = vmatmul.f32.gmra.mxu0 %v1506
    %v1890 = vpop.f32.mrf.mxu0
    %v1891 = vadd.f32 %v1675, %v1890
    %1892 = vdwg.mxu0
    %1893 = vmatpush.msra.mxu0 %v1635
    %1894 = vmatpush.msra.mxu0 %v1631
    %1895 = vmatpush.msra.mxu0 %v1627
    %1896 = vmatpush.msra.mxu0 %v1623
    %1897 = vmatpush.msra.mxu0 %v1619
    %1898 = vmatpush.msra.mxu0 %v1615
    %1899 = vmatpush.msra.mxu0 %v1611
    %1900 = vmatpush.msra.mxu0 %v1607
    %1901 = vmatpush.msra.mxu0 %v1603
    %1902 = vmatpush.msra.mxu0 %v1599
    %1903 = vmatpush.msra.mxu0 %v1595
    %1904 = vmatpush.msra.mxu0 %v1591
    %1905 = vmatpush.msra.mxu0 %v1587
    %1906 = vmatpush.msra.mxu0 %v1583
    %1907 = vmatpush.msra.mxu0 %v1579
    %1908 = vmatpush.msra.mxu0 %v1575
    %1909 = vmatmul.f32.gmra.mxu0 %v1498
    %v1910 = vpop.f32.mrf.mxu0
    %v1911 = vadd.f32 %v1882, %v1910
    %1912 = vmatmul.f32.gmra.mxu0 %v1501
    %v1913 = vpop.f32.mrf.mxu0
    %v1914 = vadd.f32 %v1885, %v1913
    %1915 = vmatmul.f32.gmra.mxu0 %v1504
    %v1916 = vpop.f32.mrf.mxu0
    %v1917 = vadd.f32 %v1888, %v1916
    %1918 = vmatmul.f32.gmra.mxu0 %v1507
    %v1919 = vpop.f32.mrf.mxu0
    %v1920 = vadd.f32 %v1891, %v1919
    %1921 = vdwg.mxu0
    %1922 = vmatpush.msra.mxu0 0.0
    %1923 = vmatpush.msra.mxu0 0.0
    %1924 = vmatpush.msra.mxu0 0.0
    %1925 = vmatpush.msra.mxu0 0.0
    %1926 = vmatpush.msra.mxu0 0.0
    %1927 = vmatpush.msra.mxu0 0.0
    %1928 = vmatpush.msra.mxu0 0.0
    %1929 = vmatpush.msra.mxu0 0.0
    %1930 = vmatpush.msra.mxu0 0.0
    %1931 = vmatpush.msra.mxu0 0.0
    %1932 = vmatpush.msra.mxu0 0.0
    %1933 = vmatpush.msra.mxu0 0.0
    %1934 = vmatpush.msra.mxu0 %v1651
    %1935 = vmatpush.msra.mxu0 %v1647
    %1936 = vmatpush.msra.mxu0 %v1643
    %1937 = vmatpush.msra.mxu0 %v1639
    %1938 = vmatmul.f32.gmra.mxu0 %v1679
    %v1939 = vpop.f32.mrf.mxu0
    %v1940 = vadd.f32 %v1911, %v1939
    %1941 = vmatmul.f32.gmra.mxu0 %v1682
    %v1942 = vpop.f32.mrf.mxu0
    %v1943 = vadd.f32 %v1914, %v1942
    %1944 = vmatmul.f32.gmra.mxu0 %v1685
    %v1945 = vpop.f32.mrf.mxu0
    %v1946 = vadd.f32 %v1917, %v1945
    %1947 = vmatmul.f32.gmra.mxu0 %v1688
    %v1948 = vpop.f32.mrf.mxu0
    %v1949 = vadd.f32 %v1920, %v1948
    %1950 = vdwg.mxu0
    %1951 = vmatpush.msra.mxu0 %v1572
    %1952 = vmatpush.msra.mxu0 %v1568
    %1953 = vmatpush.msra.mxu0 %v1564
    %1954 = vmatpush.msra.mxu0 %v1560
    %1955 = vmatpush.msra.mxu0 %v1556
    %1956 = vmatpush.msra.mxu0 %v1552
    %1957 = vmatpush.msra.mxu0 %v1548
    %1958 = vmatpush.msra.mxu0 %v1544
    %1959 = vmatpush.msra.mxu0 %v1540
    %1960 = vmatpush.msra.mxu0 %v1536
    %1961 = vmatpush.msra.mxu0 %v1532
    %1962 = vmatpush.msra.mxu0 %v1528
    %1963 = vmatpush.msra.mxu0 %v1524
    %1964 = vmatpush.msra.mxu0 %v1520
    %1965 = vmatpush.msra.mxu0 %v1516
    %1966 = vmatpush.msra.mxu0 %v1512
    %1967 = vmatmul.f32.gmra.mxu0 %v1497
    %v1968 = vpop.f32.mrf.mxu0
    %v1969 = vadd.f32 %v1660, %v1968
    %1970 = vmatmul.f32.gmra.mxu0 %v1500
    %v1971 = vpop.f32.mrf.mxu0
    %v1972 = vadd.f32 %v1665, %v1971
    %1973 = vmatmul.f32.gmra.mxu0 %v1503
    %v1974 = vpop.f32.mrf.mxu0
    %v1975 = vadd.f32 %v1670, %v1974
    %1976 = vmatmul.f32.gmra.mxu0 %v1506
    %v1977 = vpop.f32.mrf.mxu0
    %v1978 = vadd.f32 %v1675, %v1977
    %1979 = vdwg.mxu0
    %1980 = vmatpush.msra.mxu0 %v1636
    %1981 = vmatpush.msra.mxu0 %v1632
    %1982 = vmatpush.msra.mxu0 %v1628
    %1983 = vmatpush.msra.mxu0 %v1624
    %1984 = vmatpush.msra.mxu0 %v1620
    %1985 = vmatpush.msra.mxu0 %v1616
    %1986 = vmatpush.msra.mxu0 %v1612
    %1987 = vmatpush.msra.mxu0 %v1608
    %1988 = vmatpush.msra.mxu0 %v1604
    %1989 = vmatpush.msra.mxu0 %v1600
    %1990 = vmatpush.msra.mxu0 %v1596
    %1991 = vmatpush.msra.mxu0 %v1592
    %1992 = vmatpush.msra.mxu0 %v1588
    %1993 = vmatpush.msra.mxu0 %v1584
    %1994 = vmatpush.msra.mxu0 %v1580
    %1995 = vmatpush.msra.mxu0 %v1576
    %1996 = vmatmul.f32.gmra.mxu0 %v1498
    %v1997 = vpop.f32.mrf.mxu0
    %v1998 = vadd.f32 %v1969, %v1997
    %1999 = vmatmul.f32.gmra.mxu0 %v1501
    %v2000 = vpop.f32.mrf.mxu0
    %v2001 = vadd.f32 %v1972, %v2000
    %2002 = vmatmul.f32.gmra.mxu0 %v1504
    %v2003 = vpop.f32.mrf.mxu0
    %v2004 = vadd.f32 %v1975, %v2003
    %2005 = vmatmul.f32.gmra.mxu0 %v1507
    %v2006 = vpop.f32.mrf.mxu0
    %v2007 = vadd.f32 %v1978, %v2006
    %2008 = vdwg.mxu0
    %2009 = vmatpush.msra.mxu0 0.0
    %2010 = vmatpush.msra.mxu0 0.0
    %2011 = vmatpush.msra.mxu0 0.0
    %2012 = vmatpush.msra.mxu0 0.0
    %2013 = vmatpush.msra.mxu0 0.0
    %2014 = vmatpush.msra.mxu0 0.0
    %2015 = vmatpush.msra.mxu0 0.0
    %2016 = vmatpush.msra.mxu0 0.0
    %2017 = vmatpush.msra.mxu0 0.0
    %2018 = vmatpush.msra.mxu0 0.0
    %2019 = vmatpush.msra.mxu0 0.0
    %2020 = vmatpush.msra.mxu0 0.0
    %2021 = vmatpush.msra.mxu0 %v1652
    %2022 = vmatpush.msra.mxu0 %v1648
    %2023 = vmatpush.msra.mxu0 %v1644
    %2024 = vmatpush.msra.mxu0 %v1640
    %2025 = vmatmul.f32.gmra.mxu0 %v1679
    %v2026 = vpop.f32.mrf.mxu0
    %v2027 = vadd.f32 %v1998, %v2026
    %2028 = vmatmul.f32.gmra.mxu0 %v1682
    %v2029 = vpop.f32.mrf.mxu0
    %v2030 = vadd.f32 %v2001, %v2029
    %2031 = vmatmul.f32.gmra.mxu0 %v1685
    %v2032 = vpop.f32.mrf.mxu0
    %v2033 = vadd.f32 %v2004, %v2032
    %2034 = vmatmul.f32.gmra.mxu0 %v1688
    %v2035 = vpop.f32.mrf.mxu0
    %v2036 = vadd.f32 %v2007, %v2035
    %2037 = vdwg.mxu0
    %v2038 = vmax.f32 %v1766, 0.0
    %v2039 = vmax.f32 %v1853, 0.0
    %v2040 = vmax.f32 %v1940, 0.0
    %v2041 = vmax.f32 %v2027, 0.0
    %v2042 = vmax.f32 %v1769, 0.0
    %v2043 = vmax.f32 %v1856, 0.0
    %v2044 = vmax.f32 %v1943, 0.0
    %v2045 = vmax.f32 %v2030, 0.0
    %v2046 = vmax.f32 %v1772, 0.0
    %v2047 = vmax.f32 %v1859, 0.0
    %v2048 = vmax.f32 %v1946, 0.0
    %v2049 = vmax.f32 %v2033, 0.0
    %v2050 = vmax.f32 %v1775, 0.0
    %v2051 = vmax.f32 %v1862, 0.0
    %v2052 = vmax.f32 %v1949, 0.0
    %v2053 = vmax.f32 %v2036, 0.0
    %2054 = vst [vmem:[#allocation2 + $0x8] sm:$0xff] %v2038
    %2055 = vst [vmem:[#allocation2 + $0x10] sm:$0xff] %v2039
    %2056 = vst [vmem:[#allocation2 + $0x48] sm:$0xff] %v2042
    %2057 = vst [vmem:[#allocation2 + $0x50] sm:$0xff] %v2043
    %2058 = vst [vmem:[#allocation2 + $0x88] sm:$0xff] %v2046
    %2059 = vst [vmem:[#allocation2 + $0x90] sm:$0xff] %v2047
    %2060 = vst [vmem:[#allocation2 + $0xc8] sm:$0xff] %v2050
    %2061 = vst [vmem:[#allocation2 + $0xd0] sm:$0xff] %v2051
    %2062 = vst [vmem:[#allocation2 + $0x28] sm:$0xff] %v2040
    %2063 = vst [vmem:[#allocation2 + $0x30] sm:$0xff] %v2041
    %2064 = vst [vmem:[#allocation2 + $0x68] sm:$0xff] %v2044
    %2065 = vst [vmem:[#allocation2 + $0x70] sm:$0xff] %v2045
    %2066 = vst [vmem:[#allocation2 + $0xa8] sm:$0xff] %v2048
    %2067 = vst [vmem:[#allocation2 + $0xb0] sm:$0xff] %v2049
    %2068 = vst [vmem:[#allocation2 + $0xe8] sm:$0xff] %v2052
    %2069 = vst [vmem:[#allocation2 + $0xf0] sm:$0xff] %v2053
    %v2070 = vld [vmem:[#allocation2] sm:$0xff]
    %v2071 = vld [vmem:[#allocation2 + $0x8] sm:$0xff]
    %v2072 = vld [vmem:[#allocation2 + $0x10] sm:$0xff]
    %v2073 = vld [vmem:[#allocation2 + $0x40] sm:$0xff]
    %v2074 = vld [vmem:[#allocation2 + $0x48] sm:$0xff]
    %v2075 = vld [vmem:[#allocation2 + $0x50] sm:$0xff]
    %v2076 = vld [vmem:[#allocation2 + $0x80] sm:$0xff]
    %v2077 = vld [vmem:[#allocation2 + $0x88] sm:$0xff]
    %v2078 = vld [vmem:[#allocation2 + $0x90] sm:$0xff]
    %v2079 = vld [vmem:[#allocation2 + $0xc0] sm:$0xff]
    %v2080 = vld [vmem:[#allocation2 + $0xc8] sm:$0xff]
    %v2081 = vld [vmem:[#allocation2 + $0xd0] sm:$0xff]
    %2094 = vrot.lane.b32.xlu0 %v2070, 17
    %v2095 = vpop.permute.xlu0 %2094
    %2096 = vrot.lane.b32.xlu0 %v2071, 17
    %v2097 = vpop.permute.xlu0 %2096
    %2098 = vrot.lane.b32.xlu0 %v2072, 17
    %v2099 = vpop.permute.xlu0 %2098
    %2100 = vrot.lane.b32.xlu0 %v2073, 17
    %v2101 = vpop.permute.xlu0 %2100
    %2102 = vrot.lane.b32.xlu0 %v2074, 17
    %v2103 = vpop.permute.xlu0 %2102
    %2104 = vrot.lane.b32.xlu0 %v2075, 17
    %v2105 = vpop.permute.xlu0 %2104
    %2106 = vrot.lane.b32.xlu0 %v2076, 17
    %v2107 = vpop.permute.xlu0 %2106
    %2108 = vrot.lane.b32.xlu0 %v2077, 17
    %v2109 = vpop.permute.xlu0 %2108
    %2110 = vrot.lane.b32.xlu0 %v2078, 17
    %v2111 = vpop.permute.xlu0 %2110
    %2112 = vrot.lane.b32.xlu0 %v2079, 17
    %v2113 = vpop.permute.xlu0 %2112
    %2114 = vrot.lane.b32.xlu0 %v2080, 17
    %v2115 = vpop.permute.xlu0 %2114
    %2116 = vrot.lane.b32.xlu0 %v2081, 17
    %v2117 = vpop.permute.xlu0 %2116
    %v2118 = vsel %vm257, %v2095, %v2097
    %v2119 = vsel %vm257, %v2097, %v2099
    %v2120 = vsel %vm257, %v2101, %v2103
    %v2121 = vsel %vm257, %v2103, %v2105
    %v2122 = vsel %vm257, %v2107, %v2109
    %v2123 = vsel %vm257, %v2109, %v2111
    %v2124 = vsel %vm257, %v2113, %v2115
    %v2125 = vsel %vm257, %v2115, %v2117
    %v2134 = vsel %vm195, 0.0, %v2118
    %v2135 = vsel %vm196, 0.0, %v2119
    %v2136 = vsel %vm195, 0.0, %v2120
    %v2137 = vsel %vm196, 0.0, %v2121
    %v2138 = vsel %vm195, 0.0, %v2122
    %v2139 = vsel %vm196, 0.0, %v2123
    %v2140 = vsel %vm195, 0.0, %v2124
    %v2141 = vsel %vm196, 0.0, %v2125
    %2142 = vst [vmem:[#allocation3] sm:$0xff] %v2134
    %2143 = vst [vmem:[#allocation3 + $0x8] sm:$0xff] %v2135
    %2144 = vst [vmem:[#allocation3 + $0x20] sm:$0xff] %v2136
    %2145 = vst [vmem:[#allocation3 + $0x28] sm:$0xff] %v2137
    %2146 = vst [vmem:[#allocation3 + $0x40] sm:$0xff] %v2138
    %2147 = vst [vmem:[#allocation3 + $0x48] sm:$0xff] %v2139
    %2148 = vst [vmem:[#allocation3 + $0x60] sm:$0xff] %v2140
    %2149 = vst [vmem:[#allocation3 + $0x68] sm:$0xff] %v2141
    %v2150 = vld [vmem:[#allocation2 + $0x20] sm:$0xff]
    %v2151 = vld [vmem:[#allocation2 + $0x28] sm:$0xff]
    %v2152 = vld [vmem:[#allocation2 + $0x30] sm:$0xff]
    %v2153 = vld [vmem:[#allocation2 + $0x60] sm:$0xff]
    %v2154 = vld [vmem:[#allocation2 + $0x68] sm:$0xff]
    %v2155 = vld [vmem:[#allocation2 + $0x70] sm:$0xff]
    %v2156 = vld [vmem:[#allocation2 + $0xa0] sm:$0xff]
    %v2157 = vld [vmem:[#allocation2 + $0xa8] sm:$0xff]
    %v2158 = vld [vmem:[#allocation2 + $0xb0] sm:$0xff]
    %v2159 = vld [vmem:[#allocation2 + $0xe0] sm:$0xff]
    %v2160 = vld [vmem:[#allocation2 + $0xe8] sm:$0xff]
    %v2161 = vld [vmem:[#allocation2 + $0xf0] sm:$0xff]
    %2174 = vrot.lane.b32.xlu0 %v2150, 17
    %v2175 = vpop.permute.xlu0 %2174
    %2176 = vrot.lane.b32.xlu0 %v2151, 17
    %v2177 = vpop.permute.xlu0 %2176
    %2178 = vrot.lane.b32.xlu0 %v2152, 17
    %v2179 = vpop.permute.xlu0 %2178
    %2180 = vrot.lane.b32.xlu0 %v2153, 17
    %v2181 = vpop.permute.xlu0 %2180
    %2182 = vrot.lane.b32.xlu0 %v2154, 17
    %v2183 = vpop.permute.xlu0 %2182
    %2184 = vrot.lane.b32.xlu0 %v2155, 17
    %v2185 = vpop.permute.xlu0 %2184
    %2186 = vrot.lane.b32.xlu0 %v2156, 17
    %v2187 = vpop.permute.xlu0 %2186
    %2188 = vrot.lane.b32.xlu0 %v2157, 17
    %v2189 = vpop.permute.xlu0 %2188
    %2190 = vrot.lane.b32.xlu0 %v2158, 17
    %v2191 = vpop.permute.xlu0 %2190
    %2192 = vrot.lane.b32.xlu0 %v2159, 17
    %v2193 = vpop.permute.xlu0 %2192
    %2194 = vrot.lane.b32.xlu0 %v2160, 17
    %v2195 = vpop.permute.xlu0 %2194
    %2196 = vrot.lane.b32.xlu0 %v2161, 17
    %v2197 = vpop.permute.xlu0 %2196
    %v2198 = vsel %vm257, %v2175, %v2177
    %v2199 = vsel %vm257, %v2177, %v2179
    %v2200 = vsel %vm257, %v2181, %v2183
    %v2201 = vsel %vm257, %v2183, %v2185
    %v2202 = vsel %vm257, %v2187, %v2189
    %v2203 = vsel %vm257, %v2189, %v2191
    %v2204 = vsel %vm257, %v2193, %v2195
    %v2205 = vsel %vm257, %v2195, %v2197
    %v2214 = vsel %vm195, 0.0, %v2198
    %v2215 = vsel %vm196, 0.0, %v2199
    %v2216 = vsel %vm195, 0.0, %v2200
    %v2217 = vsel %vm196, 0.0, %v2201
    %v2218 = vsel %vm195, 0.0, %v2202
    %v2219 = vsel %vm196, 0.0, %v2203
    %v2220 = vsel %vm195, 0.0, %v2204
    %v2221 = vsel %vm196, 0.0, %v2205
    %2222 = vst [vmem:[#allocation3 + $0x10] sm:$0xff] %v2214
    %2223 = vst [vmem:[#allocation3 + $0x18] sm:$0xff] %v2215
    %2224 = vst [vmem:[#allocation3 + $0x30] sm:$0xff] %v2216
    %2225 = vst [vmem:[#allocation3 + $0x38] sm:$0xff] %v2217
    %2226 = vst [vmem:[#allocation3 + $0x50] sm:$0xff] %v2218
    %2227 = vst [vmem:[#allocation3 + $0x58] sm:$0xff] %v2219
    %2228 = vst [vmem:[#allocation3 + $0x70] sm:$0xff] %v2220
    %2229 = vst [vmem:[#allocation3 + $0x78] sm:$0xff] %v2221
    %v2230 = vld [vmem:[#allocation2] sm:$0xff]
    %v2231 = vld [vmem:[#allocation2 + $0x8] sm:$0xff]
    %v2232 = vld [vmem:[#allocation2 + $0x10] sm:$0xff]
    %v2233 = vld [vmem:[#allocation2 + $0x40] sm:$0xff]
    %v2234 = vld [vmem:[#allocation2 + $0x48] sm:$0xff]
    %v2235 = vld [vmem:[#allocation2 + $0x50] sm:$0xff]
    %v2236 = vld [vmem:[#allocation2 + $0x80] sm:$0xff]
    %v2237 = vld [vmem:[#allocation2 + $0x88] sm:$0xff]
    %v2238 = vld [vmem:[#allocation2 + $0x90] sm:$0xff]
    %v2239 = vld [vmem:[#allocation2 + $0xc0] sm:$0xff]
    %v2240 = vld [vmem:[#allocation2 + $0xc8] sm:$0xff]
    %v2241 = vld [vmem:[#allocation2 + $0xd0] sm:$0xff]
    %2254 = vrot.lane.b32.xlu0 %v2230, 16
    %v2255 = vpop.permute.xlu0 %2254
    %2256 = vrot.lane.b32.xlu0 %v2231, 16
    %v2257 = vpop.permute.xlu0 %2256
    %2258 = vrot.lane.b32.xlu0 %v2232, 16
    %v2259 = vpop.permute.xlu0 %2258
    %2260 = vrot.lane.b32.xlu0 %v2233, 16
    %v2261 = vpop.permute.xlu0 %2260
    %2262 = vrot.lane.b32.xlu0 %v2234, 16
    %v2263 = vpop.permute.xlu0 %2262
    %2264 = vrot.lane.b32.xlu0 %v2235, 16
    %v2265 = vpop.permute.xlu0 %2264
    %2266 = vrot.lane.b32.xlu0 %v2236, 16
    %v2267 = vpop.permute.xlu0 %2266
    %2268 = vrot.lane.b32.xlu0 %v2237, 16
    %v2269 = vpop.permute.xlu0 %2268
    %2270 = vrot.lane.b32.xlu0 %v2238, 16
    %v2271 = vpop.permute.xlu0 %2270
    %2272 = vrot.lane.b32.xlu0 %v2239, 16
    %v2273 = vpop.permute.xlu0 %2272
    %2274 = vrot.lane.b32.xlu0 %v2240, 16
    %v2275 = vpop.permute.xlu0 %2274
    %2276 = vrot.lane.b32.xlu0 %v2241, 16
    %v2277 = vpop.permute.xlu0 %2276
    %v2278 = vsel %vm418, %v2255, %v2257
    %v2279 = vsel %vm418, %v2257, %v2259
    %v2280 = vsel %vm418, %v2261, %v2263
    %v2281 = vsel %vm418, %v2263, %v2265
    %v2282 = vsel %vm418, %v2267, %v2269
    %v2283 = vsel %vm418, %v2269, %v2271
    %v2284 = vsel %vm418, %v2273, %v2275
    %v2285 = vsel %vm418, %v2275, %v2277
    %2294 = vst [vmem:[#allocation3 + $0x80] sm:$0xff] %v2278
    %2295 = vst [vmem:[#allocation3 + $0x88] sm:$0xff] %v2279
    %2296 = vst [vmem:[#allocation3 + $0xa0] sm:$0xff] %v2280
    %2297 = vst [vmem:[#allocation3 + $0xa8] sm:$0xff] %v2281
    %2298 = vst [vmem:[#allocation3 + $0xc0] sm:$0xff] %v2282
    %2299 = vst [vmem:[#allocation3 + $0xc8] sm:$0xff] %v2283
    %2300 = vst [vmem:[#allocation3 + $0xe0] sm:$0xff] %v2284
    %2301 = vst [vmem:[#allocation3 + $0xe8] sm:$0xff] %v2285
    %v2302 = vld [vmem:[#allocation2 + $0x20] sm:$0xff]
    %v2303 = vld [vmem:[#allocation2 + $0x28] sm:$0xff]
    %v2304 = vld [vmem:[#allocation2 + $0x30] sm:$0xff]
    %v2305 = vld [vmem:[#allocation2 + $0x60] sm:$0xff]
    %v2306 = vld [vmem:[#allocation2 + $0x68] sm:$0xff]
    %v2307 = vld [vmem:[#allocation2 + $0x70] sm:$0xff]
    %v2308 = vld [vmem:[#allocation2 + $0xa0] sm:$0xff]
    %v2309 = vld [vmem:[#allocation2 + $0xa8] sm:$0xff]
    %v2310 = vld [vmem:[#allocation2 + $0xb0] sm:$0xff]
    %v2311 = vld [vmem:[#allocation2 + $0xe0] sm:$0xff]
    %v2312 = vld [vmem:[#allocation2 + $0xe8] sm:$0xff]
    %v2313 = vld [vmem:[#allocation2 + $0xf0] sm:$0xff]
    %2326 = vrot.lane.b32.xlu0 %v2302, 16
    %v2327 = vpop.permute.xlu0 %2326
    %2328 = vrot.lane.b32.xlu0 %v2303, 16
    %v2329 = vpop.permute.xlu0 %2328
    %2330 = vrot.lane.b32.xlu0 %v2304, 16
    %v2331 = vpop.permute.xlu0 %2330
    %2332 = vrot.lane.b32.xlu0 %v2305, 16
    %v2333 = vpop.permute.xlu0 %2332
    %2334 = vrot.lane.b32.xlu0 %v2306, 16
    %v2335 = vpop.permute.xlu0 %2334
    %2336 = vrot.lane.b32.xlu0 %v2307, 16
    %v2337 = vpop.permute.xlu0 %2336
    %2338 = vrot.lane.b32.xlu0 %v2308, 16
    %v2339 = vpop.permute.xlu0 %2338
    %2340 = vrot.lane.b32.xlu0 %v2309, 16
    %v2341 = vpop.permute.xlu0 %2340
    %2342 = vrot.lane.b32.xlu0 %v2310, 16
    %v2343 = vpop.permute.xlu0 %2342
    %2344 = vrot.lane.b32.xlu0 %v2311, 16
    %v2345 = vpop.permute.xlu0 %2344
    %2346 = vrot.lane.b32.xlu0 %v2312, 16
    %v2347 = vpop.permute.xlu0 %2346
    %2348 = vrot.lane.b32.xlu0 %v2313, 16
    %v2349 = vpop.permute.xlu0 %2348
    %v2350 = vsel %vm418, %v2327, %v2329
    %v2351 = vsel %vm418, %v2329, %v2331
    %v2352 = vsel %vm418, %v2333, %v2335
    %v2353 = vsel %vm418, %v2335, %v2337
    %v2354 = vsel %vm418, %v2339, %v2341
    %v2355 = vsel %vm418, %v2341, %v2343
    %v2356 = vsel %vm418, %v2345, %v2347
    %v2357 = vsel %vm418, %v2347, %v2349
    %2366 = vst [vmem:[#allocation3 + $0x90] sm:$0xff] %v2350
    %2367 = vst [vmem:[#allocation3 + $0x98] sm:$0xff] %v2351
    %2368 = vst [vmem:[#allocation3 + $0xb0] sm:$0xff] %v2352
    %2369 = vst [vmem:[#allocation3 + $0xb8] sm:$0xff] %v2353
    %2370 = vst [vmem:[#allocation3 + $0xd0] sm:$0xff] %v2354
    %2371 = vst [vmem:[#allocation3 + $0xd8] sm:$0xff] %v2355
    %2372 = vst [vmem:[#allocation3 + $0xf0] sm:$0xff] %v2356
    %2373 = vst [vmem:[#allocation3 + $0xf8] sm:$0xff] %v2357
    %v2374 = vld [vmem:[#allocation2] sm:$0xff]
    %v2375 = vld [vmem:[#allocation2 + $0x8] sm:$0xff]
    %v2376 = vld [vmem:[#allocation2 + $0x10] sm:$0xff]
    %v2377 = vld [vmem:[#allocation2 + $0x40] sm:$0xff]
    %v2378 = vld [vmem:[#allocation2 + $0x48] sm:$0xff]
    %v2379 = vld [vmem:[#allocation2 + $0x50] sm:$0xff]
    %v2380 = vld [vmem:[#allocation2 + $0x80] sm:$0xff]
    %v2381 = vld [vmem:[#allocation2 + $0x88] sm:$0xff]
    %v2382 = vld [vmem:[#allocation2 + $0x90] sm:$0xff]
    %v2383 = vld [vmem:[#allocation2 + $0xc0] sm:$0xff]
    %v2384 = vld [vmem:[#allocation2 + $0xc8] sm:$0xff]
    %v2385 = vld [vmem:[#allocation2 + $0xd0] sm:$0xff]
    %2398 = vrot.lane.b32.xlu0 %v2374, 15
    %v2399 = vpop.permute.xlu0 %2398
    %2400 = vrot.lane.b32.xlu0 %v2375, 15
    %v2401 = vpop.permute.xlu0 %2400
    %2402 = vrot.lane.b32.xlu0 %v2376, 15
    %v2403 = vpop.permute.xlu0 %2402
    %2404 = vrot.lane.b32.xlu0 %v2377, 15
    %v2405 = vpop.permute.xlu0 %2404
    %2406 = vrot.lane.b32.xlu0 %v2378, 15
    %v2407 = vpop.permute.xlu0 %2406
    %2408 = vrot.lane.b32.xlu0 %v2379, 15
    %v2409 = vpop.permute.xlu0 %2408
    %2410 = vrot.lane.b32.xlu0 %v2380, 15
    %v2411 = vpop.permute.xlu0 %2410
    %2412 = vrot.lane.b32.xlu0 %v2381, 15
    %v2413 = vpop.permute.xlu0 %2412
    %2414 = vrot.lane.b32.xlu0 %v2382, 15
    %v2415 = vpop.permute.xlu0 %2414
    %2416 = vrot.lane.b32.xlu0 %v2383, 15
    %v2417 = vpop.permute.xlu0 %2416
    %2418 = vrot.lane.b32.xlu0 %v2384, 15
    %v2419 = vpop.permute.xlu0 %2418
    %2420 = vrot.lane.b32.xlu0 %v2385, 15
    %v2421 = vpop.permute.xlu0 %2420
    %v2422 = vsel %vm563, %v2399, %v2401
    %v2423 = vsel %vm563, %v2401, %v2403
    %v2424 = vsel %vm563, %v2405, %v2407
    %v2425 = vsel %vm563, %v2407, %v2409
    %v2426 = vsel %vm563, %v2411, %v2413
    %v2427 = vsel %vm563, %v2413, %v2415
    %v2428 = vsel %vm563, %v2417, %v2419
    %v2429 = vsel %vm563, %v2419, %v2421
    %v2438 = vsel %vm201, 0.0, %v2422
    %v2439 = vsel %vm202, 0.0, %v2423
    %v2440 = vsel %vm201, 0.0, %v2424
    %v2441 = vsel %vm202, 0.0, %v2425
    %v2442 = vsel %vm201, 0.0, %v2426
    %v2443 = vsel %vm202, 0.0, %v2427
    %v2444 = vsel %vm201, 0.0, %v2428
    %v2445 = vsel %vm202, 0.0, %v2429
    %2446 = vst [vmem:[#allocation3 + $0x100] sm:$0xff] %v2438
    %2447 = vst [vmem:[#allocation3 + $0x108] sm:$0xff] %v2439
    %2448 = vst [vmem:[#allocation3 + $0x120] sm:$0xff] %v2440
    %2449 = vst [vmem:[#allocation3 + $0x128] sm:$0xff] %v2441
    %2450 = vst [vmem:[#allocation3 + $0x140] sm:$0xff] %v2442
    %2451 = vst [vmem:[#allocation3 + $0x148] sm:$0xff] %v2443
    %2452 = vst [vmem:[#allocation3 + $0x160] sm:$0xff] %v2444
    %2453 = vst [vmem:[#allocation3 + $0x168] sm:$0xff] %v2445
    %v2454 = vld [vmem:[#allocation2 + $0x20] sm:$0xff]
    %v2455 = vld [vmem:[#allocation2 + $0x28] sm:$0xff]
    %v2456 = vld [vmem:[#allocation2 + $0x30] sm:$0xff]
    %v2457 = vld [vmem:[#allocation2 + $0x60] sm:$0xff]
    %v2458 = vld [vmem:[#allocation2 + $0x68] sm:$0xff]
    %v2459 = vld [vmem:[#allocation2 + $0x70] sm:$0xff]
    %v2460 = vld [vmem:[#allocation2 + $0xa0] sm:$0xff]
    %v2461 = vld [vmem:[#allocation2 + $0xa8] sm:$0xff]
    %v2462 = vld [vmem:[#allocation2 + $0xb0] sm:$0xff]
    %v2463 = vld [vmem:[#allocation2 + $0xe0] sm:$0xff]
    %v2464 = vld [vmem:[#allocation2 + $0xe8] sm:$0xff]
    %v2465 = vld [vmem:[#allocation2 + $0xf0] sm:$0xff]
    %2478 = vrot.lane.b32.xlu0 %v2454, 15
    %v2479 = vpop.permute.xlu0 %2478
    %2480 = vrot.lane.b32.xlu0 %v2455, 15
    %v2481 = vpop.permute.xlu0 %2480
    %2482 = vrot.lane.b32.xlu0 %v2456, 15
    %v2483 = vpop.permute.xlu0 %2482
    %2484 = vrot.lane.b32.xlu0 %v2457, 15
    %v2485 = vpop.permute.xlu0 %2484
    %2486 = vrot.lane.b32.xlu0 %v2458, 15
    %v2487 = vpop.permute.xlu0 %2486
    %2488 = vrot.lane.b32.xlu0 %v2459, 15
    %v2489 = vpop.permute.xlu0 %2488
    %2490 = vrot.lane.b32.xlu0 %v2460, 15
    %v2491 = vpop.permute.xlu0 %2490
    %2492 = vrot.lane.b32.xlu0 %v2461, 15
    %v2493 = vpop.permute.xlu0 %2492
    %2494 = vrot.lane.b32.xlu0 %v2462, 15
    %v2495 = vpop.permute.xlu0 %2494
    %2496 = vrot.lane.b32.xlu0 %v2463, 15
    %v2497 = vpop.permute.xlu0 %2496
    %2498 = vrot.lane.b32.xlu0 %v2464, 15
    %v2499 = vpop.permute.xlu0 %2498
    %2500 = vrot.lane.b32.xlu0 %v2465, 15
    %v2501 = vpop.permute.xlu0 %2500
    %v2502 = vsel %vm563, %v2479, %v2481
    %v2503 = vsel %vm563, %v2481, %v2483
    %v2504 = vsel %vm563, %v2485, %v2487
    %v2505 = vsel %vm563, %v2487, %v2489
    %v2506 = vsel %vm563, %v2491, %v2493
    %v2507 = vsel %vm563, %v2493, %v2495
    %v2508 = vsel %vm563, %v2497, %v2499
    %v2509 = vsel %vm563, %v2499, %v2501
    %v2518 = vsel %vm201, 0.0, %v2502
    %v2519 = vsel %vm202, 0.0, %v2503
    %v2520 = vsel %vm201, 0.0, %v2504
    %v2521 = vsel %vm202, 0.0, %v2505
    %v2522 = vsel %vm201, 0.0, %v2506
    %v2523 = vsel %vm202, 0.0, %v2507
    %v2524 = vsel %vm201, 0.0, %v2508
    %v2525 = vsel %vm202, 0.0, %v2509
    %2526 = vst [vmem:[#allocation3 + $0x110] sm:$0xff] %v2518
    %2527 = vst [vmem:[#allocation3 + $0x118] sm:$0xff] %v2519
    %2528 = vst [vmem:[#allocation3 + $0x130] sm:$0xff] %v2520
    %2529 = vst [vmem:[#allocation3 + $0x138] sm:$0xff] %v2521
    %2530 = vst [vmem:[#allocation3 + $0x150] sm:$0xff] %v2522
    %2531 = vst [vmem:[#allocation3 + $0x158] sm:$0xff] %v2523
    %2532 = vst [vmem:[#allocation3 + $0x170] sm:$0xff] %v2524
    %2533 = vst [vmem:[#allocation3 + $0x178] sm:$0xff] %v2525
    %v2534 = vld [vmem:[#allocation2] sm:$0xff]
    %v2535 = vld [vmem:[#allocation2 + $0x8] sm:$0xff]
    %v2536 = vld [vmem:[#allocation2 + $0x10] sm:$0xff]
    %v2537 = vld [vmem:[#allocation2 + $0x40] sm:$0xff]
    %v2538 = vld [vmem:[#allocation2 + $0x48] sm:$0xff]
    %v2539 = vld [vmem:[#allocation2 + $0x50] sm:$0xff]
    %v2540 = vld [vmem:[#allocation2 + $0x80] sm:$0xff]
    %v2541 = vld [vmem:[#allocation2 + $0x88] sm:$0xff]
    %v2542 = vld [vmem:[#allocation2 + $0x90] sm:$0xff]
    %v2543 = vld [vmem:[#allocation2 + $0xc0] sm:$0xff]
    %v2544 = vld [vmem:[#allocation2 + $0xc8] sm:$0xff]
    %v2545 = vld [vmem:[#allocation2 + $0xd0] sm:$0xff]
    %2558 = vrot.lane.b32.xlu0 %v2534, 1
    %v2559 = vpop.permute.xlu0 %2558
    %2560 = vrot.lane.b32.xlu0 %v2535, 1
    %v2561 = vpop.permute.xlu0 %2560
    %2562 = vrot.lane.b32.xlu0 %v2536, 1
    %v2563 = vpop.permute.xlu0 %2562
    %2564 = vrot.lane.b32.xlu0 %v2537, 1
    %v2565 = vpop.permute.xlu0 %2564
    %2566 = vrot.lane.b32.xlu0 %v2538, 1
    %v2567 = vpop.permute.xlu0 %2566
    %2568 = vrot.lane.b32.xlu0 %v2539, 1
    %v2569 = vpop.permute.xlu0 %2568
    %2570 = vrot.lane.b32.xlu0 %v2540, 1
    %v2571 = vpop.permute.xlu0 %2570
    %2572 = vrot.lane.b32.xlu0 %v2541, 1
    %v2573 = vpop.permute.xlu0 %2572
    %2574 = vrot.lane.b32.xlu0 %v2542, 1
    %v2575 = vpop.permute.xlu0 %2574
    %2576 = vrot.lane.b32.xlu0 %v2543, 1
    %v2577 = vpop.permute.xlu0 %2576
    %2578 = vrot.lane.b32.xlu0 %v2544, 1
    %v2579 = vpop.permute.xlu0 %2578
    %2580 = vrot.lane.b32.xlu0 %v2545, 1
    %v2581 = vpop.permute.xlu0 %2580
    %v2582 = vsel %vm724, %v2559, %v2561
    %v2583 = vsel %vm724, %v2561, %v2563
    %v2584 = vsel %vm724, %v2565, %v2567
    %v2585 = vsel %vm724, %v2567, %v2569
    %v2586 = vsel %vm724, %v2571, %v2573
    %v2587 = vsel %vm724, %v2573, %v2575
    %v2588 = vsel %vm724, %v2577, %v2579
    %v2589 = vsel %vm724, %v2579, %v2581
    %v2598 = vsel %vm195, 0.0, %v2582
    %v2599 = vsel %vm196, 0.0, %v2583
    %v2600 = vsel %vm195, 0.0, %v2584
    %v2601 = vsel %vm196, 0.0, %v2585
    %v2602 = vsel %vm195, 0.0, %v2586
    %v2603 = vsel %vm196, 0.0, %v2587
    %v2604 = vsel %vm195, 0.0, %v2588
    %v2605 = vsel %vm196, 0.0, %v2589
    %2606 = vst [vmem:[#allocation3 + $0x180] sm:$0xff] %v2598
    %2607 = vst [vmem:[#allocation3 + $0x188] sm:$0xff] %v2599
    %2608 = vst [vmem:[#allocation3 + $0x1a0] sm:$0xff] %v2600
    %2609 = vst [vmem:[#allocation3 + $0x1a8] sm:$0xff] %v2601
    %2610 = vst [vmem:[#allocation3 + $0x1c0] sm:$0xff] %v2602
    %2611 = vst [vmem:[#allocation3 + $0x1c8] sm:$0xff] %v2603
    %2612 = vst [vmem:[#allocation3 + $0x1e0] sm:$0xff] %v2604
    %2613 = vst [vmem:[#allocation3 + $0x1e8] sm:$0xff] %v2605
    %v2614 = vld [vmem:[#allocation2 + $0x20] sm:$0xff]
    %v2615 = vld [vmem:[#allocation2 + $0x28] sm:$0xff]
    %v2616 = vld [vmem:[#allocation2 + $0x30] sm:$0xff]
    %v2617 = vld [vmem:[#allocation2 + $0x60] sm:$0xff]
    %v2618 = vld [vmem:[#allocation2 + $0x68] sm:$0xff]
    %v2619 = vld [vmem:[#allocation2 + $0x70] sm:$0xff]
    %v2620 = vld [vmem:[#allocation2 + $0xa0] sm:$0xff]
    %v2621 = vld [vmem:[#allocation2 + $0xa8] sm:$0xff]
    %v2622 = vld [vmem:[#allocation2 + $0xb0] sm:$0xff]
    %v2623 = vld [vmem:[#allocation2 + $0xe0] sm:$0xff]
    %v2624 = vld [vmem:[#allocation2 + $0xe8] sm:$0xff]
    %v2625 = vld [vmem:[#allocation2 + $0xf0] sm:$0xff]
    %2638 = vrot.lane.b32.xlu0 %v2614, 1
    %v2639 = vpop.permute.xlu0 %2638
    %2640 = vrot.lane.b32.xlu0 %v2615, 1
    %v2641 = vpop.permute.xlu0 %2640
    %2642 = vrot.lane.b32.xlu0 %v2616, 1
    %v2643 = vpop.permute.xlu0 %2642
    %2644 = vrot.lane.b32.xlu0 %v2617, 1
    %v2645 = vpop.permute.xlu0 %2644
    %2646 = vrot.lane.b32.xlu0 %v2618, 1
    %v2647 = vpop.permute.xlu0 %2646
    %2648 = vrot.lane.b32.xlu0 %v2619, 1
    %v2649 = vpop.permute.xlu0 %2648
    %2650 = vrot.lane.b32.xlu0 %v2620, 1
    %v2651 = vpop.permute.xlu0 %2650
    %2652 = vrot.lane.b32.xlu0 %v2621, 1
    %v2653 = vpop.permute.xlu0 %2652
    %2654 = vrot.lane.b32.xlu0 %v2622, 1
    %v2655 = vpop.permute.xlu0 %2654
    %2656 = vrot.lane.b32.xlu0 %v2623, 1
    %v2657 = vpop.permute.xlu0 %2656
    %2658 = vrot.lane.b32.xlu0 %v2624, 1
    %v2659 = vpop.permute.xlu0 %2658
    %2660 = vrot.lane.b32.xlu0 %v2625, 1
    %v2661 = vpop.permute.xlu0 %2660
    %v2662 = vsel %vm724, %v2639, %v2641
    %v2663 = vsel %vm724, %v2641, %v2643
    %v2664 = vsel %vm724, %v2645, %v2647
    %v2665 = vsel %vm724, %v2647, %v2649
    %v2666 = vsel %vm724, %v2651, %v2653
    %v2667 = vsel %vm724, %v2653, %v2655
    %v2668 = vsel %vm724, %v2657, %v2659
    %v2669 = vsel %vm724, %v2659, %v2661
    %v2678 = vsel %vm195, 0.0, %v2662
    %v2679 = vsel %vm196, 0.0, %v2663
    %v2680 = vsel %vm195, 0.0, %v2664
    %v2681 = vsel %vm196, 0.0, %v2665
    %v2682 = vsel %vm195, 0.0, %v2666
    %v2683 = vsel %vm196, 0.0, %v2667
    %v2684 = vsel %vm195, 0.0, %v2668
    %v2685 = vsel %vm196, 0.0, %v2669
    %2686 = vst [vmem:[#allocation3 + $0x190] sm:$0xff] %v2678
    %2687 = vst [vmem:[#allocation3 + $0x198] sm:$0xff] %v2679
    %2688 = vst [vmem:[#allocation3 + $0x1b0] sm:$0xff] %v2680
    %2689 = vst [vmem:[#allocation3 + $0x1b8] sm:$0xff] %v2681
    %2690 = vst [vmem:[#allocation3 + $0x1d0] sm:$0xff] %v2682
    %2691 = vst [vmem:[#allocation3 + $0x1d8] sm:$0xff] %v2683
    %2692 = vst [vmem:[#allocation3 + $0x1f0] sm:$0xff] %v2684
    %2693 = vst [vmem:[#allocation3 + $0x1f8] sm:$0xff] %v2685
    %v2694 = vld [vmem:[#allocation2 + $0x8] sm:$0xff]
    %v2695 = vld [vmem:[#allocation2 + $0x10] sm:$0xff]
    %v2696 = vld [vmem:[#allocation2 + $0x48] sm:$0xff]
    %v2697 = vld [vmem:[#allocation2 + $0x50] sm:$0xff]
    %v2698 = vld [vmem:[#allocation2 + $0x88] sm:$0xff]
    %v2699 = vld [vmem:[#allocation2 + $0x90] sm:$0xff]
    %v2700 = vld [vmem:[#allocation2 + $0xc8] sm:$0xff]
    %v2701 = vld [vmem:[#allocation2 + $0xd0] sm:$0xff]
    %2702 = vst [vmem:[#allocation3 + $0x200] sm:$0xff] %v2694
    %2703 = vst [vmem:[#allocation3 + $0x208] sm:$0xff] %v2695
    %2704 = vst [vmem:[#allocation3 + $0x220] sm:$0xff] %v2696
    %2705 = vst [vmem:[#allocation3 + $0x228] sm:$0xff] %v2697
    %2706 = vst [vmem:[#allocation3 + $0x240] sm:$0xff] %v2698
    %2707 = vst [vmem:[#allocation3 + $0x248] sm:$0xff] %v2699
    %2708 = vst [vmem:[#allocation3 + $0x260] sm:$0xff] %v2700
    %2709 = vst [vmem:[#allocation3 + $0x268] sm:$0xff] %v2701
    %v2710 = vld [vmem:[#allocation2 + $0x28] sm:$0xff]
    %v2711 = vld [vmem:[#allocation2 + $0x30] sm:$0xff]
    %v2712 = vld [vmem:[#allocation2 + $0x68] sm:$0xff]
    %v2713 = vld [vmem:[#allocation2 + $0x70] sm:$0xff]
    %v2714 = vld [vmem:[#allocation2 + $0xa8] sm:$0xff]
    %v2715 = vld [vmem:[#allocation2 + $0xb0] sm:$0xff]
    %v2716 = vld [vmem:[#allocation2 + $0xe8] sm:$0xff]
    %v2717 = vld [vmem:[#allocation2 + $0xf0] sm:$0xff]
    %2718 = vst [vmem:[#allocation3 + $0x210] sm:$0xff] %v2710
    %2719 = vst [vmem:[#allocation3 + $0x218] sm:$0xff] %v2711
    %2720 = vst [vmem:[#allocation3 + $0x230] sm:$0xff] %v2712
    %2721 = vst [vmem:[#allocation3 + $0x238] sm:$0xff] %v2713
    %2722 = vst [vmem:[#allocation3 + $0x250] sm:$0xff] %v2714
    %2723 = vst [vmem:[#allocation3 + $0x258] sm:$0xff] %v2715
    %2724 = vst [vmem:[#allocation3 + $0x270] sm:$0xff] %v2716
    %2725 = vst [vmem:[#allocation3 + $0x278] sm:$0xff] %v2717
    %v2726 = vld [vmem:[#allocation2 + $0x8] sm:$0xff]
    %v2727 = vld [vmem:[#allocation2 + $0x10] sm:$0xff]
    %v2728 = vld [vmem:[#allocation2 + $0x18] sm:$0xff]
    %v2729 = vld [vmem:[#allocation2 + $0x48] sm:$0xff]
    %v2730 = vld [vmem:[#allocation2 + $0x50] sm:$0xff]
    %v2731 = vld [vmem:[#allocation2 + $0x58] sm:$0xff]
    %v2732 = vld [vmem:[#allocation2 + $0x88] sm:$0xff]
    %v2733 = vld [vmem:[#allocation2 + $0x90] sm:$0xff]
    %v2734 = vld [vmem:[#allocation2 + $0x98] sm:$0xff]
    %v2735 = vld [vmem:[#allocation2 + $0xc8] sm:$0xff]
    %v2736 = vld [vmem:[#allocation2 + $0xd0] sm:$0xff]
    %v2737 = vld [vmem:[#allocation2 + $0xd8] sm:$0xff]
    %2750 = vrot.lane.b32.xlu0 %v2726, 127
    %v2751 = vpop.permute.xlu0 %2750
    %2752 = vrot.lane.b32.xlu0 %v2727, 127
    %v2753 = vpop.permute.xlu0 %2752
    %2754 = vrot.lane.b32.xlu0 %v2728, 127
    %v2755 = vpop.permute.xlu0 %2754
    %2756 = vrot.lane.b32.xlu0 %v2729, 127
    %v2757 = vpop.permute.xlu0 %2756
    %2758 = vrot.lane.b32.xlu0 %v2730, 127
    %v2759 = vpop.permute.xlu0 %2758
    %2760 = vrot.lane.b32.xlu0 %v2731, 127
    %v2761 = vpop.permute.xlu0 %2760
    %2762 = vrot.lane.b32.xlu0 %v2732, 127
    %v2763 = vpop.permute.xlu0 %2762
    %2764 = vrot.lane.b32.xlu0 %v2733, 127
    %v2765 = vpop.permute.xlu0 %2764
    %2766 = vrot.lane.b32.xlu0 %v2734, 127
    %v2767 = vpop.permute.xlu0 %2766
    %2768 = vrot.lane.b32.xlu0 %v2735, 127
    %v2769 = vpop.permute.xlu0 %2768
    %2770 = vrot.lane.b32.xlu0 %v2736, 127
    %v2771 = vpop.permute.xlu0 %2770
    %2772 = vrot.lane.b32.xlu0 %v2737, 127
    %v2773 = vpop.permute.xlu0 %2772
    %v2774 = vsel %vm917, %v2751, %v2753
    %v2775 = vsel %vm917, %v2753, %v2755
    %v2776 = vsel %vm917, %v2757, %v2759
    %v2777 = vsel %vm917, %v2759, %v2761
    %v2778 = vsel %vm917, %v2763, %v2765
    %v2779 = vsel %vm917, %v2765, %v2767
    %v2780 = vsel %vm917, %v2769, %v2771
    %v2781 = vsel %vm917, %v2771, %v2773
    %v2790 = vsel %vm201, 0.0, %v2774
    %v2791 = vsel %vm202, 0.0, %v2775
    %v2792 = vsel %vm201, 0.0, %v2776
    %v2793 = vsel %vm202, 0.0, %v2777
    %v2794 = vsel %vm201, 0.0, %v2778
    %v2795 = vsel %vm202, 0.0, %v2779
    %v2796 = vsel %vm201, 0.0, %v2780
    %v2797 = vsel %vm202, 0.0, %v2781
    %2798 = vst [vmem:[#allocation3 + $0x280] sm:$0xff] %v2790
    %2799 = vst [vmem:[#allocation3 + $0x288] sm:$0xff] %v2791
    %2800 = vst [vmem:[#allocation3 + $0x2a0] sm:$0xff] %v2792
    %2801 = vst [vmem:[#allocation3 + $0x2a8] sm:$0xff] %v2793
    %2802 = vst [vmem:[#allocation3 + $0x2c0] sm:$0xff] %v2794
    %2803 = vst [vmem:[#allocation3 + $0x2c8] sm:$0xff] %v2795
    %2804 = vst [vmem:[#allocation3 + $0x2e0] sm:$0xff] %v2796
    %2805 = vst [vmem:[#allocation3 + $0x2e8] sm:$0xff] %v2797
    %v2806 = vld [vmem:[#allocation2 + $0x28] sm:$0xff]
    %v2807 = vld [vmem:[#allocation2 + $0x30] sm:$0xff]
    %v2808 = vld [vmem:[#allocation2 + $0x38] sm:$0xff]
    %v2809 = vld [vmem:[#allocation2 + $0x68] sm:$0xff]
    %v2810 = vld [vmem:[#allocation2 + $0x70] sm:$0xff]
    %v2811 = vld [vmem:[#allocation2 + $0x78] sm:$0xff]
    %v2812 = vld [vmem:[#allocation2 + $0xa8] sm:$0xff]
    %v2813 = vld [vmem:[#allocation2 + $0xb0] sm:$0xff]
    %v2814 = vld [vmem:[#allocation2 + $0xb8] sm:$0xff]
    %v2815 = vld [vmem:[#allocation2 + $0xe8] sm:$0xff]
    %v2816 = vld [vmem:[#allocation2 + $0xf0] sm:$0xff]
    %v2817 = vld [vmem:[#allocation2 + $0xf8] sm:$0xff]
    %2830 = vrot.lane.b32.xlu0 %v2806, 127
    %v2831 = vpop.permute.xlu0 %2830
    %2832 = vrot.lane.b32.xlu0 %v2807, 127
    %v2833 = vpop.permute.xlu0 %2832
    %2834 = vrot.lane.b32.xlu0 %v2808, 127
    %v2835 = vpop.permute.xlu0 %2834
    %2836 = vrot.lane.b32.xlu0 %v2809, 127
    %v2837 = vpop.permute.xlu0 %2836
    %2838 = vrot.lane.b32.xlu0 %v2810, 127
    %v2839 = vpop.permute.xlu0 %2838
    %2840 = vrot.lane.b32.xlu0 %v2811, 127
    %v2841 = vpop.permute.xlu0 %2840
    %2842 = vrot.lane.b32.xlu0 %v2812, 127
    %v2843 = vpop.permute.xlu0 %2842
    %2844 = vrot.lane.b32.xlu0 %v2813, 127
    %v2845 = vpop.permute.xlu0 %2844
    %2846 = vrot.lane.b32.xlu0 %v2814, 127
    %v2847 = vpop.permute.xlu0 %2846
    %2848 = vrot.lane.b32.xlu0 %v2815, 127
    %v2849 = vpop.permute.xlu0 %2848
    %2850 = vrot.lane.b32.xlu0 %v2816, 127
    %v2851 = vpop.permute.xlu0 %2850
    %2852 = vrot.lane.b32.xlu0 %v2817, 127
    %v2853 = vpop.permute.xlu0 %2852
    %v2854 = vsel %vm917, %v2831, %v2833
    %v2855 = vsel %vm917, %v2833, %v2835
    %v2856 = vsel %vm917, %v2837, %v2839
    %v2857 = vsel %vm917, %v2839, %v2841
    %v2858 = vsel %vm917, %v2843, %v2845
    %v2859 = vsel %vm917, %v2845, %v2847
    %v2860 = vsel %vm917, %v2849, %v2851
    %v2861 = vsel %vm917, %v2851, %v2853
    %v2870 = vsel %vm201, 0.0, %v2854
    %v2871 = vsel %vm202, 0.0, %v2855
    %v2872 = vsel %vm201, 0.0, %v2856
    %v2873 = vsel %vm202, 0.0, %v2857
    %v2874 = vsel %vm201, 0.0, %v2858
    %v2875 = vsel %vm202, 0.0, %v2859
    %v2876 = vsel %vm201, 0.0, %v2860
    %v2877 = vsel %vm202, 0.0, %v2861
    %2878 = vst [vmem:[#allocation3 + $0x290] sm:$0xff] %v2870
    %2879 = vst [vmem:[#allocation3 + $0x298] sm:$0xff] %v2871
    %2880 = vst [vmem:[#allocation3 + $0x2b0] sm:$0xff] %v2872
    %2881 = vst [vmem:[#allocation3 + $0x2b8] sm:$0xff] %v2873
    %2882 = vst [vmem:[#allocation3 + $0x2d0] sm:$0xff] %v2874
    %2883 = vst [vmem:[#allocation3 + $0x2d8] sm:$0xff] %v2875
    %2884 = vst [vmem:[#allocation3 + $0x2f0] sm:$0xff] %v2876
    %2885 = vst [vmem:[#allocation3 + $0x2f8] sm:$0xff] %v2877
    %v2886 = vld [vmem:[#allocation2 + $0x8] sm:$0xff]
    %v2887 = vld [vmem:[#allocation2 + $0x10] sm:$0xff]
    %v2888 = vld [vmem:[#allocation2 + $0x18] sm:$0xff]
    %v2889 = vld [vmem:[#allocation2 + $0x48] sm:$0xff]
    %v2890 = vld [vmem:[#allocation2 + $0x50] sm:$0xff]
    %v2891 = vld [vmem:[#allocation2 + $0x58] sm:$0xff]
    %v2892 = vld [vmem:[#allocation2 + $0x88] sm:$0xff]
    %v2893 = vld [vmem:[#allocation2 + $0x90] sm:$0xff]
    %v2894 = vld [vmem:[#allocation2 + $0x98] sm:$0xff]
    %v2895 = vld [vmem:[#allocation2 + $0xc8] sm:$0xff]
    %v2896 = vld [vmem:[#allocation2 + $0xd0] sm:$0xff]
    %v2897 = vld [vmem:[#allocation2 + $0xd8] sm:$0xff]
    %2910 = vrot.lane.b32.xlu0 %v2886, 113
    %v2911 = vpop.permute.xlu0 %2910
    %2912 = vrot.lane.b32.xlu0 %v2887, 113
    %v2913 = vpop.permute.xlu0 %2912
    %2914 = vrot.lane.b32.xlu0 %v2888, 113
    %v2915 = vpop.permute.xlu0 %2914
    %2916 = vrot.lane.b32.xlu0 %v2889, 113
    %v2917 = vpop.permute.xlu0 %2916
    %2918 = vrot.lane.b32.xlu0 %v2890, 113
    %v2919 = vpop.permute.xlu0 %2918
    %2920 = vrot.lane.b32.xlu0 %v2891, 113
    %v2921 = vpop.permute.xlu0 %2920
    %2922 = vrot.lane.b32.xlu0 %v2892, 113
    %v2923 = vpop.permute.xlu0 %2922
    %2924 = vrot.lane.b32.xlu0 %v2893, 113
    %v2925 = vpop.permute.xlu0 %2924
    %2926 = vrot.lane.b32.xlu0 %v2894, 113
    %v2927 = vpop.permute.xlu0 %2926
    %2928 = vrot.lane.b32.xlu0 %v2895, 113
    %v2929 = vpop.permute.xlu0 %2928
    %2930 = vrot.lane.b32.xlu0 %v2896, 113
    %v2931 = vpop.permute.xlu0 %2930
    %2932 = vrot.lane.b32.xlu0 %v2897, 113
    %v2933 = vpop.permute.xlu0 %2932
    %v2934 = vsel %vm1078, %v2911, %v2913
    %v2935 = vsel %vm1078, %v2913, %v2915
    %v2936 = vsel %vm1078, %v2917, %v2919
    %v2937 = vsel %vm1078, %v2919, %v2921
    %v2938 = vsel %vm1078, %v2923, %v2925
    %v2939 = vsel %vm1078, %v2925, %v2927
    %v2940 = vsel %vm1078, %v2929, %v2931
    %v2941 = vsel %vm1078, %v2931, %v2933
    %v2950 = vsel %vm195, 0.0, %v2934
    %v2951 = vsel %vm196, 0.0, %v2935
    %v2952 = vsel %vm195, 0.0, %v2936
    %v2953 = vsel %vm196, 0.0, %v2937
    %v2954 = vsel %vm195, 0.0, %v2938
    %v2955 = vsel %vm196, 0.0, %v2939
    %v2956 = vsel %vm195, 0.0, %v2940
    %v2957 = vsel %vm196, 0.0, %v2941
    %2958 = vst [vmem:[#allocation3 + $0x300] sm:$0xff] %v2950
    %2959 = vst [vmem:[#allocation3 + $0x308] sm:$0xff] %v2951
    %2960 = vst [vmem:[#allocation3 + $0x320] sm:$0xff] %v2952
    %2961 = vst [vmem:[#allocation3 + $0x328] sm:$0xff] %v2953
    %2962 = vst [vmem:[#allocation3 + $0x340] sm:$0xff] %v2954
    %2963 = vst [vmem:[#allocation3 + $0x348] sm:$0xff] %v2955
    %2964 = vst [vmem:[#allocation3 + $0x360] sm:$0xff] %v2956
    %2965 = vst [vmem:[#allocation3 + $0x368] sm:$0xff] %v2957
    %v2966 = vld [vmem:[#allocation2 + $0x28] sm:$0xff]
    %v2967 = vld [vmem:[#allocation2 + $0x30] sm:$0xff]
    %v2968 = vld [vmem:[#allocation2 + $0x38] sm:$0xff]
    %v2969 = vld [vmem:[#allocation2 + $0x68] sm:$0xff]
    %v2970 = vld [vmem:[#allocation2 + $0x70] sm:$0xff]
    %v2971 = vld [vmem:[#allocation2 + $0x78] sm:$0xff]
    %v2972 = vld [vmem:[#allocation2 + $0xa8] sm:$0xff]
    %v2973 = vld [vmem:[#allocation2 + $0xb0] sm:$0xff]
    %v2974 = vld [vmem:[#allocation2 + $0xb8] sm:$0xff]
    %v2975 = vld [vmem:[#allocation2 + $0xe8] sm:$0xff]
    %v2976 = vld [vmem:[#allocation2 + $0xf0] sm:$0xff]
    %v2977 = vld [vmem:[#allocation2 + $0xf8] sm:$0xff]
    %2990 = vrot.lane.b32.xlu0 %v2966, 113
    %v2991 = vpop.permute.xlu0 %2990
    %2992 = vrot.lane.b32.xlu0 %v2967, 113
    %v2993 = vpop.permute.xlu0 %2992
    %2994 = vrot.lane.b32.xlu0 %v2968, 113
    %v2995 = vpop.permute.xlu0 %2994
    %2996 = vrot.lane.b32.xlu0 %v2969, 113
    %v2997 = vpop.permute.xlu0 %2996
    %2998 = vrot.lane.b32.xlu0 %v2970, 113
    %v2999 = vpop.permute.xlu0 %2998
    %3000 = vrot.lane.b32.xlu0 %v2971, 113
    %v3001 = vpop.permute.xlu0 %3000
    %3002 = vrot.lane.b32.xlu0 %v2972, 113
    %v3003 = vpop.permute.xlu0 %3002
    %3004 = vrot.lane.b32.xlu0 %v2973, 113
    %v3005 = vpop.permute.xlu0 %3004
    %3006 = vrot.lane.b32.xlu0 %v2974, 113
    %v3007 = vpop.permute.xlu0 %3006
    %3008 = vrot.lane.b32.xlu0 %v2975, 113
    %v3009 = vpop.permute.xlu0 %3008
    %3010 = vrot.lane.b32.xlu0 %v2976, 113
    %v3011 = vpop.permute.xlu0 %3010
    %3012 = vrot.lane.b32.xlu0 %v2977, 113
    %v3013 = vpop.permute.xlu0 %3012
    %v3014 = vsel %vm1078, %v2991, %v2993
    %v3015 = vsel %vm1078, %v2993, %v2995
    %v3016 = vsel %vm1078, %v2997, %v2999
    %v3017 = vsel %vm1078, %v2999, %v3001
    %v3018 = vsel %vm1078, %v3003, %v3005
    %v3019 = vsel %vm1078, %v3005, %v3007
    %v3020 = vsel %vm1078, %v3009, %v3011
    %v3021 = vsel %vm1078, %v3011, %v3013
    %v3030 = vsel %vm195, 0.0, %v3014
    %v3031 = vsel %vm196, 0.0, %v3015
    %v3032 = vsel %vm195, 0.0, %v3016
    %v3033 = vsel %vm196, 0.0, %v3017
    %v3034 = vsel %vm195, 0.0, %v3018
    %v3035 = vsel %vm196, 0.0, %v3019
    %v3036 = vsel %vm195, 0.0, %v3020
    %v3037 = vsel %vm196, 0.0, %v3021
    %3038 = vst [vmem:[#allocation3 + $0x310] sm:$0xff] %v3030
    %3039 = vst [vmem:[#allocation3 + $0x318] sm:$0xff] %v3031
    %3040 = vst [vmem:[#allocation3 + $0x330] sm:$0xff] %v3032
    %3041 = vst [vmem:[#allocation3 + $0x338] sm:$0xff] %v3033
    %3042 = vst [vmem:[#allocation3 + $0x350] sm:$0xff] %v3034
    %3043 = vst [vmem:[#allocation3 + $0x358] sm:$0xff] %v3035
    %3044 = vst [vmem:[#allocation3 + $0x370] sm:$0xff] %v3036
    %3045 = vst [vmem:[#allocation3 + $0x378] sm:$0xff] %v3037
    %v3046 = vld [vmem:[#allocation2 + $0x8] sm:$0xff]
    %v3047 = vld [vmem:[#allocation2 + $0x10] sm:$0xff]
    %v3048 = vld [vmem:[#allocation2 + $0x18] sm:$0xff]
    %v3049 = vld [vmem:[#allocation2 + $0x48] sm:$0xff]
    %v3050 = vld [vmem:[#allocation2 + $0x50] sm:$0xff]
    %v3051 = vld [vmem:[#allocation2 + $0x58] sm:$0xff]
    %v3052 = vld [vmem:[#allocation2 + $0x88] sm:$0xff]
    %v3053 = vld [vmem:[#allocation2 + $0x90] sm:$0xff]
    %v3054 = vld [vmem:[#allocation2 + $0x98] sm:$0xff]
    %v3055 = vld [vmem:[#allocation2 + $0xc8] sm:$0xff]
    %v3056 = vld [vmem:[#allocation2 + $0xd0] sm:$0xff]
    %v3057 = vld [vmem:[#allocation2 + $0xd8] sm:$0xff]
    %3070 = vrot.lane.b32.xlu0 %v3046, 112
    %v3071 = vpop.permute.xlu0 %3070
    %3072 = vrot.lane.b32.xlu0 %v3047, 112
    %v3073 = vpop.permute.xlu0 %3072
    %3074 = vrot.lane.b32.xlu0 %v3048, 112
    %v3075 = vpop.permute.xlu0 %3074
    %3076 = vrot.lane.b32.xlu0 %v3049, 112
    %v3077 = vpop.permute.xlu0 %3076
    %3078 = vrot.lane.b32.xlu0 %v3050, 112
    %v3079 = vpop.permute.xlu0 %3078
    %3080 = vrot.lane.b32.xlu0 %v3051, 112
    %v3081 = vpop.permute.xlu0 %3080
    %3082 = vrot.lane.b32.xlu0 %v3052, 112
    %v3083 = vpop.permute.xlu0 %3082
    %3084 = vrot.lane.b32.xlu0 %v3053, 112
    %v3085 = vpop.permute.xlu0 %3084
    %3086 = vrot.lane.b32.xlu0 %v3054, 112
    %v3087 = vpop.permute.xlu0 %3086
    %3088 = vrot.lane.b32.xlu0 %v3055, 112
    %v3089 = vpop.permute.xlu0 %3088
    %3090 = vrot.lane.b32.xlu0 %v3056, 112
    %v3091 = vpop.permute.xlu0 %3090
    %3092 = vrot.lane.b32.xlu0 %v3057, 112
    %v3093 = vpop.permute.xlu0 %3092
    %v3094 = vsel %vm1239, %v3071, %v3073
    %v3095 = vsel %vm1239, %v3073, %v3075
    %v3096 = vsel %vm1239, %v3077, %v3079
    %v3097 = vsel %vm1239, %v3079, %v3081
    %v3098 = vsel %vm1239, %v3083, %v3085
    %v3099 = vsel %vm1239, %v3085, %v3087
    %v3100 = vsel %vm1239, %v3089, %v3091
    %v3101 = vsel %vm1239, %v3091, %v3093
    %3110 = vst [vmem:[#allocation3 + $0x380] sm:$0xff] %v3094
    %3111 = vst [vmem:[#allocation3 + $0x388] sm:$0xff] %v3095
    %3112 = vst [vmem:[#allocation3 + $0x3a0] sm:$0xff] %v3096
    %3113 = vst [vmem:[#allocation3 + $0x3a8] sm:$0xff] %v3097
    %3114 = vst [vmem:[#allocation3 + $0x3c0] sm:$0xff] %v3098
    %3115 = vst [vmem:[#allocation3 + $0x3c8] sm:$0xff] %v3099
    %3116 = vst [vmem:[#allocation3 + $0x3e0] sm:$0xff] %v3100
    %3117 = vst [vmem:[#allocation3 + $0x3e8] sm:$0xff] %v3101
    %v3118 = vld [vmem:[#allocation2 + $0x28] sm:$0xff]
    %v3119 = vld [vmem:[#allocation2 + $0x30] sm:$0xff]
    %v3120 = vld [vmem:[#allocation2 + $0x38] sm:$0xff]
    %v3121 = vld [vmem:[#allocation2 + $0x68] sm:$0xff]
    %v3122 = vld [vmem:[#allocation2 + $0x70] sm:$0xff]
    %v3123 = vld [vmem:[#allocation2 + $0x78] sm:$0xff]
    %v3124 = vld [vmem:[#allocation2 + $0xa8] sm:$0xff]
    %v3125 = vld [vmem:[#allocation2 + $0xb0] sm:$0xff]
    %v3126 = vld [vmem:[#allocation2 + $0xb8] sm:$0xff]
    %v3127 = vld [vmem:[#allocation2 + $0xe8] sm:$0xff]
    %v3128 = vld [vmem:[#allocation2 + $0xf0] sm:$0xff]
    %v3129 = vld [vmem:[#allocation2 + $0xf8] sm:$0xff]
    %3142 = vrot.lane.b32.xlu0 %v3118, 112
    %v3143 = vpop.permute.xlu0 %3142
    %3144 = vrot.lane.b32.xlu0 %v3119, 112
    %v3145 = vpop.permute.xlu0 %3144
    %3146 = vrot.lane.b32.xlu0 %v3120, 112
    %v3147 = vpop.permute.xlu0 %3146
    %3148 = vrot.lane.b32.xlu0 %v3121, 112
    %v3149 = vpop.permute.xlu0 %3148
    %3150 = vrot.lane.b32.xlu0 %v3122, 112
    %v3151 = vpop.permute.xlu0 %3150
    %3152 = vrot.lane.b32.xlu0 %v3123, 112
    %v3153 = vpop.permute.xlu0 %3152
    %3154 = vrot.lane.b32.xlu0 %v3124, 112
    %v3155 = vpop.permute.xlu0 %3154
    %3156 = vrot.lane.b32.xlu0 %v3125, 112
    %v3157 = vpop.permute.xlu0 %3156
    %3158 = vrot.lane.b32.xlu0 %v3126, 112
    %v3159 = vpop.permute.xlu0 %3158
    %3160 = vrot.lane.b32.xlu0 %v3127, 112
    %v3161 = vpop.permute.xlu0 %3160
    %3162 = vrot.lane.b32.xlu0 %v3128, 112
    %v3163 = vpop.permute.xlu0 %3162
    %3164 = vrot.lane.b32.xlu0 %v3129, 112
    %v3165 = vpop.permute.xlu0 %3164
    %v3166 = vsel %vm1239, %v3143, %v3145
    %v3167 = vsel %vm1239, %v3145, %v3147
    %v3168 = vsel %vm1239, %v3149, %v3151
    %v3169 = vsel %vm1239, %v3151, %v3153
    %v3170 = vsel %vm1239, %v3155, %v3157
    %v3171 = vsel %vm1239, %v3157, %v3159
    %v3172 = vsel %vm1239, %v3161, %v3163
    %v3173 = vsel %vm1239, %v3163, %v3165
    %3182 = vst [vmem:[#allocation3 + $0x390] sm:$0xff] %v3166
    %3183 = vst [vmem:[#allocation3 + $0x398] sm:$0xff] %v3167
    %3184 = vst [vmem:[#allocation3 + $0x3b0] sm:$0xff] %v3168
    %3185 = vst [vmem:[#allocation3 + $0x3b8] sm:$0xff] %v3169
    %3186 = vst [vmem:[#allocation3 + $0x3d0] sm:$0xff] %v3170
    %3187 = vst [vmem:[#allocation3 + $0x3d8] sm:$0xff] %v3171
    %3188 = vst [vmem:[#allocation3 + $0x3f0] sm:$0xff] %v3172
    %3189 = vst [vmem:[#allocation3 + $0x3f8] sm:$0xff] %v3173
    %v3190 = vld [vmem:[#allocation2 + $0x8] sm:$0xff]
    %v3191 = vld [vmem:[#allocation2 + $0x10] sm:$0xff]
    %v3192 = vld [vmem:[#allocation2 + $0x18] sm:$0xff]
    %v3193 = vld [vmem:[#allocation2 + $0x48] sm:$0xff]
    %v3194 = vld [vmem:[#allocation2 + $0x50] sm:$0xff]
    %v3195 = vld [vmem:[#allocation2 + $0x58] sm:$0xff]
    %v3196 = vld [vmem:[#allocation2 + $0x88] sm:$0xff]
    %v3197 = vld [vmem:[#allocation2 + $0x90] sm:$0xff]
    %v3198 = vld [vmem:[#allocation2 + $0x98] sm:$0xff]
    %v3199 = vld [vmem:[#allocation2 + $0xc8] sm:$0xff]
    %v3200 = vld [vmem:[#allocation2 + $0xd0] sm:$0xff]
    %v3201 = vld [vmem:[#allocation2 + $0xd8] sm:$0xff]
    %3214 = vrot.lane.b32.xlu0 %v3190, 111
    %v3215 = vpop.permute.xlu0 %3214
    %3216 = vrot.lane.b32.xlu0 %v3191, 111
    %v3217 = vpop.permute.xlu0 %3216
    %3218 = vrot.lane.b32.xlu0 %v3192, 111
    %v3219 = vpop.permute.xlu0 %3218
    %3220 = vrot.lane.b32.xlu0 %v3193, 111
    %v3221 = vpop.permute.xlu0 %3220
    %3222 = vrot.lane.b32.xlu0 %v3194, 111
    %v3223 = vpop.permute.xlu0 %3222
    %3224 = vrot.lane.b32.xlu0 %v3195, 111
    %v3225 = vpop.permute.xlu0 %3224
    %3226 = vrot.lane.b32.xlu0 %v3196, 111
    %v3227 = vpop.permute.xlu0 %3226
    %3228 = vrot.lane.b32.xlu0 %v3197, 111
    %v3229 = vpop.permute.xlu0 %3228
    %3230 = vrot.lane.b32.xlu0 %v3198, 111
    %v3231 = vpop.permute.xlu0 %3230
    %3232 = vrot.lane.b32.xlu0 %v3199, 111
    %v3233 = vpop.permute.xlu0 %3232
    %3234 = vrot.lane.b32.xlu0 %v3200, 111
    %v3235 = vpop.permute.xlu0 %3234
    %3236 = vrot.lane.b32.xlu0 %v3201, 111
    %v3237 = vpop.permute.xlu0 %3236
    %v3238 = vsel %vm1384, %v3215, %v3217
    %v3239 = vsel %vm1384, %v3217, %v3219
    %v3240 = vsel %vm1384, %v3221, %v3223
    %v3241 = vsel %vm1384, %v3223, %v3225
    %v3242 = vsel %vm1384, %v3227, %v3229
    %v3243 = vsel %vm1384, %v3229, %v3231
    %v3244 = vsel %vm1384, %v3233, %v3235
    %v3245 = vsel %vm1384, %v3235, %v3237
    %v3254 = vsel %vm201, 0.0, %v3238
    %v3255 = vsel %vm202, 0.0, %v3239
    %v3256 = vsel %vm201, 0.0, %v3240
    %v3257 = vsel %vm202, 0.0, %v3241
    %v3258 = vsel %vm201, 0.0, %v3242
    %v3259 = vsel %vm202, 0.0, %v3243
    %v3260 = vsel %vm201, 0.0, %v3244
    %v3261 = vsel %vm202, 0.0, %v3245
    %3262 = vst [vmem:[#allocation3 + $0x400] sm:$0xff] %v3254
    %3263 = vst [vmem:[#allocation3 + $0x408] sm:$0xff] %v3255
    %3264 = vst [vmem:[#allocation3 + $0x420] sm:$0xff] %v3256
    %3265 = vst [vmem:[#allocation3 + $0x428] sm:$0xff] %v3257
    %3266 = vst [vmem:[#allocation3 + $0x440] sm:$0xff] %v3258
    %3267 = vst [vmem:[#allocation3 + $0x448] sm:$0xff] %v3259
    %3268 = vst [vmem:[#allocation3 + $0x460] sm:$0xff] %v3260
    %3269 = vst [vmem:[#allocation3 + $0x468] sm:$0xff] %v3261
    %v3270 = vld [vmem:[#allocation2 + $0x28] sm:$0xff]
    %v3271 = vld [vmem:[#allocation2 + $0x30] sm:$0xff]
    %v3272 = vld [vmem:[#allocation2 + $0x38] sm:$0xff]
    %v3273 = vld [vmem:[#allocation2 + $0x68] sm:$0xff]
    %v3274 = vld [vmem:[#allocation2 + $0x70] sm:$0xff]
    %v3275 = vld [vmem:[#allocation2 + $0x78] sm:$0xff]
    %v3276 = vld [vmem:[#allocation2 + $0xa8] sm:$0xff]
    %v3277 = vld [vmem:[#allocation2 + $0xb0] sm:$0xff]
    %v3278 = vld [vmem:[#allocation2 + $0xb8] sm:$0xff]
    %v3279 = vld [vmem:[#allocation2 + $0xe8] sm:$0xff]
    %v3280 = vld [vmem:[#allocation2 + $0xf0] sm:$0xff]
    %v3281 = vld [vmem:[#allocation2 + $0xf8] sm:$0xff]
    %3294 = vrot.lane.b32.xlu0 %v3270, 111
    %v3295 = vpop.permute.xlu0 %3294
    %3296 = vrot.lane.b32.xlu0 %v3271, 111
    %v3297 = vpop.permute.xlu0 %3296
    %3298 = vrot.lane.b32.xlu0 %v3272, 111
    %v3299 = vpop.permute.xlu0 %3298
    %3300 = vrot.lane.b32.xlu0 %v3273, 111
    %v3301 = vpop.permute.xlu0 %3300
    %3302 = vrot.lane.b32.xlu0 %v3274, 111
    %v3303 = vpop.permute.xlu0 %3302
    %3304 = vrot.lane.b32.xlu0 %v3275, 111
    %v3305 = vpop.permute.xlu0 %3304
    %3306 = vrot.lane.b32.xlu0 %v3276, 111
    %v3307 = vpop.permute.xlu0 %3306
    %3308 = vrot.lane.b32.xlu0 %v3277, 111
    %v3309 = vpop.permute.xlu0 %3308
    %3310 = vrot.lane.b32.xlu0 %v3278, 111
    %v3311 = vpop.permute.xlu0 %3310
    %3312 = vrot.lane.b32.xlu0 %v3279, 111
    %v3313 = vpop.permute.xlu0 %3312
    %3314 = vrot.lane.b32.xlu0 %v3280, 111
    %v3315 = vpop.permute.xlu0 %3314
    %3316 = vrot.lane.b32.xlu0 %v3281, 111
    %v3317 = vpop.permute.xlu0 %3316
    %v3318 = vsel %vm1384, %v3295, %v3297
    %v3319 = vsel %vm1384, %v3297, %v3299
    %v3320 = vsel %vm1384, %v3301, %v3303
    %v3321 = vsel %vm1384, %v3303, %v3305
    %v3322 = vsel %vm1384, %v3307, %v3309
    %v3323 = vsel %vm1384, %v3309, %v3311
    %v3324 = vsel %vm1384, %v3313, %v3315
    %v3325 = vsel %vm1384, %v3315, %v3317
    %v3334 = vsel %vm201, 0.0, %v3318
    %v3335 = vsel %vm202, 0.0, %v3319
    %v3336 = vsel %vm201, 0.0, %v3320
    %v3337 = vsel %vm202, 0.0, %v3321
    %v3338 = vsel %vm201, 0.0, %v3322
    %v3339 = vsel %vm202, 0.0, %v3323
    %v3340 = vsel %vm201, 0.0, %v3324
    %v3341 = vsel %vm202, 0.0, %v3325
    %3342 = vst [vmem:[#allocation3 + $0x410] sm:$0xff] %v3334
    %3343 = vst [vmem:[#allocation3 + $0x418] sm:$0xff] %v3335
    %3344 = vst [vmem:[#allocation3 + $0x430] sm:$0xff] %v3336
    %3345 = vst [vmem:[#allocation3 + $0x438] sm:$0xff] %v3337
    %3346 = vst [vmem:[#allocation3 + $0x450] sm:$0xff] %v3338
    %3347 = vst [vmem:[#allocation3 + $0x458] sm:$0xff] %v3339
    %3348 = vst [vmem:[#allocation3 + $0x470] sm:$0xff] %v3340
    %3349 = vst [vmem:[#allocation3 + $0x478] sm:$0xff] %v3341
    %v3350 = vld [vmem:[#allocation10] sm:$0xff]
    %v3351 = vld [vmem:[#allocation10 + $0x8] sm:$0xff]
    %v3352 = vld [vmem:[#allocation10 + $0x10] sm:$0xff]
    %v3353 = vld [vmem:[#allocation10 + $0x18] sm:$0xff]
    %v3354 = vld [vmem:[#allocation10 + $0x20] sm:$0xff]
    %v3355 = vld [vmem:[#allocation10 + $0x28] sm:$0xff]
    %v3356 = vld [vmem:[#allocation10 + $0x30] sm:$0xff]
    %v3357 = vld [vmem:[#allocation10 + $0x38] sm:$0xff]
    %v3358 = vld [vmem:[#allocation10 + $0x40] sm:$0xff]
    %v3359 = vld [vmem:[#allocation10 + $0x48] sm:$0xff]
    %v3360 = vld [vmem:[#allocation10 + $0x50] sm:$0xff]
    %v3361 = vld [vmem:[#allocation10 + $0x58] sm:$0xff]
    %v3362 = vld [vmem:[#allocation3] sm:$0xff]
    %v3363 = vld [vmem:[#allocation3 + $0x8] sm:$0xff]
    %v3364 = vld [vmem:[#allocation3 + $0x10] sm:$0xff]
    %v3365 = vld [vmem:[#allocation3 + $0x18] sm:$0xff]
    %v3366 = vld [vmem:[#allocation3 + $0x20] sm:$0xff]
    %v3367 = vld [vmem:[#allocation3 + $0x28] sm:$0xff]
    %v3368 = vld [vmem:[#allocation3 + $0x30] sm:$0xff]
    %v3369 = vld [vmem:[#allocation3 + $0x38] sm:$0xff]
    %v3370 = vld [vmem:[#allocation3 + $0x40] sm:$0xff]
    %v3371 = vld [vmem:[#allocation3 + $0x48] sm:$0xff]
    %v3372 = vld [vmem:[#allocation3 + $0x50] sm:$0xff]
    %v3373 = vld [vmem:[#allocation3 + $0x58] sm:$0xff]
    %v3374 = vld [vmem:[#allocation3 + $0x60] sm:$0xff]
    %v3375 = vld [vmem:[#allocation3 + $0x68] sm:$0xff]
    %v3376 = vld [vmem:[#allocation3 + $0x70] sm:$0xff]
    %v3377 = vld [vmem:[#allocation3 + $0x78] sm:$0xff]
    %v3378 = vld [vmem:[#allocation3 + $0x80] sm:$0xff]
    %v3379 = vld [vmem:[#allocation3 + $0x88] sm:$0xff]
    %v3380 = vld [vmem:[#allocation3 + $0x90] sm:$0xff]
    %v3381 = vld [vmem:[#allocation3 + $0x98] sm:$0xff]
    %v3382 = vld [vmem:[#allocation3 + $0xa0] sm:$0xff]
    %v3383 = vld [vmem:[#allocation3 + $0xa8] sm:$0xff]
    %v3384 = vld [vmem:[#allocation3 + $0xb0] sm:$0xff]
    %v3385 = vld [vmem:[#allocation3 + $0xb8] sm:$0xff]
    %v3386 = vld [vmem:[#allocation3 + $0xc0] sm:$0xff]
    %v3387 = vld [vmem:[#allocation3 + $0xc8] sm:$0xff]
    %v3388 = vld [vmem:[#allocation3 + $0xd0] sm:$0xff]
    %v3389 = vld [vmem:[#allocation3 + $0xd8] sm:$0xff]
    %v3390 = vld [vmem:[#allocation3 + $0xe0] sm:$0xff]
    %v3391 = vld [vmem:[#allocation3 + $0xe8] sm:$0xff]
    %v3392 = vld [vmem:[#allocation3 + $0xf0] sm:$0xff]
    %v3393 = vld [vmem:[#allocation3 + $0xf8] sm:$0xff]
    %v3394 = vld [vmem:[#allocation3 + $0x100] sm:$0xff]
    %v3395 = vld [vmem:[#allocation3 + $0x108] sm:$0xff]
    %v3396 = vld [vmem:[#allocation3 + $0x110] sm:$0xff]
    %v3397 = vld [vmem:[#allocation3 + $0x118] sm:$0xff]
    %v3398 = vld [vmem:[#allocation3 + $0x120] sm:$0xff]
    %v3399 = vld [vmem:[#allocation3 + $0x128] sm:$0xff]
    %v3400 = vld [vmem:[#allocation3 + $0x130] sm:$0xff]
    %v3401 = vld [vmem:[#allocation3 + $0x138] sm:$0xff]
    %v3402 = vld [vmem:[#allocation3 + $0x140] sm:$0xff]
    %v3403 = vld [vmem:[#allocation3 + $0x148] sm:$0xff]
    %v3404 = vld [vmem:[#allocation3 + $0x150] sm:$0xff]
    %v3405 = vld [vmem:[#allocation3 + $0x158] sm:$0xff]
    %v3406 = vld [vmem:[#allocation3 + $0x160] sm:$0xff]
    %v3407 = vld [vmem:[#allocation3 + $0x168] sm:$0xff]
    %v3408 = vld [vmem:[#allocation3 + $0x170] sm:$0xff]
    %v3409 = vld [vmem:[#allocation3 + $0x178] sm:$0xff]
    %v3410 = vld [vmem:[#allocation3 + $0x180] sm:$0xff]
    %v3411 = vld [vmem:[#allocation3 + $0x188] sm:$0xff]
    %v3412 = vld [vmem:[#allocation3 + $0x190] sm:$0xff]
    %v3413 = vld [vmem:[#allocation3 + $0x198] sm:$0xff]
    %v3414 = vld [vmem:[#allocation3 + $0x1a0] sm:$0xff]
    %v3415 = vld [vmem:[#allocation3 + $0x1a8] sm:$0xff]
    %v3416 = vld [vmem:[#allocation3 + $0x1b0] sm:$0xff]
    %v3417 = vld [vmem:[#allocation3 + $0x1b8] sm:$0xff]
    %v3418 = vld [vmem:[#allocation3 + $0x1c0] sm:$0xff]
    %v3419 = vld [vmem:[#allocation3 + $0x1c8] sm:$0xff]
    %v3420 = vld [vmem:[#allocation3 + $0x1d0] sm:$0xff]
    %v3421 = vld [vmem:[#allocation3 + $0x1d8] sm:$0xff]
    %v3422 = vld [vmem:[#allocation3 + $0x1e0] sm:$0xff]
    %v3423 = vld [vmem:[#allocation3 + $0x1e8] sm:$0xff]
    %v3424 = vld [vmem:[#allocation3 + $0x1f0] sm:$0xff]
    %v3425 = vld [vmem:[#allocation3 + $0x1f8] sm:$0xff]
    %v3426 = vld [vmem:[#allocation3 + $0x200] sm:$0xff]
    %v3427 = vld [vmem:[#allocation3 + $0x208] sm:$0xff]
    %v3428 = vld [vmem:[#allocation3 + $0x210] sm:$0xff]
    %v3429 = vld [vmem:[#allocation3 + $0x218] sm:$0xff]
    %v3430 = vld [vmem:[#allocation3 + $0x220] sm:$0xff]
    %v3431 = vld [vmem:[#allocation3 + $0x228] sm:$0xff]
    %v3432 = vld [vmem:[#allocation3 + $0x230] sm:$0xff]
    %v3433 = vld [vmem:[#allocation3 + $0x238] sm:$0xff]
    %v3434 = vld [vmem:[#allocation3 + $0x240] sm:$0xff]
    %v3435 = vld [vmem:[#allocation3 + $0x248] sm:$0xff]
    %v3436 = vld [vmem:[#allocation3 + $0x250] sm:$0xff]
    %v3437 = vld [vmem:[#allocation3 + $0x258] sm:$0xff]
    %v3438 = vld [vmem:[#allocation3 + $0x260] sm:$0xff]
    %v3439 = vld [vmem:[#allocation3 + $0x268] sm:$0xff]
    %v3440 = vld [vmem:[#allocation3 + $0x270] sm:$0xff]
    %v3441 = vld [vmem:[#allocation3 + $0x278] sm:$0xff]
    %v3442 = vld [vmem:[#allocation3 + $0x280] sm:$0xff]
    %v3443 = vld [vmem:[#allocation3 + $0x288] sm:$0xff]
    %v3444 = vld [vmem:[#allocation3 + $0x290] sm:$0xff]
    %v3445 = vld [vmem:[#allocation3 + $0x298] sm:$0xff]
    %v3446 = vld [vmem:[#allocation3 + $0x2a0] sm:$0xff]
    %v3447 = vld [vmem:[#allocation3 + $0x2a8] sm:$0xff]
    %v3448 = vld [vmem:[#allocation3 + $0x2b0] sm:$0xff]
    %v3449 = vld [vmem:[#allocation3 + $0x2b8] sm:$0xff]
    %v3450 = vld [vmem:[#allocation3 + $0x2c0] sm:$0xff]
    %v3451 = vld [vmem:[#allocation3 + $0x2c8] sm:$0xff]
    %v3452 = vld [vmem:[#allocation3 + $0x2d0] sm:$0xff]
    %v3453 = vld [vmem:[#allocation3 + $0x2d8] sm:$0xff]
    %v3454 = vld [vmem:[#allocation3 + $0x2e0] sm:$0xff]
    %v3455 = vld [vmem:[#allocation3 + $0x2e8] sm:$0xff]
    %v3456 = vld [vmem:[#allocation3 + $0x2f0] sm:$0xff]
    %v3457 = vld [vmem:[#allocation3 + $0x2f8] sm:$0xff]
    %v3458 = vld [vmem:[#allocation3 + $0x300] sm:$0xff]
    %v3459 = vld [vmem:[#allocation3 + $0x308] sm:$0xff]
    %v3460 = vld [vmem:[#allocation3 + $0x310] sm:$0xff]
    %v3461 = vld [vmem:[#allocation3 + $0x318] sm:$0xff]
    %v3462 = vld [vmem:[#allocation3 + $0x320] sm:$0xff]
    %v3463 = vld [vmem:[#allocation3 + $0x328] sm:$0xff]
    %v3464 = vld [vmem:[#allocation3 + $0x330] sm:$0xff]
    %v3465 = vld [vmem:[#allocation3 + $0x338] sm:$0xff]
    %v3466 = vld [vmem:[#allocation3 + $0x340] sm:$0xff]
    %v3467 = vld [vmem:[#allocation3 + $0x348] sm:$0xff]
    %v3468 = vld [vmem:[#allocation3 + $0x350] sm:$0xff]
    %v3469 = vld [vmem:[#allocation3 + $0x358] sm:$0xff]
    %v3470 = vld [vmem:[#allocation3 + $0x360] sm:$0xff]
    %v3471 = vld [vmem:[#allocation3 + $0x368] sm:$0xff]
    %v3472 = vld [vmem:[#allocation3 + $0x370] sm:$0xff]
    %v3473 = vld [vmem:[#allocation3 + $0x378] sm:$0xff]
    %v3474 = vld [vmem:[#allocation3 + $0x380] sm:$0xff]
    %v3475 = vld [vmem:[#allocation3 + $0x388] sm:$0xff]
    %v3476 = vld [vmem:[#allocation3 + $0x390] sm:$0xff]
    %v3477 = vld [vmem:[#allocation3 + $0x398] sm:$0xff]
    %v3478 = vld [vmem:[#allocation3 + $0x3a0] sm:$0xff]
    %v3479 = vld [vmem:[#allocation3 + $0x3a8] sm:$0xff]
    %v3480 = vld [vmem:[#allocation3 + $0x3b0] sm:$0xff]
    %v3481 = vld [vmem:[#allocation3 + $0x3b8] sm:$0xff]
    %v3482 = vld [vmem:[#allocation3 + $0x3c0] sm:$0xff]
    %v3483 = vld [vmem:[#allocation3 + $0x3c8] sm:$0xff]
    %v3484 = vld [vmem:[#allocation3 + $0x3d0] sm:$0xff]
    %v3485 = vld [vmem:[#allocation3 + $0x3d8] sm:$0xff]
    %v3486 = vld [vmem:[#allocation3 + $0x3e0] sm:$0xff]
    %v3487 = vld [vmem:[#allocation3 + $0x3e8] sm:$0xff]
    %v3488 = vld [vmem:[#allocation3 + $0x3f0] sm:$0xff]
    %v3489 = vld [vmem:[#allocation3 + $0x3f8] sm:$0xff]
    %v3490 = vld [vmem:[#allocation3 + $0x400] sm:$0xff]
    %v3491 = vld [vmem:[#allocation3 + $0x408] sm:$0xff]
    %v3492 = vld [vmem:[#allocation3 + $0x410] sm:$0xff]
    %v3493 = vld [vmem:[#allocation3 + $0x418] sm:$0xff]
    %v3494 = vld [vmem:[#allocation3 + $0x420] sm:$0xff]
    %v3495 = vld [vmem:[#allocation3 + $0x428] sm:$0xff]
    %v3496 = vld [vmem:[#allocation3 + $0x430] sm:$0xff]
    %v3497 = vld [vmem:[#allocation3 + $0x438] sm:$0xff]
    %v3498 = vld [vmem:[#allocation3 + $0x440] sm:$0xff]
    %v3499 = vld [vmem:[#allocation3 + $0x448] sm:$0xff]
    %v3500 = vld [vmem:[#allocation3 + $0x450] sm:$0xff]
    %v3501 = vld [vmem:[#allocation3 + $0x458] sm:$0xff]
    %v3502 = vld [vmem:[#allocation3 + $0x460] sm:$0xff]
    %v3503 = vld [vmem:[#allocation3 + $0x468] sm:$0xff]
    %v3504 = vld [vmem:[#allocation3 + $0x470] sm:$0xff]
    %v3505 = vld [vmem:[#allocation3 + $0x478] sm:$0xff]
    %v3506 = vld [vmem:[%s4] sm:$0xff]
    %v3507 = vld [vmem:[%s4 + $0x8] sm:$0xff]
    %v3508 = vld [vmem:[%s4 + $0x10] sm:$0xff]
    %v3509 = vld [vmem:[%s4 + $0x18] sm:$0xff]
    %3511 = vset.pattern.permute.xlu0 0
    %3512 = vperm.xlu0 %3511, %v3506
    %v3513 = vpop.permute.xlu0 %3512
    %3516 = vset.pattern.permute.xlu0 0
    %3517 = vperm.xlu0 %3516, %v3507
    %v3518 = vpop.permute.xlu0 %3517
    %3521 = vset.pattern.permute.xlu0 0
    %3522 = vperm.xlu0 %3521, %v3508
    %v3523 = vpop.permute.xlu0 %3522
    %3526 = vset.pattern.permute.xlu0 0
    %3527 = vperm.xlu0 %3526, %v3509
    %v3528 = vpop.permute.xlu0 %3527
    %v3531 = vsel %vm1677, %v3352, 0
    %v3534 = vsel %vm1677, %v3355, 0
    %v3537 = vsel %vm1677, %v3358, 0
    %v3540 = vsel %vm1677, %v3361, 0
    %3542 = vmatpush.msra.mxu0 %v3422
    %3543 = vmatpush.msra.mxu0 %v3418
    %3544 = vmatpush.msra.mxu0 %v3414
    %3545 = vmatpush.msra.mxu0 %v3410
    %3546 = vmatpush.msra.mxu0 %v3406
    %3547 = vmatpush.msra.mxu0 %v3402
    %3548 = vmatpush.msra.mxu0 %v3398
    %3549 = vmatpush.msra.mxu0 %v3394
    %3550 = vmatpush.msra.mxu0 %v3390
    %3551 = vmatpush.msra.mxu0 %v3386
    %3552 = vmatpush.msra.mxu0 %v3382
    %3553 = vmatpush.msra.mxu0 %v3378
    %3554 = vmatpush.msra.mxu0 %v3374
    %3555 = vmatpush.msra.mxu0 %v3370
    %3556 = vmatpush.msra.mxu0 %v3366
    %3557 = vmatpush.msra.mxu0 %v3362
    %3558 = vmatmul.f32.gmra.mxu0 %v3350
    %v3559 = vpop.f32.mrf.mxu0
    %v3560 = vadd.f32 %v3513, %v3559
    %3561 = vmatmul.f32.gmra.mxu0 %v3353
    %v3562 = vpop.f32.mrf.mxu0
    %v3563 = vadd.f32 %v3518, %v3562
    %3564 = vmatmul.f32.gmra.mxu0 %v3356
    %v3565 = vpop.f32.mrf.mxu0
    %v3566 = vadd.f32 %v3523, %v3565
    %3567 = vmatmul.f32.gmra.mxu0 %v3359
    %v3568 = vpop.f32.mrf.mxu0
    %v3569 = vadd.f32 %v3528, %v3568
    %3570 = vdwg.mxu0
    %3571 = vmatpush.msra.mxu0 %v3486
    %3572 = vmatpush.msra.mxu0 %v3482
    %3573 = vmatpush.msra.mxu0 %v3478
    %3574 = vmatpush.msra.mxu0 %v3474
    %3575 = vmatpush.msra.mxu0 %v3470
    %3576 = vmatpush.msra.mxu0 %v3466
    %3577 = vmatpush.msra.mxu0 %v3462
    %3578 = vmatpush.msra.mxu0 %v3458
    %3579 = vmatpush.msra.mxu0 %v3454
    %3580 = vmatpush.msra.mxu0 %v3450
    %3581 = vmatpush.msra.mxu0 %v3446
    %3582 = vmatpush.msra.mxu0 %v3442
    %3583 = vmatpush.msra.mxu0 %v3438
    %3584 = vmatpush.msra.mxu0 %v3434
    %3585 = vmatpush.msra.mxu0 %v3430
    %3586 = vmatpush.msra.mxu0 %v3426
    %3587 = vmatmul.f32.gmra.mxu0 %v3351
    %v3588 = vpop.f32.mrf.mxu0
    %v3589 = vadd.f32 %v3560, %v3588
    %3590 = vmatmul.f32.gmra.mxu0 %v3354
    %v3591 = vpop.f32.mrf.mxu0
    %v3592 = vadd.f32 %v3563, %v3591
    %3593 = vmatmul.f32.gmra.mxu0 %v3357
    %v3594 = vpop.f32.mrf.mxu0
    %v3595 = vadd.f32 %v3566, %v3594
    %3596 = vmatmul.f32.gmra.mxu0 %v3360
    %v3597 = vpop.f32.mrf.mxu0
    %v3598 = vadd.f32 %v3569, %v3597
    %3599 = vdwg.mxu0
    %3600 = vmatpush.msra.mxu0 0.0
    %3601 = vmatpush.msra.mxu0 0.0
    %3602 = vmatpush.msra.mxu0 0.0
    %3603 = vmatpush.msra.mxu0 0.0
    %3604 = vmatpush.msra.mxu0 0.0
    %3605 = vmatpush.msra.mxu0 0.0
    %3606 = vmatpush.msra.mxu0 0.0
    %3607 = vmatpush.msra.mxu0 0.0
    %3608 = vmatpush.msra.mxu0 0.0
    %3609 = vmatpush.msra.mxu0 0.0
    %3610 = vmatpush.msra.mxu0 0.0
    %3611 = vmatpush.msra.mxu0 0.0
    %3612 = vmatpush.msra.mxu0 %v3502
    %3613 = vmatpush.msra.mxu0 %v3498
    %3614 = vmatpush.msra.mxu0 %v3494
    %3615 = vmatpush.msra.mxu0 %v3490
    %3616 = vmatmul.f32.gmra.mxu0 %v3531
    %v3617 = vpop.f32.mrf.mxu0
    %v3618 = vadd.f32 %v3589, %v3617
    %3619 = vmatmul.f32.gmra.mxu0 %v3534
    %v3620 = vpop.f32.mrf.mxu0
    %v3621 = vadd.f32 %v3592, %v3620
    %3622 = vmatmul.f32.gmra.mxu0 %v3537
    %v3623 = vpop.f32.mrf.mxu0
    %v3624 = vadd.f32 %v3595, %v3623
    %3625 = vmatmul.f32.gmra.mxu0 %v3540
    %v3626 = vpop.f32.mrf.mxu0
    %v3627 = vadd.f32 %v3598, %v3626
    %3628 = vdwg.mxu0
    %3629 = vmatpush.msra.mxu0 %v3423
    %3630 = vmatpush.msra.mxu0 %v3419
    %3631 = vmatpush.msra.mxu0 %v3415
    %3632 = vmatpush.msra.mxu0 %v3411
    %3633 = vmatpush.msra.mxu0 %v3407
    %3634 = vmatpush.msra.mxu0 %v3403
    %3635 = vmatpush.msra.mxu0 %v3399
    %3636 = vmatpush.msra.mxu0 %v3395
    %3637 = vmatpush.msra.mxu0 %v3391
    %3638 = vmatpush.msra.mxu0 %v3387
    %3639 = vmatpush.msra.mxu0 %v3383
    %3640 = vmatpush.msra.mxu0 %v3379
    %3641 = vmatpush.msra.mxu0 %v3375
    %3642 = vmatpush.msra.mxu0 %v3371
    %3643 = vmatpush.msra.mxu0 %v3367
    %3644 = vmatpush.msra.mxu0 %v3363
    %3645 = vmatmul.f32.gmra.mxu0 %v3350
    %v3646 = vpop.f32.mrf.mxu0
    %v3647 = vadd.f32 %v3513, %v3646
    %3648 = vmatmul.f32.gmra.mxu0 %v3353
    %v3649 = vpop.f32.mrf.mxu0
    %v3650 = vadd.f32 %v3518, %v3649
    %3651 = vmatmul.f32.gmra.mxu0 %v3356
    %v3652 = vpop.f32.mrf.mxu0
    %v3653 = vadd.f32 %v3523, %v3652
    %3654 = vmatmul.f32.gmra.mxu0 %v3359
    %v3655 = vpop.f32.mrf.mxu0
    %v3656 = vadd.f32 %v3528, %v3655
    %3657 = vdwg.mxu0
    %3658 = vmatpush.msra.mxu0 %v3487
    %3659 = vmatpush.msra.mxu0 %v3483
    %3660 = vmatpush.msra.mxu0 %v3479
    %3661 = vmatpush.msra.mxu0 %v3475
    %3662 = vmatpush.msra.mxu0 %v3471
    %3663 = vmatpush.msra.mxu0 %v3467
    %3664 = vmatpush.msra.mxu0 %v3463
    %3665 = vmatpush.msra.mxu0 %v3459
    %3666 = vmatpush.msra.mxu0 %v3455
    %3667 = vmatpush.msra.mxu0 %v3451
    %3668 = vmatpush.msra.mxu0 %v3447
    %3669 = vmatpush.msra.mxu0 %v3443
    %3670 = vmatpush.msra.mxu0 %v3439
    %3671 = vmatpush.msra.mxu0 %v3435
    %3672 = vmatpush.msra.mxu0 %v3431
    %3673 = vmatpush.msra.mxu0 %v3427
    %3674 = vmatmul.f32.gmra.mxu0 %v3351
    %v3675 = vpop.f32.mrf.mxu0
    %v3676 = vadd.f32 %v3647, %v3675
    %3677 = vmatmul.f32.gmra.mxu0 %v3354
    %v3678 = vpop.f32.mrf.mxu0
    %v3679 = vadd.f32 %v3650, %v3678
    %3680 = vmatmul.f32.gmra.mxu0 %v3357
    %v3681 = vpop.f32.mrf.mxu0
    %v3682 = vadd.f32 %v3653, %v3681
    %3683 = vmatmul.f32.gmra.mxu0 %v3360
    %v3684 = vpop.f32.mrf.mxu0
    %v3685 = vadd.f32 %v3656, %v3684
    %3686 = vdwg.mxu0
    %3687 = vmatpush.msra.mxu0 0.0
    %3688 = vmatpush.msra.mxu0 0.0
    %3689 = vmatpush.msra.mxu0 0.0
    %3690 = vmatpush.msra.mxu0 0.0
    %3691 = vmatpush.msra.mxu0 0.0
    %3692 = vmatpush.msra.mxu0 0.0
    %3693 = vmatpush.msra.mxu0 0.0
    %3694 = vmatpush.msra.mxu0 0.0
    %3695 = vmatpush.msra.mxu0 0.0
    %3696 = vmatpush.msra.mxu0 0.0
    %3697 = vmatpush.msra.mxu0 0.0
    %3698 = vmatpush.msra.mxu0 0.0
    %3699 = vmatpush.msra.mxu0 %v3503
    %3700 = vmatpush.msra.mxu0 %v3499
    %3701 = vmatpush.msra.mxu0 %v3495
    %3702 = vmatpush.msra.mxu0 %v3491
    %3703 = vmatmul.f32.gmra.mxu0 %v3531
    %v3704 = vpop.f32.mrf.mxu0
    %v3705 = vadd.f32 %v3676, %v3704
    %3706 = vmatmul.f32.gmra.mxu0 %v3534
    %v3707 = vpop.f32.mrf.mxu0
    %v3708 = vadd.f32 %v3679, %v3707
    %3709 = vmatmul.f32.gmra.mxu0 %v3537
    %v3710 = vpop.f32.mrf.mxu0
    %v3711 = vadd.f32 %v3682, %v3710
    %3712 = vmatmul.f32.gmra.mxu0 %v3540
    %v3713 = vpop.f32.mrf.mxu0
    %v3714 = vadd.f32 %v3685, %v3713
    %3715 = vdwg.mxu0
    %3716 = vmatpush.msra.mxu0 %v3424
    %3717 = vmatpush.msra.mxu0 %v3420
    %3718 = vmatpush.msra.mxu0 %v3416
    %3719 = vmatpush.msra.mxu0 %v3412
    %3720 = vmatpush.msra.mxu0 %v3408
    %3721 = vmatpush.msra.mxu0 %v3404
    %3722 = vmatpush.msra.mxu0 %v3400
    %3723 = vmatpush.msra.mxu0 %v3396
    %3724 = vmatpush.msra.mxu0 %v3392
    %3725 = vmatpush.msra.mxu0 %v3388
    %3726 = vmatpush.msra.mxu0 %v3384
    %3727 = vmatpush.msra.mxu0 %v3380
    %3728 = vmatpush.msra.mxu0 %v3376
    %3729 = vmatpush.msra.mxu0 %v3372
    %3730 = vmatpush.msra.mxu0 %v3368
    %3731 = vmatpush.msra.mxu0 %v3364
    %3732 = vmatmul.f32.gmra.mxu0 %v3350
    %v3733 = vpop.f32.mrf.mxu0
    %v3734 = vadd.f32 %v3513, %v3733
    %3735 = vmatmul.f32.gmra.mxu0 %v3353
    %v3736 = vpop.f32.mrf.mxu0
    %v3737 = vadd.f32 %v3518, %v3736
    %3738 = vmatmul.f32.gmra.mxu0 %v3356
    %v3739 = vpop.f32.mrf.mxu0
    %v3740 = vadd.f32 %v3523, %v3739
    %3741 = vmatmul.f32.gmra.mxu0 %v3359
    %v3742 = vpop.f32.mrf.mxu0
    %v3743 = vadd.f32 %v3528, %v3742
    %3744 = vdwg.mxu0
    %3745 = vmatpush.msra.mxu0 %v3488
    %3746 = vmatpush.msra.mxu0 %v3484
    %3747 = vmatpush.msra.mxu0 %v3480
    %3748 = vmatpush.msra.mxu0 %v3476
    %3749 = vmatpush.msra.mxu0 %v3472
    %3750 = vmatpush.msra.mxu0 %v3468
    %3751 = vmatpush.msra.mxu0 %v3464
    %3752 = vmatpush.msra.mxu0 %v3460
    %3753 = vmatpush.msra.mxu0 %v3456
    %3754 = vmatpush.msra.mxu0 %v3452
    %3755 = vmatpush.msra.mxu0 %v3448
    %3756 = vmatpush.msra.mxu0 %v3444
    %3757 = vmatpush.msra.mxu0 %v3440
    %3758 = vmatpush.msra.mxu0 %v3436
    %3759 = vmatpush.msra.mxu0 %v3432
    %3760 = vmatpush.msra.mxu0 %v3428
    %3761 = vmatmul.f32.gmra.mxu0 %v3351
    %v3762 = vpop.f32.mrf.mxu0
    %v3763 = vadd.f32 %v3734, %v3762
    %3764 = vmatmul.f32.gmra.mxu0 %v3354
    %v3765 = vpop.f32.mrf.mxu0
    %v3766 = vadd.f32 %v3737, %v3765
    %3767 = vmatmul.f32.gmra.mxu0 %v3357
    %v3768 = vpop.f32.mrf.mxu0
    %v3769 = vadd.f32 %v3740, %v3768
    %3770 = vmatmul.f32.gmra.mxu0 %v3360
    %v3771 = vpop.f32.mrf.mxu0
    %v3772 = vadd.f32 %v3743, %v3771
    %3773 = vdwg.mxu0
    %3774 = vmatpush.msra.mxu0 0.0
    %3775 = vmatpush.msra.mxu0 0.0
    %3776 = vmatpush.msra.mxu0 0.0
    %3777 = vmatpush.msra.mxu0 0.0
    %3778 = vmatpush.msra.mxu0 0.0
    %3779 = vmatpush.msra.mxu0 0.0
    %3780 = vmatpush.msra.mxu0 0.0
    %3781 = vmatpush.msra.mxu0 0.0
    %3782 = vmatpush.msra.mxu0 0.0
    %3783 = vmatpush.msra.mxu0 0.0
    %3784 = vmatpush.msra.mxu0 0.0
    %3785 = vmatpush.msra.mxu0 0.0
    %3786 = vmatpush.msra.mxu0 %v3504
    %3787 = vmatpush.msra.mxu0 %v3500
    %3788 = vmatpush.msra.mxu0 %v3496
    %3789 = vmatpush.msra.mxu0 %v3492
    %3790 = vmatmul.f32.gmra.mxu0 %v3531
    %v3791 = vpop.f32.mrf.mxu0
    %v3792 = vadd.f32 %v3763, %v3791
    %3793 = vmatmul.f32.gmra.mxu0 %v3534
    %v3794 = vpop.f32.mrf.mxu0
    %v3795 = vadd.f32 %v3766, %v3794
    %3796 = vmatmul.f32.gmra.mxu0 %v3537
    %v3797 = vpop.f32.mrf.mxu0
    %v3798 = vadd.f32 %v3769, %v3797
    %3799 = vmatmul.f32.gmra.mxu0 %v3540
    %v3800 = vpop.f32.mrf.mxu0
    %v3801 = vadd.f32 %v3772, %v3800
    %3802 = vdwg.mxu0
    %3803 = vmatpush.msra.mxu0 %v3425
    %3804 = vmatpush.msra.mxu0 %v3421
    %3805 = vmatpush.msra.mxu0 %v3417
    %3806 = vmatpush.msra.mxu0 %v3413
    %3807 = vmatpush.msra.mxu0 %v3409
    %3808 = vmatpush.msra.mxu0 %v3405
    %3809 = vmatpush.msra.mxu0 %v3401
    %3810 = vmatpush.msra.mxu0 %v3397
    %3811 = vmatpush.msra.mxu0 %v3393
    %3812 = vmatpush.msra.mxu0 %v3389
    %3813 = vmatpush.msra.mxu0 %v3385
    %3814 = vmatpush.msra.mxu0 %v3381
    %3815 = vmatpush.msra.mxu0 %v3377
    %3816 = vmatpush.msra.mxu0 %v3373
    %3817 = vmatpush.msra.mxu0 %v3369
    %3818 = vmatpush.msra.mxu0 %v3365
    %3819 = vmatmul.f32.gmra.mxu0 %v3350
    %v3820 = vpop.f32.mrf.mxu0
    %v3821 = vadd.f32 %v3513, %v3820
    %3822 = vmatmul.f32.gmra.mxu0 %v3353
    %v3823 = vpop.f32.mrf.mxu0
    %v3824 = vadd.f32 %v3518, %v3823
    %3825 = vmatmul.f32.gmra.mxu0 %v3356
    %v3826 = vpop.f32.mrf.mxu0
    %v3827 = vadd.f32 %v3523, %v3826
    %3828 = vmatmul.f32.gmra.mxu0 %v3359
    %v3829 = vpop.f32.mrf.mxu0
    %v3830 = vadd.f32 %v3528, %v3829
    %3831 = vdwg.mxu0
    %3832 = vmatpush.msra.mxu0 %v3489
    %3833 = vmatpush.msra.mxu0 %v3485
    %3834 = vmatpush.msra.mxu0 %v3481
    %3835 = vmatpush.msra.mxu0 %v3477
    %3836 = vmatpush.msra.mxu0 %v3473
    %3837 = vmatpush.msra.mxu0 %v3469
    %3838 = vmatpush.msra.mxu0 %v3465
    %3839 = vmatpush.msra.mxu0 %v3461
    %3840 = vmatpush.msra.mxu0 %v3457
    %3841 = vmatpush.msra.mxu0 %v3453
    %3842 = vmatpush.msra.mxu0 %v3449
    %3843 = vmatpush.msra.mxu0 %v3445
    %3844 = vmatpush.msra.mxu0 %v3441
    %3845 = vmatpush.msra.mxu0 %v3437
    %3846 = vmatpush.msra.mxu0 %v3433
    %3847 = vmatpush.msra.mxu0 %v3429
    %3848 = vmatmul.f32.gmra.mxu0 %v3351
    %v3849 = vpop.f32.mrf.mxu0
    %v3850 = vadd.f32 %v3821, %v3849
    %3851 = vmatmul.f32.gmra.mxu0 %v3354
    %v3852 = vpop.f32.mrf.mxu0
    %v3853 = vadd.f32 %v3824, %v3852
    %3854 = vmatmul.f32.gmra.mxu0 %v3357
    %v3855 = vpop.f32.mrf.mxu0
    %v3856 = vadd.f32 %v3827, %v3855
    %3857 = vmatmul.f32.gmra.mxu0 %v3360
    %v3858 = vpop.f32.mrf.mxu0
    %v3859 = vadd.f32 %v3830, %v3858
    %3860 = vdwg.mxu0
    %3861 = vmatpush.msra.mxu0 0.0
    %3862 = vmatpush.msra.mxu0 0.0
    %3863 = vmatpush.msra.mxu0 0.0
    %3864 = vmatpush.msra.mxu0 0.0
    %3865 = vmatpush.msra.mxu0 0.0
    %3866 = vmatpush.msra.mxu0 0.0
    %3867 = vmatpush.msra.mxu0 0.0
    %3868 = vmatpush.msra.mxu0 0.0
    %3869 = vmatpush.msra.mxu0 0.0
    %3870 = vmatpush.msra.mxu0 0.0
    %3871 = vmatpush.msra.mxu0 0.0
    %3872 = vmatpush.msra.mxu0 0.0
    %3873 = vmatpush.msra.mxu0 %v3505
    %3874 = vmatpush.msra.mxu0 %v3501
    %3875 = vmatpush.msra.mxu0 %v3497
    %3876 = vmatpush.msra.mxu0 %v3493
    %3877 = vmatmul.f32.gmra.mxu0 %v3531
    %v3878 = vpop.f32.mrf.mxu0
    %v3879 = vadd.f32 %v3850, %v3878
    %3880 = vmatmul.f32.gmra.mxu0 %v3534
    %v3881 = vpop.f32.mrf.mxu0
    %v3882 = vadd.f32 %v3853, %v3881
    %3883 = vmatmul.f32.gmra.mxu0 %v3537
    %v3884 = vpop.f32.mrf.mxu0
    %v3885 = vadd.f32 %v3856, %v3884
    %3886 = vmatmul.f32.gmra.mxu0 %v3540
    %v3887 = vpop.f32.mrf.mxu0
    %v3888 = vadd.f32 %v3859, %v3887
    %3889 = vdwg.mxu0
    %3890 = vst [vmem:[#allocation11] sm:$0xff] %v3618
    %3891 = vst [vmem:[#allocation11 + $0x8] sm:$0xff] %v3705
    %3892 = vst [vmem:[#allocation11 + $0x10] sm:$0xff] %v3621
    %3893 = vst [vmem:[#allocation11 + $0x18] sm:$0xff] %v3708
    %3894 = vst [vmem:[#allocation11 + $0x20] sm:$0xff] %v3624
    %3895 = vst [vmem:[#allocation11 + $0x28] sm:$0xff] %v3711
    %3896 = vst [vmem:[#allocation11 + $0x30] sm:$0xff] %v3627
    %3897 = vst [vmem:[#allocation11 + $0x38] sm:$0xff] %v3714
    %s3898 = scalar_lea.vmem [#allocation11], 64
    %3899 = vst [vmem:[%s3898] sm:$0xff] %v3792
    %3900 = vst [vmem:[%s3898 + $0x8] sm:$0xff] %v3879
    %3901 = vst [vmem:[%s3898 + $0x10] sm:$0xff] %v3795
    %3902 = vst [vmem:[%s3898 + $0x18] sm:$0xff] %v3882
    %3903 = vst [vmem:[%s3898 + $0x20] sm:$0xff] %v3798
    %3904 = vst [vmem:[%s3898 + $0x28] sm:$0xff] %v3885
    %3905 = vst [vmem:[%s3898 + $0x30] sm:$0xff] %v3801
    %3906 = vst [vmem:[%s3898 + $0x38] sm:$0xff] %v3888
    %v3907 = vld [vmem:[#allocation11] sm:$0xff]
    %v3908 = vld [vmem:[#allocation11 + $0x8] sm:$0xff]
    %v3909 = vld [vmem:[#allocation11 + $0x10] sm:$0xff]
    %v3910 = vld [vmem:[#allocation11 + $0x18] sm:$0xff]
    %v3911 = vld [vmem:[#allocation11 + $0x20] sm:$0xff]
    %v3912 = vld [vmem:[#allocation11 + $0x28] sm:$0xff]
    %v3913 = vld [vmem:[#allocation11 + $0x30] sm:$0xff]
    %v3914 = vld [vmem:[#allocation11 + $0x38] sm:$0xff]
    %3915 = vmatpush.msra.mxu0 0.00390625
    %3916 = vmatpush.msra.mxu0 0.00390625
    %3917 = vmatpush.msra.mxu0 0.00390625
    %3918 = vmatpush.msra.mxu0 0.00390625
    %3919 = vmatpush.msra.mxu0 0.00390625
    %3920 = vmatpush.msra.mxu0 0.00390625
    %3921 = vmatpush.msra.mxu0 0.00390625
    %3922 = vmatpush.msra.mxu0 0.00390625
    %3923 = vmatpush.msra.mxu0 0.00390625
    %3924 = vmatpush.msra.mxu0 0.00390625
    %3925 = vmatpush.msra.mxu0 0.00390625
    %3926 = vmatpush.msra.mxu0 0.00390625
    %3927 = vmatpush.msra.mxu0 0.00390625
    %3928 = vmatpush.msra.mxu0 0.00390625
    %3929 = vmatpush.msra.mxu0 0.00390625
    %3930 = vmatpush.msra.mxu0 0.00390625
    %3931 = vmatmul.f32.gmra.mxu0 %v3907
    %v3932 = vpop.f32.mrf.mxu0
    %v3933 = vadd.f32 0.0, %v3932
    %3934 = vmatmul.f32.gmra.mxu0 %v3909
    %v3935 = vpop.f32.mrf.mxu0
    %v3936 = vadd.f32 0.0, %v3935
    %3937 = vmatmul.f32.gmra.mxu0 %v3911
    %v3938 = vpop.f32.mrf.mxu0
    %v3939 = vadd.f32 0.0, %v3938
    %3940 = vmatmul.f32.gmra.mxu0 %v3913
    %v3941 = vpop.f32.mrf.mxu0
    %v3942 = vadd.f32 0.0, %v3941
    %3943 = vdwg.mxu0
    %3944 = vmatpush.msra.mxu0 0.00390625
    %3945 = vmatpush.msra.mxu0 0.00390625
    %3946 = vmatpush.msra.mxu0 0.00390625
    %3947 = vmatpush.msra.mxu0 0.00390625
    %3948 = vmatpush.msra.mxu0 0.00390625
    %3949 = vmatpush.msra.mxu0 0.00390625
    %3950 = vmatpush.msra.mxu0 0.00390625
    %3951 = vmatpush.msra.mxu0 0.00390625
    %3952 = vmatpush.msra.mxu0 0.00390625
    %3953 = vmatpush.msra.mxu0 0.00390625
    %3954 = vmatpush.msra.mxu0 0.00390625
    %3955 = vmatpush.msra.mxu0 0.00390625
    %3956 = vmatpush.msra.mxu0 0.00390625
    %3957 = vmatpush.msra.mxu0 0.00390625
    %3958 = vmatpush.msra.mxu0 0.00390625
    %3959 = vmatpush.msra.mxu0 0.00390625
    %3960 = vmatmul.f32.gmra.mxu0 %v3908
    %v3961 = vpop.f32.mrf.mxu0
    %v3962 = vadd.f32 %v3933, %v3961
    %3963 = vmatmul.f32.gmra.mxu0 %v3910
    %v3964 = vpop.f32.mrf.mxu0
    %v3965 = vadd.f32 %v3936, %v3964
    %3966 = vmatmul.f32.gmra.mxu0 %v3912
    %v3967 = vpop.f32.mrf.mxu0
    %v3968 = vadd.f32 %v3939, %v3967
    %3969 = vmatmul.f32.gmra.mxu0 %v3914
    %v3970 = vpop.f32.mrf.mxu0
    %v3971 = vadd.f32 %v3942, %v3970
    %3972 = vdwg.mxu0
    %v3973 = vld [vmem:[%s3898] sm:$0xff]
    %v3974 = vld [vmem:[%s3898 + $0x8] sm:$0xff]
    %v3975 = vld [vmem:[%s3898 + $0x10] sm:$0xff]
    %v3976 = vld [vmem:[%s3898 + $0x18] sm:$0xff]
    %v3977 = vld [vmem:[%s3898 + $0x20] sm:$0xff]
    %v3978 = vld [vmem:[%s3898 + $0x28] sm:$0xff]
    %v3979 = vld [vmem:[%s3898 + $0x30] sm:$0xff]
    %v3980 = vld [vmem:[%s3898 + $0x38] sm:$0xff]
    %3981 = vmatpush.msra.mxu0 0.00390625
    %3982 = vmatpush.msra.mxu0 0.00390625
    %3983 = vmatpush.msra.mxu0 0.00390625
    %3984 = vmatpush.msra.mxu0 0.00390625
    %3985 = vmatpush.msra.mxu0 0.00390625
    %3986 = vmatpush.msra.mxu0 0.00390625
    %3987 = vmatpush.msra.mxu0 0.00390625
    %3988 = vmatpush.msra.mxu0 0.00390625
    %3989 = vmatpush.msra.mxu0 0.00390625
    %3990 = vmatpush.msra.mxu0 0.00390625
    %3991 = vmatpush.msra.mxu0 0.00390625
    %3992 = vmatpush.msra.mxu0 0.00390625
    %3993 = vmatpush.msra.mxu0 0.00390625
    %3994 = vmatpush.msra.mxu0 0.00390625
    %3995 = vmatpush.msra.mxu0 0.00390625
    %3996 = vmatpush.msra.mxu0 0.00390625
    %3997 = vmatmul.f32.gmra.mxu0 %v3973
    %v3998 = vpop.f32.mrf.mxu0
    %v3999 = vadd.f32 0.0, %v3998
    %4000 = vmatmul.f32.gmra.mxu0 %v3975
    %v4001 = vpop.f32.mrf.mxu0
    %v4002 = vadd.f32 0.0, %v4001
    %4003 = vmatmul.f32.gmra.mxu0 %v3977
    %v4004 = vpop.f32.mrf.mxu0
    %v4005 = vadd.f32 0.0, %v4004
    %4006 = vmatmul.f32.gmra.mxu0 %v3979
    %v4007 = vpop.f32.mrf.mxu0
    %v4008 = vadd.f32 0.0, %v4007
    %4009 = vdwg.mxu0
    %4010 = vmatpush.msra.mxu0 0.00390625
    %4011 = vmatpush.msra.mxu0 0.00390625
    %4012 = vmatpush.msra.mxu0 0.00390625
    %4013 = vmatpush.msra.mxu0 0.00390625
    %4014 = vmatpush.msra.mxu0 0.00390625
    %4015 = vmatpush.msra.mxu0 0.00390625
    %4016 = vmatpush.msra.mxu0 0.00390625
    %4017 = vmatpush.msra.mxu0 0.00390625
    %4018 = vmatpush.msra.mxu0 0.00390625
    %4019 = vmatpush.msra.mxu0 0.00390625
    %4020 = vmatpush.msra.mxu0 0.00390625
    %4021 = vmatpush.msra.mxu0 0.00390625
    %4022 = vmatpush.msra.mxu0 0.00390625
    %4023 = vmatpush.msra.mxu0 0.00390625
    %4024 = vmatpush.msra.mxu0 0.00390625
    %4025 = vmatpush.msra.mxu0 0.00390625
    %4026 = vmatmul.f32.gmra.mxu0 %v3974
    %v4027 = vpop.f32.mrf.mxu0
    %v4028 = vadd.f32 %v3999, %v4027
    %4029 = vmatmul.f32.gmra.mxu0 %v3976
    %v4030 = vpop.f32.mrf.mxu0
    %v4031 = vadd.f32 %v4002, %v4030
    %4032 = vmatmul.f32.gmra.mxu0 %v3978
    %v4033 = vpop.f32.mrf.mxu0
    %v4034 = vadd.f32 %v4005, %v4033
    %4035 = vmatmul.f32.gmra.mxu0 %v3980
    %v4036 = vpop.f32.mrf.mxu0
    %v4037 = vadd.f32 %v4008, %v4036
    %4038 = vdwg.mxu0
    %4043 = vrot.lane.b32.xlu0 %v4028, 1
    %v4044 = vpop.permute.xlu0 %4043
    %4045 = vrot.lane.b32.xlu0 %v4031, 1
    %v4046 = vpop.permute.xlu0 %4045
    %4047 = vrot.lane.b32.xlu0 %v4034, 1
    %v4048 = vpop.permute.xlu0 %4047
    %4049 = vrot.lane.b32.xlu0 %v4037, 1
    %v4050 = vpop.permute.xlu0 %4049
    %v4055 = vsel %vm724, %v3962, %v4044
    %v4056 = vsel %vm724, %v3965, %v4046
    %v4057 = vsel %vm724, %v3968, %v4048
    %v4058 = vsel %vm724, %v3971, %v4050
    %v4059 = vld [vmem:[%s5] sm:$0xff]
    %v4060 = vld [vmem:[%s6] sm:$0xff]
    %4062 = vset.pattern.permute.xlu0 0
    %4063 = vperm.xlu0 %4062, %v4060
    %v4064 = vpop.permute.xlu0 %4063
    %v4067 = vsel %vm1677, %v4059, 0
    %4069 = vmatpush.msra.mxu0 0.0
    %4070 = vmatpush.msra.mxu0 0.0
    %4071 = vmatpush.msra.mxu0 0.0
    %4072 = vmatpush.msra.mxu0 0.0
    %4073 = vmatpush.msra.mxu0 0.0
    %4074 = vmatpush.msra.mxu0 0.0
    %4075 = vmatpush.msra.mxu0 0.0
    %4076 = vmatpush.msra.mxu0 0.0
    %4077 = vmatpush.msra.mxu0 0.0
    %4078 = vmatpush.msra.mxu0 0.0
    %4079 = vmatpush.msra.mxu0 0.0
    %4080 = vmatpush.msra.mxu0 0.0
    %4081 = vmatpush.msra.mxu0 %v4058
    %4082 = vmatpush.msra.mxu0 %v4057
    %4083 = vmatpush.msra.mxu0 %v4056
    %4084 = vmatpush.msra.mxu0 %v4055
    %4085 = vmatmul.f32.gmra.mxu0 %v4067
    %v4086 = vpop.f32.mrf.mxu0
    %v4087 = vadd.f32 %v4064, %v4086
    %4088 = vdwg.mxu0
    %v4089 = vmax.f32 %v4087, 0.0
    %v4090 = vld [vmem:[%s7] sm:$0xff]
    %v4091 = vld [vmem:[%s7 + $0x8] sm:$0xff]
    %v4092 = vld [vmem:[%s7 + $0x10] sm:$0xff]
    %v4093 = vld [vmem:[%s7 + $0x18] sm:$0xff]
    %v4094 = vld [vmem:[%s8] sm:$0xff]
    %v4095 = vld [vmem:[%s8 + $0x8] sm:$0xff]
    %v4096 = vld [vmem:[%s8 + $0x10] sm:$0xff]
    %v4097 = vld [vmem:[%s8 + $0x18] sm:$0xff]
    %4099 = vset.pattern.permute.xlu0 0
    %4100 = vperm.xlu0 %4099, %v4094
    %v4101 = vpop.permute.xlu0 %4100
    %4104 = vset.pattern.permute.xlu0 0
    %4105 = vperm.xlu0 %4104, %v4095
    %v4106 = vpop.permute.xlu0 %4105
    %4109 = vset.pattern.permute.xlu0 0
    %4110 = vperm.xlu0 %4109, %v4096
    %v4111 = vpop.permute.xlu0 %4110
    %4114 = vset.pattern.permute.xlu0 0
    %4115 = vperm.xlu0 %4114, %v4097
    %v4116 = vpop.permute.xlu0 %4115
    %vm4118 = vcmask 64512
    %v4120 = vsel %vm4118, %v4090, 0
    %v4123 = vsel %vm4118, %v4091, 0
    %v4126 = vsel %vm4118, %v4092, 0
    %v4129 = vsel %vm4118, %v4093, 0
    %4131 = vmatpush.msra.mxu0 0.0
    %4132 = vmatpush.msra.mxu0 0.0
    %4133 = vmatpush.msra.mxu0 0.0
    %4134 = vmatpush.msra.mxu0 0.0
    %4135 = vmatpush.msra.mxu0 0.0
    %4136 = vmatpush.msra.mxu0 0.0
    %4137 = vmatpush.msra.mxu0 0.0
    %4138 = vmatpush.msra.mxu0 0.0
    %4139 = vmatpush.msra.mxu0 0.0
    %4140 = vmatpush.msra.mxu0 0.0
    %4141 = vmatpush.msra.mxu0 0.0
    %4142 = vmatpush.msra.mxu0 0.0
    %4143 = vmatpush.msra.mxu0 0.0
    %4144 = vmatpush.msra.mxu0 0.0
    %4145 = vmatpush.msra.mxu0 0.0
    %4146 = vmatpush.msra.mxu0 %v4089
    %4147 = vmatmul.f32.gmra.mxu0 %v4120
    %v4148 = vpop.f32.mrf.mxu0
    %v4149 = vadd.f32 %v4101, %v4148
    %4150 = vmatmul.f32.gmra.mxu0 %v4123
    %v4151 = vpop.f32.mrf.mxu0
    %v4152 = vadd.f32 %v4106, %v4151
    %4153 = vmatmul.f32.gmra.mxu0 %v4126
    %v4154 = vpop.f32.mrf.mxu0
    %v4155 = vadd.f32 %v4111, %v4154
    %4156 = vmatmul.f32.gmra.mxu0 %v4129
    %v4157 = vpop.f32.mrf.mxu0
    %v4158 = vadd.f32 %v4116, %v4157
    %4159 = vdwg.mxu0
    %v4160 = vsub.f32 0.0, %v4149
    %v4161 = vsub.f32 0.0, %v4152
    %v4162 = vsub.f32 0.0, %v4155
    %v4163 = vsub.f32 0.0, %v4158
    %v4164 = vmul.f32 %v4160, 1.442695
    %v4165 = vpow.pop %v4164
    %v4166 = vmul.f32 %v4161, 1.442695
    %v4167 = vpow.pop %v4166
    %v4168 = vmul.f32 %v4162, 1.442695
    %v4169 = vpow.pop %v4168
    %v4170 = vmul.f32 %v4163, 1.442695
    %v4171 = vpow.pop %v4170
    %v4172 = vadd.f32 %v4165, 1.0
    %v4173 = vadd.f32 %v4167, 1.0
    %v4174 = vadd.f32 %v4169, 1.0
    %v4175 = vadd.f32 %v4171, 1.0
    %v4176 = vrcp.pop %v4172
    %v4177 = vmul.f32 %v4172, %v4176
    %v4178 = vsub.f32 1.0, %v4177
    %v4179 = vmul.f32 %v4176, %v4178
    %v4180 = vadd.f32 %v4176, %v4179
    %vm4181 = vweird.f32 %v4172
    %vm4182 = vweird.f32 %v4176
    %vm4183 = vmor %vm4181, %vm4182
    %v4184 = vsel %vm4183, %v4176, %v4180
    %v4185 = vand.u32 2147483647, %v4172
    %vm4186 = vcmp.eq.f32.partialorder %v4185, 8.507059e+37
    %v4187 = vand.u32 %v4172, 2147483648
    %v4188 = vor.u32 1.1754944e-38, %v4187
    %v4189 = vsel %vm4186, %v4188, %v4184
    %v4190 = vmul.f32 1.0, %v4189
    %v4191 = vrcp.pop %v4173
    %v4192 = vmul.f32 %v4173, %v4191
    %v4193 = vsub.f32 1.0, %v4192
    %v4194 = vmul.f32 %v4191, %v4193
    %v4195 = vadd.f32 %v4191, %v4194
    %vm4196 = vweird.f32 %v4173
    %vm4197 = vweird.f32 %v4191
    %vm4198 = vmor %vm4196, %vm4197
    %v4199 = vsel %vm4198, %v4191, %v4195
    %v4200 = vand.u32 2147483647, %v4173
    %vm4201 = vcmp.eq.f32.partialorder %v4200, 8.507059e+37
    %v4202 = vand.u32 %v4173, 2147483648
    %v4203 = vor.u32 1.1754944e-38, %v4202
    %v4204 = vsel %vm4201, %v4203, %v4199
    %v4205 = vmul.f32 1.0, %v4204
    %v4206 = vrcp.pop %v4174
    %v4207 = vmul.f32 %v4174, %v4206
    %v4208 = vsub.f32 1.0, %v4207
    %v4209 = vmul.f32 %v4206, %v4208
    %v4210 = vadd.f32 %v4206, %v4209
    %vm4211 = vweird.f32 %v4174
    %vm4212 = vweird.f32 %v4206
    %vm4213 = vmor %vm4211, %vm4212
    %v4214 = vsel %vm4213, %v4206, %v4210
    %v4215 = vand.u32 2147483647, %v4174
    %vm4216 = vcmp.eq.f32.partialorder %v4215, 8.507059e+37
    %v4217 = vand.u32 %v4174, 2147483648
    %v4218 = vor.u32 1.1754944e-38, %v4217
    %v4219 = vsel %vm4216, %v4218, %v4214
    %v4220 = vmul.f32 1.0, %v4219
    %v4221 = vrcp.pop %v4175
    %v4222 = vmul.f32 %v4175, %v4221
    %v4223 = vsub.f32 1.0, %v4222
    %v4224 = vmul.f32 %v4221, %v4223
    %v4225 = vadd.f32 %v4221, %v4224
    %vm4226 = vweird.f32 %v4175
    %vm4227 = vweird.f32 %v4221
    %vm4228 = vmor %vm4226, %vm4227
    %v4229 = vsel %vm4228, %v4221, %v4225
    %v4230 = vand.u32 2147483647, %v4175
    %vm4231 = vcmp.eq.f32.partialorder %v4230, 8.507059e+37
    %v4232 = vand.u32 %v4175, 2147483648
    %v4233 = vor.u32 1.1754944e-38, %v4232
    %v4234 = vsel %vm4231, %v4233, %v4229
    %v4235 = vmul.f32 1.0, %v4234
    %4237 = vset.pattern.permute.xlu0 0
    %4238 = vperm.xlu0 %4237, %v4190
    %v4239 = vpop.permute.xlu0 %4238
    %4242 = vset.pattern.permute.xlu0 0
    %4243 = vperm.xlu0 %4242, %v4205
    %v4244 = vpop.permute.xlu0 %4243
    %4247 = vset.pattern.permute.xlu0 0
    %4248 = vperm.xlu0 %4247, %v4220
    %v4249 = vpop.permute.xlu0 %4248
    %4252 = vset.pattern.permute.xlu0 0
    %4253 = vperm.xlu0 %4252, %v4235
    %v4254 = vpop.permute.xlu0 %4253
    %v4256 = vmul.f32 %v3907, %v4239
    %v4257 = vmul.f32 %v3908, %v4239
    %v4258 = vmul.f32 %v3909, %v4244
    %v4259 = vmul.f32 %v3910, %v4244
    %v4260 = vmul.f32 %v3911, %v4249
    %v4261 = vmul.f32 %v3912, %v4249
    %v4262 = vmul.f32 %v3913, %v4254
    %v4263 = vmul.f32 %v3914, %v4254
    %v4264 = vld [vmem:[#allocation5] sm:$0xff]
    %v4265 = vld [vmem:[#allocation5 + $0x8] sm:$0xff]
    %v4266 = vld [vmem:[#allocation5 + $0x10] sm:$0xff]
    %v4267 = vld [vmem:[#allocation5 + $0x18] sm:$0xff]
    %v4268 = vld [vmem:[#allocation5 + $0x20] sm:$0xff]
    %v4269 = vld [vmem:[#allocation5 + $0x28] sm:$0xff]
    %v4270 = vld [vmem:[#allocation5 + $0x30] sm:$0xff]
    %v4271 = vld [vmem:[#allocation5 + $0x38] sm:$0xff]
    %v4272 = vadd.f32 %v4256, %v4264
    %v4273 = vadd.f32 %v4257, %v4265
    %v4274 = vadd.f32 %v4258, %v4266
    %v4275 = vadd.f32 %v4259, %v4267
    %v4276 = vadd.f32 %v4260, %v4268
    %v4277 = vadd.f32 %v4261, %v4269
    %v4278 = vadd.f32 %v4262, %v4270
    %v4279 = vadd.f32 %v4263, %v4271
    %4280 = vst [vmem:[#allocation11] sm:$0xff] %v4272
    %4281 = vst [vmem:[#allocation11 + $0x8] sm:$0xff] %v4273
    %4282 = vst [vmem:[#allocation11 + $0x10] sm:$0xff] %v4274
    %4283 = vst [vmem:[#allocation11 + $0x18] sm:$0xff] %v4275
    %4284 = vst [vmem:[#allocation11 + $0x20] sm:$0xff] %v4276
    %4285 = vst [vmem:[#allocation11 + $0x28] sm:$0xff] %v4277
    %4286 = vst [vmem:[#allocation11 + $0x30] sm:$0xff] %v4278
    %4287 = vst [vmem:[#allocation11 + $0x38] sm:$0xff] %v4279
    %v4288 = vld [vmem:[%s3898] sm:$0xff]
    %v4289 = vld [vmem:[%s3898 + $0x8] sm:$0xff]
    %v4290 = vld [vmem:[%s3898 + $0x10] sm:$0xff]
    %v4291 = vld [vmem:[%s3898 + $0x18] sm:$0xff]
    %v4292 = vld [vmem:[%s3898 + $0x20] sm:$0xff]
    %v4293 = vld [vmem:[%s3898 + $0x28] sm:$0xff]
    %v4294 = vld [vmem:[%s3898 + $0x30] sm:$0xff]
    %v4295 = vld [vmem:[%s3898 + $0x38] sm:$0xff]
    %4296 = vset.pattern.permute.xlu0 1
    %4297 = vperm.xlu0 %4296, %v4190
    %v4298 = vpop.permute.xlu0 %4297
    %4300 = vset.pattern.permute.xlu0 1
    %4301 = vperm.xlu0 %4300, %v4205
    %v4302 = vpop.permute.xlu0 %4301
    %4304 = vset.pattern.permute.xlu0 1
    %4305 = vperm.xlu0 %4304, %v4220
    %v4306 = vpop.permute.xlu0 %4305
    %4308 = vset.pattern.permute.xlu0 1
    %4309 = vperm.xlu0 %4308, %v4235
    %v4310 = vpop.permute.xlu0 %4309
    %v4312 = vmul.f32 %v4288, %v4298
    %v4313 = vmul.f32 %v4289, %v4298
    %v4314 = vmul.f32 %v4290, %v4302
    %v4315 = vmul.f32 %v4291, %v4302
    %v4316 = vmul.f32 %v4292, %v4306
    %v4317 = vmul.f32 %v4293, %v4306
    %v4318 = vmul.f32 %v4294, %v4310
    %v4319 = vmul.f32 %v4295, %v4310
    %v4320 = vld [vmem:[%s113] sm:$0xff]
    %v4321 = vld [vmem:[%s113 + $0x8] sm:$0xff]
    %v4322 = vld [vmem:[%s113 + $0x10] sm:$0xff]
    %v4323 = vld [vmem:[%s113 + $0x18] sm:$0xff]
    %v4324 = vld [vmem:[%s113 + $0x20] sm:$0xff]
    %v4325 = vld [vmem:[%s113 + $0x28] sm:$0xff]
    %v4326 = vld [vmem:[%s113 + $0x30] sm:$0xff]
    %v4327 = vld [vmem:[%s113 + $0x38] sm:$0xff]
    %v4328 = vadd.f32 %v4312, %v4320
    %v4329 = vadd.f32 %v4313, %v4321
    %v4330 = vadd.f32 %v4314, %v4322
    %v4331 = vadd.f32 %v4315, %v4323
    %v4332 = vadd.f32 %v4316, %v4324
    %v4333 = vadd.f32 %v4317, %v4325
    %v4334 = vadd.f32 %v4318, %v4326
    %v4335 = vadd.f32 %v4319, %v4327
    %4336 = vst [vmem:[%s3898] sm:$0xff] %v4328
    %4337 = vst [vmem:[%s3898 + $0x8] sm:$0xff] %v4329
    %4338 = vst [vmem:[%s3898 + $0x10] sm:$0xff] %v4330
    %4339 = vst [vmem:[%s3898 + $0x18] sm:$0xff] %v4331
    %4340 = vst [vmem:[%s3898 + $0x20] sm:$0xff] %v4332
    %4341 = vst [vmem:[%s3898 + $0x28] sm:$0xff] %v4333
    %4342 = vst [vmem:[%s3898 + $0x30] sm:$0xff] %v4334
    %4343 = vst [vmem:[%s3898 + $0x38] sm:$0xff] %v4335
    // Predicated region
    $region88: #{tpu_custom_call.1} parent=1 // pred_check
      _
    $region89: #{tpu_custom_call.1} parent=1 // pred_check_branch
      %4345 = sbr.rel (0) target = $region91
    $region90: #{tpu_custom_call.1} parent=1 // pred_region
      %4347 = vsyncadd [#allocation7], 0
      %s4348 = sshll.u32 [#allocation11], 4
      %s4349 = int_to_ptr.vmem [resolvable:$true] %s4348
      %s4350 = sshll.u32 %s9, 4
      %s4351 = int_to_ptr.hbm [resolvable:$true] %s4350
      %4356 = dma.vmem_to_hbm [thread:$0]  %s4349, 2048, %s4351, [#allocation7], 256, 256, 16
    $region91: #{tpu_custom_call.1} parent=1 // pred_fallthru
      _
    // Predicated region
    $region92: #{tpu_custom_call.1} parent=1 // pred_check
      _
    $region93: #{tpu_custom_call.1} parent=1 // pred_check_branch
      %4358 = sbr.rel (0) target = $region95
    $region94: #{tpu_custom_call.1} parent=1 // pred_region
      %4360 = dma.done [#allocation7], 2048
    $region95: #{tpu_custom_call.1} parent=1 // pred_fallthru
      _
    %4361 = vsyncpa [#allocation6], 1
    %4362 = vsyncpa [#allocation9], 1
    %4363 = vsyncpa [#allocation7], 1
  %4364 = vsyncmov [#allocation4]
  %s4365 = vpop.sfrf %4364
  %p4366 = scmp.eq.s32.totalorder %s4365, 0
  %p4367 = pneg %p4366
  %4369 = shalt.err (%p4367)
  %s4370 = scalar_lea.sflag [#allocation4], 1
  %4371 = vsyncmov %s4370
  %s4372 = vpop.sfrf %4371
  %p4373 = scmp.eq.s32.totalorder %s4372, 0
  %p4374 = pneg %p4373
  %4376 = shalt.err (%p4374)

</llo_original>
